<compile_context>
chip_gen: v7x
topology: tpu7x:2x2x1
jax: 0.10.0
libtpu: 0.0.40
codegen_flags: <defaults>
</compile_context>

<pallas_src>
import jax
import jax.numpy as jnp
from jax import lax
from jax.experimental import pallas as pl
from jax.experimental.pallas import tpu as pltpu


def smallnet_kernel(patch_ref, wconv_ref, bconv_ref, wfc_ref, bfc_ref,
                    out_ref, pooled_ref):
    # patch_ref : (49, 27, Bn) im2col taps for window position k = program_id(1)
    # wconv_ref : (49, 5, 27)  conv weight (broadcast over the 49 pool-group pixels)
    # bconv_ref : (1, 5, 1)    conv bias
    # wfc_ref   : (49, 5, 1)   fc weight reordered to (p, c)
    # bfc_ref   : (1, 1, 1)    fc bias
    # out_ref   : (1, 1, Bn)   one lane-dense row of outputs per batch block
    # pooled_ref: (49, 5, Bn)  running max over the 16 conv pixels per pool group
    k = pl.program_id(1)

    # Conv as a batched matmul over the 49 pool-group pixels:
    #   conv[p, c, b] = sum_r wconv[p, c, r] * patch[p, r, b]
    conv = lax.dot_general(
        wconv_ref[...], patch_ref[...],
        dimension_numbers=(((2,), (1,)), ((0,), (0,))),
        preferred_element_type=jnp.float32)              # (49, 5, Bn)
    act = jnp.maximum(conv + bconv_ref[...], 0.0)        # conv bias + ReLU

    @pl.when(k == 0)
    def _():
        pooled_ref[...] = act

    @pl.when(k != 0)
    def _():
        pooled_ref[...] = jnp.maximum(pooled_ref[...], act)

    @pl.when(k == pl.num_programs(1) - 1)
    def _():
        # MaxPool2x2(MaxPool2x2(.)) is done (max over the 16 window pixels);
        # finish the Linear(245, 1) in-kernel.
        contrib = pooled_ref[...] * wfc_ref[...]          # (49, 5, Bn)
        s = jnp.sum(contrib, axis=0, keepdims=True)       # (1, 5, Bn)
        s = jnp.sum(s, axis=1, keepdims=True)             # (1, 1, Bn)
        out_ref[...] = s + bfc_ref[...]


def im2col_pool_groups(x):
    # x: (N, 3, 32, 32) -> (N, 49, 16, 27)
    #   axis 1 : p = i*7 + j   -> output pixel of the SECOND max-pool (7x7 grid)
    #   axis 2 : k = a*4 + b   -> the 16 conv-output pixels (4x4 window) feeding p
    #   axis 3 : flattened (cin, kh, kw) receptive field (matches Conv2d weight order)
    N = x.shape[0]
    cols = jnp.stack(
        [x[:, :, kh:kh + 28, kw:kw + 28] for kh in range(3) for kw in range(3)],
        axis=-1)                                    # (N, 3, 28, 28, 9)  last = kh*3+kw
    P = jnp.transpose(cols, (0, 2, 3, 1, 4))        # (N, 28, 28, 3, 9)
    P = P.reshape(N, 28, 28, 27)                    # (cin, kh, kw) flattened
    P = P.reshape(N, 7, 4, 7, 4, 27)                # h = 4i+a, w = 4j+b
    P = jnp.transpose(P, (0, 1, 3, 2, 4, 5))        # (N, 7, 7, 4, 4, 27)
    return P.reshape(N, 49, 16, 27)


def smallnet_forward(x, conv_w, conv_b, fc_w, fc_b, block_n=None):
    N = x.shape[0]
    x = x.astype(jnp.float32)

    # Batch tile: lane-dense (128) for large batches, minimal sublane-aligned pad otherwise.
    if block_n is None:
        block_n = 128 if N >= 128 else max(8, -(-N // 8) * 8)
    bn = block_n
    g = -(-N // bn)
    n_pad = g * bn
    if n_pad != N:
        x = jnp.pad(x, ((0, n_pad - N), (0, 0), (0, 0), (0, 0)))

    patches = im2col_pool_groups(x)                      # (n_pad, 49, 16, 27)
    patches = patches.reshape(g, bn, 49, 16, 27)         # [g, b, p, k, r]
    patches = jnp.transpose(patches, (0, 3, 2, 4, 1))    # (g, 16, 49, 27, bn) = [g, k, p, r, b]

    wconv = jnp.broadcast_to(
        conv_w.reshape(1, 5, 27).astype(jnp.float32), (49, 5, 27))
    bconv = conv_b.reshape(1, 5, 1).astype(jnp.float32)
    # PyTorch flattens (c, i, j): fc_w[0, c*49 + p] -> wfc[p, c, 0]
    wfc = fc_w.astype(jnp.float32).reshape(5, 49).T.reshape(49, 5, 1)
    bfc = fc_b.astype(jnp.float32).reshape(1, 1, 1)

    out = pl.pallas_call(
        smallnet_kernel,
        out_shape=jax.ShapeDtypeStruct((g, 1, bn), jnp.float32),
        grid_spec=pltpu.PrefetchScalarGridSpec(
            num_scalar_prefetch=0,
            grid=(g, 16),
            in_specs=[
                pl.BlockSpec((None, None, 49, 27, bn),
                             lambda i, k: (i, k, 0, 0, 0)),
                pl.BlockSpec((49, 5, 27), lambda i, k: (0, 0, 0)),
                pl.BlockSpec((1, 5, 1), lambda i, k: (0, 0, 0)),
                pl.BlockSpec((49, 5, 1), lambda i, k: (0, 0, 0)),
                pl.BlockSpec((1, 1, 1), lambda i, k: (0, 0, 0)),
            ],
            out_specs=pl.BlockSpec((1, 1, bn), lambda i, k: (i, 0, 0)),
            scratch_shapes=[pltpu.VMEM((49, 5, bn), jnp.float32)],
        ),
        compiler_params=pltpu.CompilerParams(
            dimension_semantics=("parallel", "arbitrary")),
    )(patches, wconv, bconv, wfc, bfc)                   # (g, 1, bn)

    return out.reshape(g * bn)[:N]


def reference(x, conv_w, conv_b, fc_w, fc_b):
    y = lax.conv_general_dilated(
        x, conv_w, (1, 1), "VALID",
        dimension_numbers=("NCHW", "OIHW", "NCHW"))
    y = y + conv_b[None, :, None, None]
    y = jnp.maximum(y, 0.0)
    y = lax.reduce_window(y, -jnp.inf, lax.max, (1, 1, 2, 2), (1, 1, 2, 2), "VALID")
    y = lax.reduce_window(y, -jnp.inf, lax.max, (1, 1, 2, 2), (1, 1, 2, 2), "VALID")
    y = y.reshape(y.shape[0], -1)
    y = y @ fc_w.T + fc_b
    return y[:, 0]


if __name__ == "__main__":
    key = jax.random.PRNGKey(0)
    kx, k1, k2, k3, k4 = jax.random.split(key, 5)
    N = 2
    x = jax.random.normal(kx, (N, 3, 32, 32), dtype=jnp.float32)

    # deterministic parameter init (PyTorch-style uniform fan-in bounds)
    kc = 1.0 / (3.0 * 3 * 3) ** 0.5
    conv_w = jax.random.uniform(k1, (5, 3, 3, 3), jnp.float32, -kc, kc)
    conv_b = jax.random.uniform(k2, (5,), jnp.float32, -kc, kc)
    kf = 1.0 / (245.0) ** 0.5
    fc_w = jax.random.uniform(k3, (1, 245), jnp.float32, -kf, kf)
    fc_b = jax.random.uniform(k4, (1,), jnp.float32, -kf, kf)

    y = smallnet_forward(x, conv_w, conv_b, fc_w, fc_b)
    y = jax.block_until_ready(y)

    y_ref = reference(x, conv_w, conv_b, fc_w, fc_b)
    assert y.shape == (N,)
    assert jnp.allclose(y, y_ref, atol=1e-4, rtol=1e-4), (y, y_ref)
    print("KERNEL_OK")
</pallas_src>

<mosaic_0001>
module attributes {stable_mosaic.version = 11 : i64} {
  func.func @smallnet_kernel(%arg0: i32, %arg1: i32, %arg2: memref<1x1x49x27x8xf32, #tpu.memory_space<vmem>>, %arg3: memref<49x5x27xf32, #tpu.memory_space<vmem>>, %arg4: memref<1x5x1xf32, #tpu.memory_space<vmem>>, %arg5: memref<49x5x1xf32, #tpu.memory_space<vmem>>, %arg6: memref<1x1x1xf32, #tpu.memory_space<vmem>>, %arg7: memref<1x1x8xf32, #tpu.memory_space<vmem>>, %arg8: memref<49x5x8xf32, #tpu.memory_space<vmem>>) attributes {dimension_semantics = [#tpu.dimension_semantics<parallel>, #tpu.dimension_semantics<arbitrary>], iteration_bounds = array<i64: 1, 16>, scalar_prefetch = 0 : i64, scratch_operands = 1 : i64, tpu.core_type = #tpu.core_type<tc>, window_params = [{transform_indices = @transform_0, window_bounds = array<i64: 1, 1, 49, 27, 8>}, {pipeline_mode = #tpu.pipeline_mode<synchronous>, transform_indices = @transform_1, window_bounds = array<i64: 49, 5, 27>}, {pipeline_mode = #tpu.pipeline_mode<synchronous>, transform_indices = @transform_2, window_bounds = array<i64: 1, 5, 1>}, {pipeline_mode = #tpu.pipeline_mode<synchronous>, transform_indices = @transform_3, window_bounds = array<i64: 49, 5, 1>}, {pipeline_mode = #tpu.pipeline_mode<synchronous>, transform_indices = @transform_4, window_bounds = array<i64: 1, 1, 1>}, {transform_indices = @transform_5, window_bounds = array<i64: 1, 1, 8>}]} {
    %c0 = arith.constant 0 : index
    %c0_0 = arith.constant 0 : index
    %c0_1 = arith.constant 0 : index
    %0 = vector.load %arg3[%c0, %c0_0, %c0_1] : memref<49x5x27xf32, #tpu.memory_space<vmem>>, vector<49x5x27xf32>
    %c0_2 = arith.constant 0 : index
    %c0_3 = arith.constant 0 : index
    %c0_4 = arith.constant 0 : index
    %c0_5 = arith.constant 0 : index
    %c0_6 = arith.constant 0 : index
    %1 = vector.load %arg2[%c0_2, %c0_3, %c0_4, %c0_5, %c0_6] : memref<1x1x49x27x8xf32, #tpu.memory_space<vmem>>, vector<1x1x49x27x8xf32>
    %2 = vector.shape_cast %1 : vector<1x1x49x27x8xf32> to vector<49x27x8xf32>
    %cst = arith.constant dense<0.000000e+00> : vector<49x5x8xf32>
    %3 = tpu.matmul %0, %2, %cst {dimension_numbers = #tpu.dot_dimension_numbers<[2], [1], [1], [2], [0, 0, 0, 1, 1, 2], [0], [0]>} : vector<49x5x27xf32>, vector<49x27x8xf32>, vector<49x5x8xf32> -> vector<49x5x8xf32>
    %c0_7 = arith.constant 0 : index
    %c0_8 = arith.constant 0 : index
    %c0_9 = arith.constant 0 : index
    %4 = vector.load %arg4[%c0_7, %c0_8, %c0_9] : memref<1x5x1xf32, #tpu.memory_space<vmem>>, vector<1x5x1xf32>
    %5 = vector.broadcast %4 : vector<1x5x1xf32> to vector<49x5x8xf32>
    %6 = arith.addf %3, %5 : vector<49x5x8xf32>
    %cst_10 = arith.constant 0.000000e+00 : f32
    %7 = vector.broadcast %cst_10 : f32 to vector<49x5x8xf32>
    %8 = arith.maximumf %6, %7 : vector<49x5x8xf32>
    %c0_i32 = arith.constant 0 : i32
    %9 = arith.cmpi eq, %arg1, %c0_i32 : i32
    %10 = arith.extui %9 : i1 to i32
    %c0_i32_11 = arith.constant 0 : i32
    %11 = arith.cmpi ne, %10, %c0_i32_11 : i32
    scf.if %11 {
      %c0_15 = arith.constant 0 : index
      %c0_16 = arith.constant 0 : index
      %c0_17 = arith.constant 0 : index
      %18 = vector.load %arg8[%c0_15, %c0_16, %c0_17] : memref<49x5x8xf32, #tpu.memory_space<vmem>>, vector<49x5x8xf32>
      tpu.vector_store %arg8[%c0_15, %c0_16, %c0_17], %8 {strides = array<i32>} : memref<49x5x8xf32, #tpu.memory_space<vmem>>, vector<49x5x8xf32>,
    } else {
    }
    %c0_i32_12 = arith.constant 0 : i32
    %12 = arith.cmpi ne, %arg1, %c0_i32_12 : i32
    %13 = arith.extui %12 : i1 to i32
    %c0_i32_13 = arith.constant 0 : i32
    %14 = arith.cmpi ne, %13, %c0_i32_13 : i32
    scf.if %14 {
      %c0_15 = arith.constant 0 : index
      %c0_16 = arith.constant 0 : index
      %c0_17 = arith.constant 0 : index
      %18 = vector.load %arg8[%c0_15, %c0_16, %c0_17] : memref<49x5x8xf32, #tpu.memory_space<vmem>>, vector<49x5x8xf32>
      %19 = arith.maximumf %18, %8 : vector<49x5x8xf32>
      %c0_18 = arith.constant 0 : index
      %c0_19 = arith.constant 0 : index
      %c0_20 = arith.constant 0 : index
      %20 = vector.load %arg8[%c0_18, %c0_19, %c0_20] : memref<49x5x8xf32, #tpu.memory_space<vmem>>, vector<49x5x8xf32>
      tpu.vector_store %arg8[%c0_18, %c0_19, %c0_20], %19 {strides = array<i32>} : memref<49x5x8xf32, #tpu.memory_space<vmem>>, vector<49x5x8xf32>,
    } else {
    }
    %c15_i32 = arith.constant 15 : i32
    %15 = arith.cmpi eq, %arg1, %c15_i32 : i32
    %16 = arith.extui %15 : i1 to i32
    %c0_i32_14 = arith.constant 0 : i32
    %17 = arith.cmpi ne, %16, %c0_i32_14 : i32
    scf.if %17 {
      %c0_15 = arith.constant 0 : index
      %c0_16 = arith.constant 0 : index
      %c0_17 = arith.constant 0 : index
      %18 = vector.load %arg8[%c0_15, %c0_16, %c0_17] : memref<49x5x8xf32, #tpu.memory_space<vmem>>, vector<49x5x8xf32>
      %c0_18 = arith.constant 0 : index
      %c0_19 = arith.constant 0 : index
      %c0_20 = arith.constant 0 : index
      %19 = vector.load %arg5[%c0_18, %c0_19, %c0_20] : memref<49x5x1xf32, #tpu.memory_space<vmem>>, vector<49x5x1xf32>
      %20 = vector.broadcast %19 : vector<49x5x1xf32> to vector<49x5x8xf32>
      %21 = arith.mulf %18, %20 : vector<49x5x8xf32>
      %cst_21 = arith.constant dense<0.000000e+00> : vector<5x8xf32>
      %22 = vector.multi_reduction <add>, %21, %cst_21 [0] : vector<49x5x8xf32> to vector<5x8xf32>
      %23 = vector.shape_cast %22 : vector<5x8xf32> to vector<1x5x8xf32>
      %cst_22 = arith.constant dense<0.000000e+00> : vector<1x8xf32>
      %24 = vector.multi_reduction <add>, %23, %cst_22 [1] : vector<1x5x8xf32> to vector<1x8xf32>
      %25 = vector.shape_cast %24 : vector<1x8xf32> to vector<1x1x8xf32>
      %c0_23 = arith.constant 0 : index
      %c0_24 = arith.constant 0 : index
      %c0_25 = arith.constant 0 : index
      %26 = vector.load %arg6[%c0_23, %c0_24, %c0_25] : memref<1x1x1xf32, #tpu.memory_space<vmem>>, vector<1x1x1xf32>
      %27 = vector.broadcast %26 : vector<1x1x1xf32> to vector<1x1x8xf32>
      %28 = arith.addf %25, %27 : vector<1x1x8xf32>
      %c0_26 = arith.constant 0 : index
      %c0_27 = arith.constant 0 : index
      %c0_28 = arith.constant 0 : index
      %29 = vector.load %arg7[%c0_26, %c0_27, %c0_28] : memref<1x1x8xf32, #tpu.memory_space<vmem>>, vector<1x1x8xf32>
      tpu.vector_store %arg7[%c0_26, %c0_27, %c0_28], %28 {strides = array<i32>} : memref<1x1x8xf32, #tpu.memory_space<vmem>>, vector<1x1x8xf32>,
    } else {
    }
    return
  }
  func.func @transform_0(%arg0: i32, %arg1: i32) -> (i32, i32, i32, i32, i32) {
    %c0_i32 = arith.constant 0 : i32
    %c0_i32_0 = arith.constant 0 : i32
    %c0_i32_1 = arith.constant 0 : i32
    %c0_i32_2 = arith.constant 0 : i32
    return %arg0, %arg1, %c0_i32, %c0_i32_0, %c0_i32_1 : i32, i32, i32, i32, i32
  }
  func.func @transform_1(%arg0: i32, %arg1: i32) -> (i32, i32, i32) {
    %c0_i32 = arith.constant 0 : i32
    %c0_i32_0 = arith.constant 0 : i32
    %c0_i32_1 = arith.constant 0 : i32
    %c0_i32_2 = arith.constant 0 : i32
    return %c0_i32, %c0_i32_0, %c0_i32_1 : i32, i32, i32
  }
  func.func @transform_2(%arg0: i32, %arg1: i32) -> (i32, i32, i32) {
    %c0_i32 = arith.constant 0 : i32
    %c0_i32_0 = arith.constant 0 : i32
    %c0_i32_1 = arith.constant 0 : i32
    %c0_i32_2 = arith.constant 0 : i32
    return %c0_i32, %c0_i32_0, %c0_i32_1 : i32, i32, i32
  }
  func.func @transform_3(%arg0: i32, %arg1: i32) -> (i32, i32, i32) {
    %c0_i32 = arith.constant 0 : i32
    %c0_i32_0 = arith.constant 0 : i32
    %c0_i32_1 = arith.constant 0 : i32
    %c0_i32_2 = arith.constant 0 : i32
    return %c0_i32, %c0_i32_0, %c0_i32_1 : i32, i32, i32
  }
  func.func @transform_4(%arg0: i32, %arg1: i32) -> (i32, i32, i32) {
    %c0_i32 = arith.constant 0 : i32
    %c0_i32_0 = arith.constant 0 : i32
    %c0_i32_1 = arith.constant 0 : i32
    %c0_i32_2 = arith.constant 0 : i32
    return %c0_i32, %c0_i32_0, %c0_i32_1 : i32, i32, i32
  }
  func.func @transform_5(%arg0: i32, %arg1: i32) -> (i32, i32, i32) {
    %c0_i32 = arith.constant 0 : i32
    %c0_i32_0 = arith.constant 0 : i32
    %c0_i32_1 = arith.constant 0 : i32
    return %arg0, %c0_i32, %c0_i32_0 : i32, i32, i32
  }
}

</mosaic_0001>

<llo_original>
// kernel: tpu_custom_call.1
$region0: #{tpu_custom_call.1}
  #allocation0 [shape = 'u32[]', space=smem, size = 0x4, offset = 0x4, fixed_abs, tag = 'smem constant byte address 0x4 - core index']
  #allocation1 [shape = 'u32[144,128]{1,0:T(1,128)}', space=vmem, size = 0x12000, scoped, tag = 'internal scratch']
  #allocation2 [shape = 'f32[49,5,8]{2,1,0:T(8,128)}', space=vmem, size = 0x31000, scoped, tag = 'scratch operand']
  #allocation3 [shape = 'f32[1,1,1]{2,1,0:T(1,128)S(1)}', space=vmem, size = 0x200, scoped, tag = 'scoped memory for tpu_custom_call.1']
  %s0 = inlined_call_operand.vmem [shape: f32[1,16,49,27,8], index: 0, kind: input, shape index: {}]
  %s1 = inlined_call_operand.vmem [shape: f32[49,5,27], index: 1, kind: input, shape index: {}]
  %s2 = inlined_call_operand.vmem [shape: f32[1,5,1], index: 2, kind: input, shape index: {}]
  %s3 = inlined_call_operand.vmem [shape: f32[49,5,1], index: 3, kind: input, shape index: {}]
  %s4 = inlined_call_operand.<no memory space> [shape: f32[1,1,1], index: 4, kind: input, shape index: {}]
  %s5 = inlined_call_operand.hbm [shape: f32[1,1,8], index: 5, kind: output, shape index: {}]
  %s6 = sld [smem:[#allocation0]]
  $region65: #{tpu_custom_call.1} parent=0
    _
  %s8 = ssub.s32 1, %s6
  %s9 = scalar_select 0, %s8, %s6
  %v10 = vstv %s4
  %11 = vst [vmem:[#allocation3] sm:$0x1] %v10
  $region1: #{tpu_custom_call.1} parent=0
    #allocation4 [shape = 'u8[512]{0}', space=vmem, size = 0x400, scoped, tag = 'output window, operand 0, single buffered']
    #allocation5 [shape = 's32[2]{0}', space=sflag, size = 0x8, scoped, tag = 'scoped memory for tpu_custom_call.1']
    %12 = vsyncpa [#allocation5], 0
    loop: start=0, step=1, limit=18
    $region2: #{tpu_custom_call.1} parent=1 // loop_pre_header
      _
    $region3: #{tpu_custom_call.1} parent=1 // loop_header
      %s14 = sphi 0, %s18
      %p15 = scmp.ge.s32.totalorder %s14, 18
      %s21 = sphi 0, %s33
      %s22 = sphi 0, %s29
      %s23 = sphi 0, %s21
      %s24 = sphi 0, %s22
      %s25 = sphi 0, %s23
      %s26 = sphi 0, %s24
      %s38 = sphi 0, %s40
      %s41 = sphi 0, %s38
      %s42 = sphi 0, %s41
      %s58 = sphi 0, %s42
      %s62 = sphi 0, %s62
      %s64 = sphi 0, %s62
      %s65 = sphi 0, %s64
      %s79 = sphi 0, %s65
      %s83 = sphi 0, %s83
      %s85 = sphi 0, %s83
      %s86 = sphi 0, %s85
      %s100 = sphi 0, %s86
      %s104 = sphi 0, %s104
      %s106 = sphi 0, %s104
      %s107 = sphi 0, %s106
      %s121 = sphi 0, %s107
      %s125 = sphi 0, %s125
      %s127 = sphi 0, %s125
      %s128 = sphi 0, %s127
      %s142 = sphi 0, %s128
      %s148 = sphi 0, %s150
      %s151 = sphi 0, %s148
      %s152 = sphi 0, %s151
      %s168 = sphi 0, %s152
    $region4: #{tpu_custom_call.1} parent=1 // loop_header_branch
      %17 = sbr.rel (%p15) target = $region8
    $region5: #{tpu_custom_call.1} parent=1 // loop_body
      %s19 = ssub.s32 %s14, 1
      %s20 = ssub.s32 %s14, 2
      %s27 = sadd.s32 1, %s22
      %p28 = scmp.ge.s32.totalorder %s27, 16
      %s29 = scalar_select %p28, 0, %s27
      %s30 = sadd.s32 1, %s21
      %s31 = scalar_select %p28, %s30, %s21
      %p32 = scmp.ge.s32.totalorder %s31, 1
      %s33 = scalar_select %p32, 0, %s31
      %s34 = ssub.s32 %s21, %s33
      %s35 = ssub.s32 %s22, %s29
      %s36 = sor.u32 %s34, %s35
      %p37 = scmp.eq.s32.totalorder %s36, 0
      %s39 = sadd.s32 %s38, 1
      %s40 = scalar_select %p37, %s38, %s39
      %p43 = pneg %p37
      %p44 = scmp.eq.s32.totalorder %s14, 15
      %p45 = por %p43, %p44
      %p46 = scmp.ne.s32.totalorder %s38, %s41
      %p47 = scmp.eq.s32.totalorder %s14, 0
      %p48 = por %p46, %p47
      %p49 = scmp.ne.s32.totalorder %s38, %s41
      %p50 = scmp.eq.s32.totalorder %s19, 15
      %p51 = por %p49, %p50
      %p52 = scmp.ne.s32.totalorder %s41, %s42
      %p53 = scmp.eq.s32.totalorder %s19, 0
      %p54 = por %p52, %p53
      %p55 = scmp.ne.s32.totalorder %s41, %s42
      %p56 = scmp.eq.s32.totalorder %s20, 15
      %p57 = por %p55, %p56
      %p59 = scmp.ne.s32.totalorder %s42, %s58
      %p60 = scmp.eq.s32.totalorder %s20, 0
      %p61 = por %p59, %p60
      %s63 = sadd.s32 %s62, 1
      %p66 = scmp.eq.s32.totalorder %s14, 15
      %p67 = scmp.ne.s32.totalorder %s62, %s64
      %p68 = scmp.eq.s32.totalorder %s14, 0
      %p69 = por %p67, %p68
      %p70 = scmp.ne.s32.totalorder %s62, %s64
      %p71 = scmp.eq.s32.totalorder %s19, 15
      %p72 = por %p70, %p71
      %p73 = scmp.ne.s32.totalorder %s64, %s65
      %p74 = scmp.eq.s32.totalorder %s19, 0
      %p75 = por %p73, %p74
      %p76 = scmp.ne.s32.totalorder %s64, %s65
      %p77 = scmp.eq.s32.totalorder %s20, 15
      %p78 = por %p76, %p77
      %p80 = scmp.ne.s32.totalorder %s65, %s79
      %p81 = scmp.eq.s32.totalorder %s20, 0
      %p82 = por %p80, %p81
      %s84 = sadd.s32 %s83, 1
      %p87 = scmp.eq.s32.totalorder %s14, 15
      %p88 = scmp.ne.s32.totalorder %s83, %s85
      %p89 = scmp.eq.s32.totalorder %s14, 0
      %p90 = por %p88, %p89
      %p91 = scmp.ne.s32.totalorder %s83, %s85
      %p92 = scmp.eq.s32.totalorder %s19, 15
      %p93 = por %p91, %p92
      %p94 = scmp.ne.s32.totalorder %s85, %s86
      %p95 = scmp.eq.s32.totalorder %s19, 0
      %p96 = por %p94, %p95
      %p97 = scmp.ne.s32.totalorder %s85, %s86
      %p98 = scmp.eq.s32.totalorder %s20, 15
      %p99 = por %p97, %p98
      %p101 = scmp.ne.s32.totalorder %s86, %s100
      %p102 = scmp.eq.s32.totalorder %s20, 0
      %p103 = por %p101, %p102
      %s105 = sadd.s32 %s104, 1
      %p108 = scmp.eq.s32.totalorder %s14, 15
      %p109 = scmp.ne.s32.totalorder %s104, %s106
      %p110 = scmp.eq.s32.totalorder %s14, 0
      %p111 = por %p109, %p110
      %p112 = scmp.ne.s32.totalorder %s104, %s106
      %p113 = scmp.eq.s32.totalorder %s19, 15
      %p114 = por %p112, %p113
      %p115 = scmp.ne.s32.totalorder %s106, %s107
      %p116 = scmp.eq.s32.totalorder %s19, 0
      %p117 = por %p115, %p116
      %p118 = scmp.ne.s32.totalorder %s106, %s107
      %p119 = scmp.eq.s32.totalorder %s20, 15
      %p120 = por %p118, %p119
      %p122 = scmp.ne.s32.totalorder %s107, %s121
      %p123 = scmp.eq.s32.totalorder %s20, 0
      %p124 = por %p122, %p123
      %s126 = sadd.s32 %s125, 1
      %p129 = scmp.eq.s32.totalorder %s14, 15
      %p130 = scmp.ne.s32.totalorder %s125, %s127
      %p131 = scmp.eq.s32.totalorder %s14, 0
      %p132 = por %p130, %p131
      %p133 = scmp.ne.s32.totalorder %s125, %s127
      %p134 = scmp.eq.s32.totalorder %s19, 15
      %p135 = por %p133, %p134
      %p136 = scmp.ne.s32.totalorder %s127, %s128
      %p137 = scmp.eq.s32.totalorder %s19, 0
      %p138 = por %p136, %p137
      %p139 = scmp.ne.s32.totalorder %s127, %s128
      %p140 = scmp.eq.s32.totalorder %s20, 15
      %p141 = por %p139, %p140
      %p143 = scmp.ne.s32.totalorder %s128, %s142
      %p144 = scmp.eq.s32.totalorder %s20, 0
      %p145 = por %p143, %p144
      %s146 = ssub.s32 %s21, %s33
      %p147 = scmp.eq.s32.totalorder %s146, 0
      %s149 = sadd.s32 %s148, 1
      %s150 = scalar_select %p147, %s148, %s149
      %p153 = pneg %p147
      %p154 = scmp.eq.s32.totalorder %s14, 15
      %p155 = por %p153, %p154
      %p156 = scmp.ne.s32.totalorder %s148, %s151
      %p157 = scmp.eq.s32.totalorder %s14, 0
      %p158 = por %p156, %p157
      %p159 = scmp.ne.s32.totalorder %s148, %s151
      %p160 = scmp.eq.s32.totalorder %s19, 15
      %p161 = por %p159, %p160
      %p162 = scmp.ne.s32.totalorder %s151, %s152
      %p163 = scmp.eq.s32.totalorder %s19, 0
      %p164 = por %p162, %p163
      %p165 = scmp.ne.s32.totalorder %s151, %s152
      %p166 = scmp.eq.s32.totalorder %s20, 15
      %p167 = por %p165, %p166
      %p169 = scmp.ne.s32.totalorder %s152, %s168
      %p170 = scmp.eq.s32.totalorder %s20, 0
      %p171 = por %p169, %p170
      %p172 = scmp.le.s32.totalorder 1, %s14
      %p173 = scmp.lt.s32.totalorder %s14, 17
      %p174 = pnand %p172, %p173
      %p175 = pneg %p174
      // Predicated region
      $region9: #{tpu_custom_call.1} parent=5 // pred_check
        _
      $region10: #{tpu_custom_call.1} parent=5 // pred_check_branch
        %177 = sbr.rel (%p174) target = $region12
      $region11: #{tpu_custom_call.1} parent=5 // pred_region
        %s178 = ssub.s32 %s14, 1
        // Predicated region
        $region13: #{tpu_custom_call.1} parent=11 // pred_check
          %p179 = pneg %p75
        $region14: #{tpu_custom_call.1} parent=11 // pred_check_branch
          %181 = sbr.rel (%p179) target = $region16
        $region15: #{tpu_custom_call.1} parent=11 // pred_region
          _
        $region16: #{tpu_custom_call.1} parent=11 // pred_fallthru
          _
        // Predicated region
        $region17: #{tpu_custom_call.1} parent=11 // pred_check
          %p182 = pneg %p96
        $region18: #{tpu_custom_call.1} parent=11 // pred_check_branch
          %184 = sbr.rel (%p182) target = $region20
        $region19: #{tpu_custom_call.1} parent=11 // pred_region
          _
        $region20: #{tpu_custom_call.1} parent=11 // pred_fallthru
          _
        // Predicated region
        $region21: #{tpu_custom_call.1} parent=11 // pred_check
          %p185 = pneg %p117
        $region22: #{tpu_custom_call.1} parent=11 // pred_check_branch
          %187 = sbr.rel (%p185) target = $region24
        $region23: #{tpu_custom_call.1} parent=11 // pred_region
          _
        $region24: #{tpu_custom_call.1} parent=11 // pred_fallthru
          _
        // Predicated region
        $region25: #{tpu_custom_call.1} parent=11 // pred_check
          %p188 = pneg %p138
        $region26: #{tpu_custom_call.1} parent=11 // pred_check_branch
          %190 = sbr.rel (%p188) target = $region28
        $region27: #{tpu_custom_call.1} parent=11 // pred_region
          _
        $region28: #{tpu_custom_call.1} parent=11 // pred_fallthru
          _
      $region12: #{tpu_custom_call.1} parent=5 // pred_fallthru
        _
      %p191 = scmp.lt.s32.totalorder %s14, 16
      // Predicated region
      $region29: #{tpu_custom_call.1} parent=5 // pred_check
        %p192 = pneg %p191
      $region30: #{tpu_custom_call.1} parent=5 // pred_check_branch
        %194 = sbr.rel (%p192) target = $region32
      $region31: #{tpu_custom_call.1} parent=5 // pred_region
        // Predicated region
        $region33: #{tpu_custom_call.1} parent=31 // pred_check
          %p195 = pneg %p48
        $region34: #{tpu_custom_call.1} parent=31 // pred_check_branch
          %197 = sbr.rel (%p195) target = $region36
        $region35: #{tpu_custom_call.1} parent=31 // pred_region
          %p198 = scmp.lt.s32.totalorder %s21, 0
          %s199 = scalar_select %p198, %s21, 0
          %p200 = scmp.lt.s32.totalorder %s22, 15
          %s201 = scalar_select %p200, %s22, 15
          %s202 = smul.addr %s201, 196
          %s203 = smul.addr %s199, 3136
          %s204 = sadd.s32 %s202, %s203
          %s205 = smul.addr %s204, 8
          %s206 = scalar_lea.vmem %s0, %s205
        $region36: #{tpu_custom_call.1} parent=31 // pred_fallthru
          _
      $region32: #{tpu_custom_call.1} parent=5 // pred_fallthru
        _
      %p207 = scmp.le.s32.totalorder 1, %s14
      %p208 = scmp.lt.s32.totalorder %s14, 17
      %p209 = pnand %p207, %p208
      %p210 = pneg %p209
      // Predicated region
      $region37: #{tpu_custom_call.1} parent=5 // pred_check
        _
      $region38: #{tpu_custom_call.1} parent=5 // pred_check_branch
        %212 = sbr.rel (%p209) target = $region40
      $region39: #{tpu_custom_call.1} parent=5 // pred_region
        %s213 = ssub.s32 %s14, 1
        %p214 = scmp.lt.s32.totalorder %s23, 0
        %s215 = scalar_select %p214, %s23, 0
        %p216 = scmp.lt.s32.totalorder %s24, 15
        %s217 = scalar_select %p216, %s24, 15
        %s218 = smul.addr %s217, 196
        %s219 = smul.addr %s215, 3136
        %s220 = sadd.s32 %s218, %s219
        %s221 = smul.addr %s220, 8
        %s222 = scalar_lea.vmem %s0, %s221
        %p223 = pneg %p54
        %p224 = pneg %p51
        %p225 = pneg %p75
        %p226 = pneg %p72
        %p227 = pneg %p96
        %p228 = pneg %p93
        %p229 = pneg %p117
        %p230 = pneg %p114
        %p231 = pneg %p138
        %p232 = pneg %p135
        %p233 = pneg %p164
        %p234 = pneg %p161
        %p235 = scmp.lt.s32.totalorder %s23, 0
        %s236 = scalar_select %p235, %s23, 0
        %p237 = scmp.lt.s32.totalorder %s24, 15
        %s238 = scalar_select %p237, %s24, 15
        %s239 = smul.addr %s238, 196
        %s240 = smul.addr %s236, 3136
        %s241 = sadd.s32 %s239, %s240
        %s242 = smul.addr %s241, 8
        %s243 = scalar_lea.vmem %s0, %s242
        %v244 = vld [vmem:[%s1] sm:$0x1f]
        %v245 = vld [vmem:[%s1 + $0x8] sm:$0x1f]
        %v246 = vld [vmem:[%s1 + $0x10] sm:$0x1f]
        %v247 = vld [vmem:[%s1 + $0x18] sm:$0x1f]
        %v248 = vld [vmem:[%s1 + $0x20] sm:$0x1f]
        %v249 = vld [vmem:[%s1 + $0x28] sm:$0x1f]
        %v250 = vld [vmem:[%s1 + $0x30] sm:$0x1f]
        %v251 = vld [vmem:[%s1 + $0x38] sm:$0x1f]
        %v252 = vld [vmem:[%s1 + $0x40] sm:$0x1f]
        %v253 = vld [vmem:[%s1 + $0x48] sm:$0x1f]
        %v254 = vld [vmem:[%s1 + $0x50] sm:$0x1f]
        %v255 = vld [vmem:[%s1 + $0x58] sm:$0x1f]
        %v256 = vld [vmem:[%s1 + $0x60] sm:$0x1f]
        %v257 = vld [vmem:[%s1 + $0x68] sm:$0x1f]
        %v258 = vld [vmem:[%s1 + $0x70] sm:$0x1f]
        %v259 = vld [vmem:[%s1 + $0x78] sm:$0x1f]
        %v260 = vld [vmem:[%s1 + $0x80] sm:$0x1f]
        %v261 = vld [vmem:[%s1 + $0x88] sm:$0x1f]
        %v262 = vld [vmem:[%s1 + $0x90] sm:$0x1f]
        %v263 = vld [vmem:[%s1 + $0x98] sm:$0x1f]
        %v264 = vld [vmem:[%s1 + $0xa0] sm:$0x1f]
        %v265 = vld [vmem:[%s1 + $0xa8] sm:$0x1f]
        %v266 = vld [vmem:[%s1 + $0xb0] sm:$0x1f]
        %v267 = vld [vmem:[%s1 + $0xb8] sm:$0x1f]
        %v268 = vld [vmem:[%s1 + $0xc0] sm:$0x1f]
        %v269 = vld [vmem:[%s1 + $0xc8] sm:$0x1f]
        %v270 = vld [vmem:[%s1 + $0xd0] sm:$0x1f]
        %v271 = vld [vmem:[%s1 + $0xd8] sm:$0x1f]
        %v272 = vld [vmem:[%s1 + $0xe0] sm:$0x1f]
        %v273 = vld [vmem:[%s1 + $0xe8] sm:$0x1f]
        %v274 = vld [vmem:[%s1 + $0xf0] sm:$0x1f]
        %v275 = vld [vmem:[%s1 + $0xf8] sm:$0x1f]
        %v276 = vld [vmem:[%s1 + $0x100] sm:$0x1f]
        %v277 = vld [vmem:[%s1 + $0x108] sm:$0x1f]
        %v278 = vld [vmem:[%s1 + $0x110] sm:$0x1f]
        %v279 = vld [vmem:[%s1 + $0x118] sm:$0x1f]
        %v280 = vld [vmem:[%s1 + $0x120] sm:$0x1f]
        %v281 = vld [vmem:[%s1 + $0x128] sm:$0x1f]
        %v282 = vld [vmem:[%s1 + $0x130] sm:$0x1f]
        %v283 = vld [vmem:[%s1 + $0x138] sm:$0x1f]
        %v284 = vld [vmem:[%s1 + $0x140] sm:$0x1f]
        %v285 = vld [vmem:[%s1 + $0x148] sm:$0x1f]
        %v286 = vld [vmem:[%s1 + $0x150] sm:$0x1f]
        %v287 = vld [vmem:[%s1 + $0x158] sm:$0x1f]
        %v288 = vld [vmem:[%s1 + $0x160] sm:$0x1f]
        %v289 = vld [vmem:[%s1 + $0x168] sm:$0x1f]
        %v290 = vld [vmem:[%s1 + $0x170] sm:$0x1f]
        %v291 = vld [vmem:[%s1 + $0x178] sm:$0x1f]
        %v292 = vld [vmem:[%s1 + $0x180] sm:$0x1f]
        %v293 = vld [vmem:[%s243] sm:$0xff]
        %v294 = vld [vmem:[%s243 + $0x8] sm:$0xff]
        %v295 = vld [vmem:[%s243 + $0x10] sm:$0xff]
        %v296 = vld [vmem:[%s243 + $0x18] sm:$0x7]
        %v297 = vld [vmem:[%s243 + $0x20] sm:$0xff]
        %v298 = vld [vmem:[%s243 + $0x28] sm:$0xff]
        %v299 = vld [vmem:[%s243 + $0x30] sm:$0xff]
        %v300 = vld [vmem:[%s243 + $0x38] sm:$0x7]
        %v301 = vld [vmem:[%s243 + $0x40] sm:$0xff]
        %v302 = vld [vmem:[%s243 + $0x48] sm:$0xff]
        %v303 = vld [vmem:[%s243 + $0x50] sm:$0xff]
        %v304 = vld [vmem:[%s243 + $0x58] sm:$0x7]
        %v305 = vld [vmem:[%s243 + $0x60] sm:$0xff]
        %v306 = vld [vmem:[%s243 + $0x68] sm:$0xff]
        %v307 = vld [vmem:[%s243 + $0x70] sm:$0xff]
        %v308 = vld [vmem:[%s243 + $0x78] sm:$0x7]
        %v309 = vld [vmem:[%s243 + $0x80] sm:$0xff]
        %v310 = vld [vmem:[%s243 + $0x88] sm:$0xff]
        %v311 = vld [vmem:[%s243 + $0x90] sm:$0xff]
        %v312 = vld [vmem:[%s243 + $0x98] sm:$0x7]
        %v313 = vld [vmem:[%s243 + $0xa0] sm:$0xff]
        %v314 = vld [vmem:[%s243 + $0xa8] sm:$0xff]
        %v315 = vld [vmem:[%s243 + $0xb0] sm:$0xff]
        %v316 = vld [vmem:[%s243 + $0xb8] sm:$0x7]
        %v317 = vld [vmem:[%s243 + $0xc0] sm:$0xff]
        %v318 = vld [vmem:[%s243 + $0xc8] sm:$0xff]
        %v319 = vld [vmem:[%s243 + $0xd0] sm:$0xff]
        %v320 = vld [vmem:[%s243 + $0xd8] sm:$0x7]
        %v321 = vld [vmem:[%s243 + $0xe0] sm:$0xff]
        %v322 = vld [vmem:[%s243 + $0xe8] sm:$0xff]
        %v323 = vld [vmem:[%s243 + $0xf0] sm:$0xff]
        %v324 = vld [vmem:[%s243 + $0xf8] sm:$0x7]
        %v325 = vld [vmem:[%s243 + $0x100] sm:$0xff]
        %v326 = vld [vmem:[%s243 + $0x108] sm:$0xff]
        %v327 = vld [vmem:[%s243 + $0x110] sm:$0xff]
        %v328 = vld [vmem:[%s243 + $0x118] sm:$0x7]
        %v329 = vld [vmem:[%s243 + $0x120] sm:$0xff]
        %v330 = vld [vmem:[%s243 + $0x128] sm:$0xff]
        %v331 = vld [vmem:[%s243 + $0x130] sm:$0xff]
        %v332 = vld [vmem:[%s243 + $0x138] sm:$0x7]
        %v333 = vld [vmem:[%s243 + $0x140] sm:$0xff]
        %v334 = vld [vmem:[%s243 + $0x148] sm:$0xff]
        %v335 = vld [vmem:[%s243 + $0x150] sm:$0xff]
        %v336 = vld [vmem:[%s243 + $0x158] sm:$0x7]
        %v337 = vld [vmem:[%s243 + $0x160] sm:$0xff]
        %v338 = vld [vmem:[%s243 + $0x168] sm:$0xff]
        %v339 = vld [vmem:[%s243 + $0x170] sm:$0xff]
        %v340 = vld [vmem:[%s243 + $0x178] sm:$0x7]
        %v341 = vld [vmem:[%s243 + $0x180] sm:$0xff]
        %v342 = vld [vmem:[%s243 + $0x188] sm:$0xff]
        %v343 = vld [vmem:[%s243 + $0x190] sm:$0xff]
        %v344 = vld [vmem:[%s243 + $0x198] sm:$0x7]
        %v345 = vld [vmem:[%s243 + $0x1a0] sm:$0xff]
        %v346 = vld [vmem:[%s243 + $0x1a8] sm:$0xff]
        %v347 = vld [vmem:[%s243 + $0x1b0] sm:$0xff]
        %v348 = vld [vmem:[%s243 + $0x1b8] sm:$0x7]
        %v349 = vld [vmem:[%s243 + $0x1c0] sm:$0xff]
        %v350 = vld [vmem:[%s243 + $0x1c8] sm:$0xff]
        %v351 = vld [vmem:[%s243 + $0x1d0] sm:$0xff]
        %v352 = vld [vmem:[%s243 + $0x1d8] sm:$0x7]
        %v353 = vld [vmem:[%s243 + $0x1e0] sm:$0xff]
        %v354 = vld [vmem:[%s243 + $0x1e8] sm:$0xff]
        %v355 = vld [vmem:[%s243 + $0x1f0] sm:$0xff]
        %v356 = vld [vmem:[%s243 + $0x1f8] sm:$0x7]
        %v357 = vld [vmem:[%s243 + $0x200] sm:$0xff]
        %v358 = vld [vmem:[%s243 + $0x208] sm:$0xff]
        %v359 = vld [vmem:[%s243 + $0x210] sm:$0xff]
        %v360 = vld [vmem:[%s243 + $0x218] sm:$0x7]
        %v361 = vld [vmem:[%s243 + $0x220] sm:$0xff]
        %v362 = vld [vmem:[%s243 + $0x228] sm:$0xff]
        %v363 = vld [vmem:[%s243 + $0x230] sm:$0xff]
        %v364 = vld [vmem:[%s243 + $0x238] sm:$0x7]
        %v365 = vld [vmem:[%s243 + $0x240] sm:$0xff]
        %v366 = vld [vmem:[%s243 + $0x248] sm:$0xff]
        %v367 = vld [vmem:[%s243 + $0x250] sm:$0xff]
        %v368 = vld [vmem:[%s243 + $0x258] sm:$0x7]
        %v369 = vld [vmem:[%s243 + $0x260] sm:$0xff]
        %v370 = vld [vmem:[%s243 + $0x268] sm:$0xff]
        %v371 = vld [vmem:[%s243 + $0x270] sm:$0xff]
        %v372 = vld [vmem:[%s243 + $0x278] sm:$0x7]
        %v373 = vld [vmem:[%s243 + $0x280] sm:$0xff]
        %v374 = vld [vmem:[%s243 + $0x288] sm:$0xff]
        %v375 = vld [vmem:[%s243 + $0x290] sm:$0xff]
        %v376 = vld [vmem:[%s243 + $0x298] sm:$0x7]
        %v377 = vld [vmem:[%s243 + $0x2a0] sm:$0xff]
        %v378 = vld [vmem:[%s243 + $0x2a8] sm:$0xff]
        %v379 = vld [vmem:[%s243 + $0x2b0] sm:$0xff]
        %v380 = vld [vmem:[%s243 + $0x2b8] sm:$0x7]
        %v381 = vld [vmem:[%s243 + $0x2c0] sm:$0xff]
        %v382 = vld [vmem:[%s243 + $0x2c8] sm:$0xff]
        %v383 = vld [vmem:[%s243 + $0x2d0] sm:$0xff]
        %v384 = vld [vmem:[%s243 + $0x2d8] sm:$0x7]
        %v385 = vld [vmem:[%s243 + $0x2e0] sm:$0xff]
        %v386 = vld [vmem:[%s243 + $0x2e8] sm:$0xff]
        %v387 = vld [vmem:[%s243 + $0x2f0] sm:$0xff]
        %v388 = vld [vmem:[%s243 + $0x2f8] sm:$0x7]
        %v389 = vld [vmem:[%s243 + $0x300] sm:$0xff]
        %v390 = vld [vmem:[%s243 + $0x308] sm:$0xff]
        %v391 = vld [vmem:[%s243 + $0x310] sm:$0xff]
        %v392 = vld [vmem:[%s243 + $0x318] sm:$0x7]
        %v393 = vld [vmem:[%s243 + $0x320] sm:$0xff]
        %v394 = vld [vmem:[%s243 + $0x328] sm:$0xff]
        %v395 = vld [vmem:[%s243 + $0x330] sm:$0xff]
        %v396 = vld [vmem:[%s243 + $0x338] sm:$0x7]
        %v397 = vld [vmem:[%s243 + $0x340] sm:$0xff]
        %v398 = vld [vmem:[%s243 + $0x348] sm:$0xff]
        %v399 = vld [vmem:[%s243 + $0x350] sm:$0xff]
        %v400 = vld [vmem:[%s243 + $0x358] sm:$0x7]
        %v401 = vld [vmem:[%s243 + $0x360] sm:$0xff]
        %v402 = vld [vmem:[%s243 + $0x368] sm:$0xff]
        %v403 = vld [vmem:[%s243 + $0x370] sm:$0xff]
        %v404 = vld [vmem:[%s243 + $0x378] sm:$0x7]
        %v405 = vld [vmem:[%s243 + $0x380] sm:$0xff]
        %v406 = vld [vmem:[%s243 + $0x388] sm:$0xff]
        %v407 = vld [vmem:[%s243 + $0x390] sm:$0xff]
        %v408 = vld [vmem:[%s243 + $0x398] sm:$0x7]
        %v409 = vld [vmem:[%s243 + $0x3a0] sm:$0xff]
        %v410 = vld [vmem:[%s243 + $0x3a8] sm:$0xff]
        %v411 = vld [vmem:[%s243 + $0x3b0] sm:$0xff]
        %v412 = vld [vmem:[%s243 + $0x3b8] sm:$0x7]
        %v413 = vld [vmem:[%s243 + $0x3c0] sm:$0xff]
        %v414 = vld [vmem:[%s243 + $0x3c8] sm:$0xff]
        %v415 = vld [vmem:[%s243 + $0x3d0] sm:$0xff]
        %v416 = vld [vmem:[%s243 + $0x3d8] sm:$0x7]
        %v417 = vld [vmem:[%s243 + $0x3e0] sm:$0xff]
        %v418 = vld [vmem:[%s243 + $0x3e8] sm:$0xff]
        %v419 = vld [vmem:[%s243 + $0x3f0] sm:$0xff]
        %v420 = vld [vmem:[%s243 + $0x3f8] sm:$0x7]
        %v421 = vld [vmem:[%s243 + $0x400] sm:$0xff]
        %v422 = vld [vmem:[%s243 + $0x408] sm:$0xff]
        %v423 = vld [vmem:[%s243 + $0x410] sm:$0xff]
        %v424 = vld [vmem:[%s243 + $0x418] sm:$0x7]
        %v425 = vld [vmem:[%s243 + $0x420] sm:$0xff]
        %v426 = vld [vmem:[%s243 + $0x428] sm:$0xff]
        %v427 = vld [vmem:[%s243 + $0x430] sm:$0xff]
        %v428 = vld [vmem:[%s243 + $0x438] sm:$0x7]
        %v429 = vld [vmem:[%s243 + $0x440] sm:$0xff]
        %v430 = vld [vmem:[%s243 + $0x448] sm:$0xff]
        %v431 = vld [vmem:[%s243 + $0x450] sm:$0xff]
        %v432 = vld [vmem:[%s243 + $0x458] sm:$0x7]
        %v433 = vld [vmem:[%s243 + $0x460] sm:$0xff]
        %v434 = vld [vmem:[%s243 + $0x468] sm:$0xff]
        %v435 = vld [vmem:[%s243 + $0x470] sm:$0xff]
        %v436 = vld [vmem:[%s243 + $0x478] sm:$0x7]
        %v437 = vld [vmem:[%s243 + $0x480] sm:$0xff]
        %v438 = vld [vmem:[%s243 + $0x488] sm:$0xff]
        %v439 = vld [vmem:[%s243 + $0x490] sm:$0xff]
        %v440 = vld [vmem:[%s243 + $0x498] sm:$0x7]
        %v441 = vld [vmem:[%s243 + $0x4a0] sm:$0xff]
        %v442 = vld [vmem:[%s243 + $0x4a8] sm:$0xff]
        %v443 = vld [vmem:[%s243 + $0x4b0] sm:$0xff]
        %v444 = vld [vmem:[%s243 + $0x4b8] sm:$0x7]
        %v445 = vld [vmem:[%s243 + $0x4c0] sm:$0xff]
        %v446 = vld [vmem:[%s243 + $0x4c8] sm:$0xff]
        %v447 = vld [vmem:[%s243 + $0x4d0] sm:$0xff]
        %v448 = vld [vmem:[%s243 + $0x4d8] sm:$0x7]
        %v449 = vld [vmem:[%s243 + $0x4e0] sm:$0xff]
        %v450 = vld [vmem:[%s243 + $0x4e8] sm:$0xff]
        %v451 = vld [vmem:[%s243 + $0x4f0] sm:$0xff]
        %v452 = vld [vmem:[%s243 + $0x4f8] sm:$0x7]
        %v453 = vld [vmem:[%s243 + $0x500] sm:$0xff]
        %v454 = vld [vmem:[%s243 + $0x508] sm:$0xff]
        %v455 = vld [vmem:[%s243 + $0x510] sm:$0xff]
        %v456 = vld [vmem:[%s243 + $0x518] sm:$0x7]
        %v457 = vld [vmem:[%s243 + $0x520] sm:$0xff]
        %v458 = vld [vmem:[%s243 + $0x528] sm:$0xff]
        %v459 = vld [vmem:[%s243 + $0x530] sm:$0xff]
        %v460 = vld [vmem:[%s243 + $0x538] sm:$0x7]
        %v461 = vld [vmem:[%s243 + $0x540] sm:$0xff]
        %v462 = vld [vmem:[%s243 + $0x548] sm:$0xff]
        %v463 = vld [vmem:[%s243 + $0x550] sm:$0xff]
        %v464 = vld [vmem:[%s243 + $0x558] sm:$0x7]
        %v465 = vld [vmem:[%s243 + $0x560] sm:$0xff]
        %v466 = vld [vmem:[%s243 + $0x568] sm:$0xff]
        %v467 = vld [vmem:[%s243 + $0x570] sm:$0xff]
        %v468 = vld [vmem:[%s243 + $0x578] sm:$0x7]
        %v469 = vld [vmem:[%s243 + $0x580] sm:$0xff]
        %v470 = vld [vmem:[%s243 + $0x588] sm:$0xff]
        %v471 = vld [vmem:[%s243 + $0x590] sm:$0xff]
        %v472 = vld [vmem:[%s243 + $0x598] sm:$0x7]
        %v473 = vld [vmem:[%s243 + $0x5a0] sm:$0xff]
        %v474 = vld [vmem:[%s243 + $0x5a8] sm:$0xff]
        %v475 = vld [vmem:[%s243 + $0x5b0] sm:$0xff]
        %v476 = vld [vmem:[%s243 + $0x5b8] sm:$0x7]
        %v477 = vld [vmem:[%s243 + $0x5c0] sm:$0xff]
        %v478 = vld [vmem:[%s243 + $0x5c8] sm:$0xff]
        %v479 = vld [vmem:[%s243 + $0x5d0] sm:$0xff]
        %v480 = vld [vmem:[%s243 + $0x5d8] sm:$0x7]
        %v481 = vld [vmem:[%s243 + $0x5e0] sm:$0xff]
        %v482 = vld [vmem:[%s243 + $0x5e8] sm:$0xff]
        %v483 = vld [vmem:[%s243 + $0x5f0] sm:$0xff]
        %v484 = vld [vmem:[%s243 + $0x5f8] sm:$0x7]
        %v485 = vld [vmem:[%s243 + $0x600] sm:$0xff]
        %v486 = vld [vmem:[%s243 + $0x608] sm:$0xff]
        %v487 = vld [vmem:[%s243 + $0x610] sm:$0xff]
        %v488 = vld [vmem:[%s243 + $0x618] sm:$0x7]
        %v489 = vld [vmem:[%s2] sm:$0x1f]
        %491 = vset.pattern.permute.xlu0 0
        %492 = vperm.xlu0 %491, %v489
        %v493 = vpop.permute.xlu0 %492
        %vm495 = vcmask 220160
        %v497 = vsel %vm495, %v244, 0
        %vm499 = vcmask 1042432
        %v501 = vsel %vm499, %v296, 0
        %503 = vmatprep.subr.mxu0 0.0
        %504 = vmatpush1.msra.mxu0 %v293
        %505 = vmatprep.subr.mxu0 0.0
        %506 = vmatpush1.msra.mxu0 %v294
        %507 = vmatprep.subr.mxu0 0.0
        %508 = vmatpush1.msra.mxu0 %v295
        %509 = vmatprep.subr.mxu0 0.0
        %510 = vmatpush1.msra.mxu0 %v501
        %511 = vmatprep.subr.mxu0 0.0
        %512 = vmatpush1.msra.mxu0 0.0
        %513 = vmatprep.subr.mxu0 0.0
        %514 = vmatpush1.msra.mxu0 0.0
        %515 = vmatprep.subr.mxu0 0.0
        %516 = vmatpush1.msra.mxu0 0.0
        %517 = vmatprep.subr.mxu0 0.0
        %518 = vmatpush1.msra.mxu0 0.0
        %519 = vmatprep.subr.mxu0 0.0
        %520 = vmatpush1.msra.mxu0 0.0
        %521 = vmatprep.subr.mxu0 0.0
        %522 = vmatpush1.msra.mxu0 0.0
        %523 = vmatprep.subr.mxu0 0.0
        %524 = vmatpush1.msra.mxu0 0.0
        %525 = vmatprep.subr.mxu0 0.0
        %526 = vmatpush1.msra.mxu0 0.0
        %527 = vmatprep.subr.mxu0 0.0
        %528 = vmatpush1.msra.mxu0 0.0
        %529 = vmatprep.subr.mxu0 0.0
        %530 = vmatpush1.msra.mxu0 0.0
        %531 = vmatprep.subr.mxu0 0.0
        %532 = vmatpush1.msra.mxu0 0.0
        %533 = vmatprep.subr.mxu0 0.0
        %534 = vmatpush1.msra.mxu0 0.0
        %535 = vmatprep.subr.mxu0 0.0
        %536 = vmatpush1.msra.mxu0 0.0
        %537 = vmatprep.subr.mxu0 0.0
        %538 = vmatpush1.msra.mxu0 0.0
        %539 = vmatprep.subr.mxu0 0.0
        %540 = vmatpush1.msra.mxu0 0.0
        %541 = vmatprep.subr.mxu0 0.0
        %542 = vmatpush1.msra.mxu0 0.0
        %543 = vmatprep.subr.mxu0 0.0
        %544 = vmatpush1.msra.mxu0 0.0
        %545 = vmatprep.subr.mxu0 0.0
        %546 = vmatpush1.msra.mxu0 0.0
        %547 = vmatprep.subr.mxu0 0.0
        %548 = vmatpush1.msra.mxu0 0.0
        %549 = vmatprep.subr.mxu0 0.0
        %550 = vmatpush1.msra.mxu0 0.0
        %551 = vmatprep.subr.mxu0 0.0
        %552 = vmatpush1.msra.mxu0 0.0
        %553 = vmatprep.subr.mxu0 0.0
        %554 = vmatpush1.msra.mxu0 0.0
        %555 = vmatprep.subr.mxu0 0.0
        %556 = vmatpush1.msra.mxu0 0.0
        %557 = vmatprep.subr.mxu0 0.0
        %558 = vmatpush1.msra.mxu0 0.0
        %559 = vmatprep.subr.mxu0 0.0
        %560 = vmatpush1.msra.mxu0 0.0
        %561 = vmatprep.subr.mxu0 0.0
        %562 = vmatpush1.msra.mxu0 0.0
        %563 = vmatprep.subr.mxu0 0.0
        %564 = vmatpush1.msra.mxu0 0.0
        %565 = vmatprep.subr.mxu0 0.0
        %566 = vmatpush1.msra.mxu0 0.0
        %567 = vmatprep.mubr.f32.mxu0 0.0
        %568 = vmatmul.mubr.f32.gmra.mrb[0].mxu0 %v497
        %v569 = vpop.f32.mrb[0].mxu0
        %v570 = vadd.f32 %v493, %v569
        %v571 = vpop.f32.mrb[0].mxu0
        %572 = vdwg.mxu0
        %v574 = vsel %vm495, %v245, 0
        %v577 = vsel %vm499, %v300, 0
        %579 = vmatprep.subr.mxu0 0.0
        %580 = vmatpush1.msra.mxu0 %v297
        %581 = vmatprep.subr.mxu0 0.0
        %582 = vmatpush1.msra.mxu0 %v298
        %583 = vmatprep.subr.mxu0 0.0
        %584 = vmatpush1.msra.mxu0 %v299
        %585 = vmatprep.subr.mxu0 0.0
        %586 = vmatpush1.msra.mxu0 %v577
        %587 = vmatprep.subr.mxu0 0.0
        %588 = vmatpush1.msra.mxu0 0.0
        %589 = vmatprep.subr.mxu0 0.0
        %590 = vmatpush1.msra.mxu0 0.0
        %591 = vmatprep.subr.mxu0 0.0
        %592 = vmatpush1.msra.mxu0 0.0
        %593 = vmatprep.subr.mxu0 0.0
        %594 = vmatpush1.msra.mxu0 0.0
        %595 = vmatprep.subr.mxu0 0.0
        %596 = vmatpush1.msra.mxu0 0.0
        %597 = vmatprep.subr.mxu0 0.0
        %598 = vmatpush1.msra.mxu0 0.0
        %599 = vmatprep.subr.mxu0 0.0
        %600 = vmatpush1.msra.mxu0 0.0
        %601 = vmatprep.subr.mxu0 0.0
        %602 = vmatpush1.msra.mxu0 0.0
        %603 = vmatprep.subr.mxu0 0.0
        %604 = vmatpush1.msra.mxu0 0.0
        %605 = vmatprep.subr.mxu0 0.0
        %606 = vmatpush1.msra.mxu0 0.0
        %607 = vmatprep.subr.mxu0 0.0
        %608 = vmatpush1.msra.mxu0 0.0
        %609 = vmatprep.subr.mxu0 0.0
        %610 = vmatpush1.msra.mxu0 0.0
        %611 = vmatprep.subr.mxu0 0.0
        %612 = vmatpush1.msra.mxu0 0.0
        %613 = vmatprep.subr.mxu0 0.0
        %614 = vmatpush1.msra.mxu0 0.0
        %615 = vmatprep.subr.mxu0 0.0
        %616 = vmatpush1.msra.mxu0 0.0
        %617 = vmatprep.subr.mxu0 0.0
        %618 = vmatpush1.msra.mxu0 0.0
        %619 = vmatprep.subr.mxu0 0.0
        %620 = vmatpush1.msra.mxu0 0.0
        %621 = vmatprep.subr.mxu0 0.0
        %622 = vmatpush1.msra.mxu0 0.0
        %623 = vmatprep.subr.mxu0 0.0
        %624 = vmatpush1.msra.mxu0 0.0
        %625 = vmatprep.subr.mxu0 0.0
        %626 = vmatpush1.msra.mxu0 0.0
        %627 = vmatprep.subr.mxu0 0.0
        %628 = vmatpush1.msra.mxu0 0.0
        %629 = vmatprep.subr.mxu0 0.0
        %630 = vmatpush1.msra.mxu0 0.0
        %631 = vmatprep.subr.mxu0 0.0
        %632 = vmatpush1.msra.mxu0 0.0
        %633 = vmatprep.subr.mxu0 0.0
        %634 = vmatpush1.msra.mxu0 0.0
        %635 = vmatprep.subr.mxu0 0.0
        %636 = vmatpush1.msra.mxu0 0.0
        %637 = vmatprep.subr.mxu0 0.0
        %638 = vmatpush1.msra.mxu0 0.0
        %639 = vmatprep.subr.mxu0 0.0
        %640 = vmatpush1.msra.mxu0 0.0
        %641 = vmatprep.subr.mxu0 0.0
        %642 = vmatpush1.msra.mxu0 0.0
        %643 = vmatprep.mubr.f32.mxu0 0.0
        %644 = vmatmul.mubr.f32.gmra.mrb[0].mxu0 %v574
        %v645 = vpop.f32.mrb[0].mxu0
        %v646 = vadd.f32 %v493, %v645
        %v647 = vpop.f32.mrb[0].mxu0
        %648 = vdwg.mxu0
        %v650 = vsel %vm495, %v246, 0
        %v653 = vsel %vm499, %v304, 0
        %655 = vmatprep.subr.mxu0 0.0
        %656 = vmatpush1.msra.mxu0 %v301
        %657 = vmatprep.subr.mxu0 0.0
        %658 = vmatpush1.msra.mxu0 %v302
        %659 = vmatprep.subr.mxu0 0.0
        %660 = vmatpush1.msra.mxu0 %v303
        %661 = vmatprep.subr.mxu0 0.0
        %662 = vmatpush1.msra.mxu0 %v653
        %663 = vmatprep.subr.mxu0 0.0
        %664 = vmatpush1.msra.mxu0 0.0
        %665 = vmatprep.subr.mxu0 0.0
        %666 = vmatpush1.msra.mxu0 0.0
        %667 = vmatprep.subr.mxu0 0.0
        %668 = vmatpush1.msra.mxu0 0.0
        %669 = vmatprep.subr.mxu0 0.0
        %670 = vmatpush1.msra.mxu0 0.0
        %671 = vmatprep.subr.mxu0 0.0
        %672 = vmatpush1.msra.mxu0 0.0
        %673 = vmatprep.subr.mxu0 0.0
        %674 = vmatpush1.msra.mxu0 0.0
        %675 = vmatprep.subr.mxu0 0.0
        %676 = vmatpush1.msra.mxu0 0.0
        %677 = vmatprep.subr.mxu0 0.0
        %678 = vmatpush1.msra.mxu0 0.0
        %679 = vmatprep.subr.mxu0 0.0
        %680 = vmatpush1.msra.mxu0 0.0
        %681 = vmatprep.subr.mxu0 0.0
        %682 = vmatpush1.msra.mxu0 0.0
        %683 = vmatprep.subr.mxu0 0.0
        %684 = vmatpush1.msra.mxu0 0.0
        %685 = vmatprep.subr.mxu0 0.0
        %686 = vmatpush1.msra.mxu0 0.0
        %687 = vmatprep.subr.mxu0 0.0
        %688 = vmatpush1.msra.mxu0 0.0
        %689 = vmatprep.subr.mxu0 0.0
        %690 = vmatpush1.msra.mxu0 0.0
        %691 = vmatprep.subr.mxu0 0.0
        %692 = vmatpush1.msra.mxu0 0.0
        %693 = vmatprep.subr.mxu0 0.0
        %694 = vmatpush1.msra.mxu0 0.0
        %695 = vmatprep.subr.mxu0 0.0
        %696 = vmatpush1.msra.mxu0 0.0
        %697 = vmatprep.subr.mxu0 0.0
        %698 = vmatpush1.msra.mxu0 0.0
        %699 = vmatprep.subr.mxu0 0.0
        %700 = vmatpush1.msra.mxu0 0.0
        %701 = vmatprep.subr.mxu0 0.0
        %702 = vmatpush1.msra.mxu0 0.0
        %703 = vmatprep.subr.mxu0 0.0
        %704 = vmatpush1.msra.mxu0 0.0
        %705 = vmatprep.subr.mxu0 0.0
        %706 = vmatpush1.msra.mxu0 0.0
        %707 = vmatprep.subr.mxu0 0.0
        %708 = vmatpush1.msra.mxu0 0.0
        %709 = vmatprep.subr.mxu0 0.0
        %710 = vmatpush1.msra.mxu0 0.0
        %711 = vmatprep.subr.mxu0 0.0
        %712 = vmatpush1.msra.mxu0 0.0
        %713 = vmatprep.subr.mxu0 0.0
        %714 = vmatpush1.msra.mxu0 0.0
        %715 = vmatprep.subr.mxu0 0.0
        %716 = vmatpush1.msra.mxu0 0.0
        %717 = vmatprep.subr.mxu0 0.0
        %718 = vmatpush1.msra.mxu0 0.0
        %719 = vmatprep.mubr.f32.mxu0 0.0
        %720 = vmatmul.mubr.f32.gmra.mrb[0].mxu0 %v650
        %v721 = vpop.f32.mrb[0].mxu0
        %v722 = vadd.f32 %v493, %v721
        %v723 = vpop.f32.mrb[0].mxu0
        %724 = vdwg.mxu0
        %v726 = vsel %vm495, %v247, 0
        %v729 = vsel %vm499, %v308, 0
        %731 = vmatprep.subr.mxu0 0.0
        %732 = vmatpush1.msra.mxu0 %v305
        %733 = vmatprep.subr.mxu0 0.0
        %734 = vmatpush1.msra.mxu0 %v306
        %735 = vmatprep.subr.mxu0 0.0
        %736 = vmatpush1.msra.mxu0 %v307
        %737 = vmatprep.subr.mxu0 0.0
        %738 = vmatpush1.msra.mxu0 %v729
        %739 = vmatprep.subr.mxu0 0.0
        %740 = vmatpush1.msra.mxu0 0.0
        %741 = vmatprep.subr.mxu0 0.0
        %742 = vmatpush1.msra.mxu0 0.0
        %743 = vmatprep.subr.mxu0 0.0
        %744 = vmatpush1.msra.mxu0 0.0
        %745 = vmatprep.subr.mxu0 0.0
        %746 = vmatpush1.msra.mxu0 0.0
        %747 = vmatprep.subr.mxu0 0.0
        %748 = vmatpush1.msra.mxu0 0.0
        %749 = vmatprep.subr.mxu0 0.0
        %750 = vmatpush1.msra.mxu0 0.0
        %751 = vmatprep.subr.mxu0 0.0
        %752 = vmatpush1.msra.mxu0 0.0
        %753 = vmatprep.subr.mxu0 0.0
        %754 = vmatpush1.msra.mxu0 0.0
        %755 = vmatprep.subr.mxu0 0.0
        %756 = vmatpush1.msra.mxu0 0.0
        %757 = vmatprep.subr.mxu0 0.0
        %758 = vmatpush1.msra.mxu0 0.0
        %759 = vmatprep.subr.mxu0 0.0
        %760 = vmatpush1.msra.mxu0 0.0
        %761 = vmatprep.subr.mxu0 0.0
        %762 = vmatpush1.msra.mxu0 0.0
        %763 = vmatprep.subr.mxu0 0.0
        %764 = vmatpush1.msra.mxu0 0.0
        %765 = vmatprep.subr.mxu0 0.0
        %766 = vmatpush1.msra.mxu0 0.0
        %767 = vmatprep.subr.mxu0 0.0
        %768 = vmatpush1.msra.mxu0 0.0
        %769 = vmatprep.subr.mxu0 0.0
        %770 = vmatpush1.msra.mxu0 0.0
        %771 = vmatprep.subr.mxu0 0.0
        %772 = vmatpush1.msra.mxu0 0.0
        %773 = vmatprep.subr.mxu0 0.0
        %774 = vmatpush1.msra.mxu0 0.0
        %775 = vmatprep.subr.mxu0 0.0
        %776 = vmatpush1.msra.mxu0 0.0
        %777 = vmatprep.subr.mxu0 0.0
        %778 = vmatpush1.msra.mxu0 0.0
        %779 = vmatprep.subr.mxu0 0.0
        %780 = vmatpush1.msra.mxu0 0.0
        %781 = vmatprep.subr.mxu0 0.0
        %782 = vmatpush1.msra.mxu0 0.0
        %783 = vmatprep.subr.mxu0 0.0
        %784 = vmatpush1.msra.mxu0 0.0
        %785 = vmatprep.subr.mxu0 0.0
        %786 = vmatpush1.msra.mxu0 0.0
        %787 = vmatprep.subr.mxu0 0.0
        %788 = vmatpush1.msra.mxu0 0.0
        %789 = vmatprep.subr.mxu0 0.0
        %790 = vmatpush1.msra.mxu0 0.0
        %791 = vmatprep.subr.mxu0 0.0
        %792 = vmatpush1.msra.mxu0 0.0
        %793 = vmatprep.subr.mxu0 0.0
        %794 = vmatpush1.msra.mxu0 0.0
        %795 = vmatprep.mubr.f32.mxu0 0.0
        %796 = vmatmul.mubr.f32.gmra.mrb[0].mxu0 %v726
        %v797 = vpop.f32.mrb[0].mxu0
        %v798 = vadd.f32 %v493, %v797
        %v799 = vpop.f32.mrb[0].mxu0
        %800 = vdwg.mxu0
        %v802 = vsel %vm495, %v248, 0
        %v805 = vsel %vm499, %v312, 0
        %807 = vmatprep.subr.mxu0 0.0
        %808 = vmatpush1.msra.mxu0 %v309
        %809 = vmatprep.subr.mxu0 0.0
        %810 = vmatpush1.msra.mxu0 %v310
        %811 = vmatprep.subr.mxu0 0.0
        %812 = vmatpush1.msra.mxu0 %v311
        %813 = vmatprep.subr.mxu0 0.0
        %814 = vmatpush1.msra.mxu0 %v805
        %815 = vmatprep.subr.mxu0 0.0
        %816 = vmatpush1.msra.mxu0 0.0
        %817 = vmatprep.subr.mxu0 0.0
        %818 = vmatpush1.msra.mxu0 0.0
        %819 = vmatprep.subr.mxu0 0.0
        %820 = vmatpush1.msra.mxu0 0.0
        %821 = vmatprep.subr.mxu0 0.0
        %822 = vmatpush1.msra.mxu0 0.0
        %823 = vmatprep.subr.mxu0 0.0
        %824 = vmatpush1.msra.mxu0 0.0
        %825 = vmatprep.subr.mxu0 0.0
        %826 = vmatpush1.msra.mxu0 0.0
        %827 = vmatprep.subr.mxu0 0.0
        %828 = vmatpush1.msra.mxu0 0.0
        %829 = vmatprep.subr.mxu0 0.0
        %830 = vmatpush1.msra.mxu0 0.0
        %831 = vmatprep.subr.mxu0 0.0
        %832 = vmatpush1.msra.mxu0 0.0
        %833 = vmatprep.subr.mxu0 0.0
        %834 = vmatpush1.msra.mxu0 0.0
        %835 = vmatprep.subr.mxu0 0.0
        %836 = vmatpush1.msra.mxu0 0.0
        %837 = vmatprep.subr.mxu0 0.0
        %838 = vmatpush1.msra.mxu0 0.0
        %839 = vmatprep.subr.mxu0 0.0
        %840 = vmatpush1.msra.mxu0 0.0
        %841 = vmatprep.subr.mxu0 0.0
        %842 = vmatpush1.msra.mxu0 0.0
        %843 = vmatprep.subr.mxu0 0.0
        %844 = vmatpush1.msra.mxu0 0.0
        %845 = vmatprep.subr.mxu0 0.0
        %846 = vmatpush1.msra.mxu0 0.0
        %847 = vmatprep.subr.mxu0 0.0
        %848 = vmatpush1.msra.mxu0 0.0
        %849 = vmatprep.subr.mxu0 0.0
        %850 = vmatpush1.msra.mxu0 0.0
        %851 = vmatprep.subr.mxu0 0.0
        %852 = vmatpush1.msra.mxu0 0.0
        %853 = vmatprep.subr.mxu0 0.0
        %854 = vmatpush1.msra.mxu0 0.0
        %855 = vmatprep.subr.mxu0 0.0
        %856 = vmatpush1.msra.mxu0 0.0
        %857 = vmatprep.subr.mxu0 0.0
        %858 = vmatpush1.msra.mxu0 0.0
        %859 = vmatprep.subr.mxu0 0.0
        %860 = vmatpush1.msra.mxu0 0.0
        %861 = vmatprep.subr.mxu0 0.0
        %862 = vmatpush1.msra.mxu0 0.0
        %863 = vmatprep.subr.mxu0 0.0
        %864 = vmatpush1.msra.mxu0 0.0
        %865 = vmatprep.subr.mxu0 0.0
        %866 = vmatpush1.msra.mxu0 0.0
        %867 = vmatprep.subr.mxu0 0.0
        %868 = vmatpush1.msra.mxu0 0.0
        %869 = vmatprep.subr.mxu0 0.0
        %870 = vmatpush1.msra.mxu0 0.0
        %871 = vmatprep.mubr.f32.mxu0 0.0
        %872 = vmatmul.mubr.f32.gmra.mrb[0].mxu0 %v802
        %v873 = vpop.f32.mrb[0].mxu0
        %v874 = vadd.f32 %v493, %v873
        %v875 = vpop.f32.mrb[0].mxu0
        %876 = vdwg.mxu0
        %v878 = vsel %vm495, %v249, 0
        %v881 = vsel %vm499, %v316, 0
        %883 = vmatprep.subr.mxu0 0.0
        %884 = vmatpush1.msra.mxu0 %v313
        %885 = vmatprep.subr.mxu0 0.0
        %886 = vmatpush1.msra.mxu0 %v314
        %887 = vmatprep.subr.mxu0 0.0
        %888 = vmatpush1.msra.mxu0 %v315
        %889 = vmatprep.subr.mxu0 0.0
        %890 = vmatpush1.msra.mxu0 %v881
        %891 = vmatprep.subr.mxu0 0.0
        %892 = vmatpush1.msra.mxu0 0.0
        %893 = vmatprep.subr.mxu0 0.0
        %894 = vmatpush1.msra.mxu0 0.0
        %895 = vmatprep.subr.mxu0 0.0
        %896 = vmatpush1.msra.mxu0 0.0
        %897 = vmatprep.subr.mxu0 0.0
        %898 = vmatpush1.msra.mxu0 0.0
        %899 = vmatprep.subr.mxu0 0.0
        %900 = vmatpush1.msra.mxu0 0.0
        %901 = vmatprep.subr.mxu0 0.0
        %902 = vmatpush1.msra.mxu0 0.0
        %903 = vmatprep.subr.mxu0 0.0
        %904 = vmatpush1.msra.mxu0 0.0
        %905 = vmatprep.subr.mxu0 0.0
        %906 = vmatpush1.msra.mxu0 0.0
        %907 = vmatprep.subr.mxu0 0.0
        %908 = vmatpush1.msra.mxu0 0.0
        %909 = vmatprep.subr.mxu0 0.0
        %910 = vmatpush1.msra.mxu0 0.0
        %911 = vmatprep.subr.mxu0 0.0
        %912 = vmatpush1.msra.mxu0 0.0
        %913 = vmatprep.subr.mxu0 0.0
        %914 = vmatpush1.msra.mxu0 0.0
        %915 = vmatprep.subr.mxu0 0.0
        %916 = vmatpush1.msra.mxu0 0.0
        %917 = vmatprep.subr.mxu0 0.0
        %918 = vmatpush1.msra.mxu0 0.0
        %919 = vmatprep.subr.mxu0 0.0
        %920 = vmatpush1.msra.mxu0 0.0
        %921 = vmatprep.subr.mxu0 0.0
        %922 = vmatpush1.msra.mxu0 0.0
        %923 = vmatprep.subr.mxu0 0.0
        %924 = vmatpush1.msra.mxu0 0.0
        %925 = vmatprep.subr.mxu0 0.0
        %926 = vmatpush1.msra.mxu0 0.0
        %927 = vmatprep.subr.mxu0 0.0
        %928 = vmatpush1.msra.mxu0 0.0
        %929 = vmatprep.subr.mxu0 0.0
        %930 = vmatpush1.msra.mxu0 0.0
        %931 = vmatprep.subr.mxu0 0.0
        %932 = vmatpush1.msra.mxu0 0.0
        %933 = vmatprep.subr.mxu0 0.0
        %934 = vmatpush1.msra.mxu0 0.0
        %935 = vmatprep.subr.mxu0 0.0
        %936 = vmatpush1.msra.mxu0 0.0
        %937 = vmatprep.subr.mxu0 0.0
        %938 = vmatpush1.msra.mxu0 0.0
        %939 = vmatprep.subr.mxu0 0.0
        %940 = vmatpush1.msra.mxu0 0.0
        %941 = vmatprep.subr.mxu0 0.0
        %942 = vmatpush1.msra.mxu0 0.0
        %943 = vmatprep.subr.mxu0 0.0
        %944 = vmatpush1.msra.mxu0 0.0
        %945 = vmatprep.subr.mxu0 0.0
        %946 = vmatpush1.msra.mxu0 0.0
        %947 = vmatprep.mubr.f32.mxu0 0.0
        %948 = vmatmul.mubr.f32.gmra.mrb[0].mxu0 %v878
        %v949 = vpop.f32.mrb[0].mxu0
        %v950 = vadd.f32 %v493, %v949
        %v951 = vpop.f32.mrb[0].mxu0
        %952 = vdwg.mxu0
        %v954 = vsel %vm495, %v250, 0
        %v957 = vsel %vm499, %v320, 0
        %959 = vmatprep.subr.mxu0 0.0
        %960 = vmatpush1.msra.mxu0 %v317
        %961 = vmatprep.subr.mxu0 0.0
        %962 = vmatpush1.msra.mxu0 %v318
        %963 = vmatprep.subr.mxu0 0.0
        %964 = vmatpush1.msra.mxu0 %v319
        %965 = vmatprep.subr.mxu0 0.0
        %966 = vmatpush1.msra.mxu0 %v957
        %967 = vmatprep.subr.mxu0 0.0
        %968 = vmatpush1.msra.mxu0 0.0
        %969 = vmatprep.subr.mxu0 0.0
        %970 = vmatpush1.msra.mxu0 0.0
        %971 = vmatprep.subr.mxu0 0.0
        %972 = vmatpush1.msra.mxu0 0.0
        %973 = vmatprep.subr.mxu0 0.0
        %974 = vmatpush1.msra.mxu0 0.0
        %975 = vmatprep.subr.mxu0 0.0
        %976 = vmatpush1.msra.mxu0 0.0
        %977 = vmatprep.subr.mxu0 0.0
        %978 = vmatpush1.msra.mxu0 0.0
        %979 = vmatprep.subr.mxu0 0.0
        %980 = vmatpush1.msra.mxu0 0.0
        %981 = vmatprep.subr.mxu0 0.0
        %982 = vmatpush1.msra.mxu0 0.0
        %983 = vmatprep.subr.mxu0 0.0
        %984 = vmatpush1.msra.mxu0 0.0
        %985 = vmatprep.subr.mxu0 0.0
        %986 = vmatpush1.msra.mxu0 0.0
        %987 = vmatprep.subr.mxu0 0.0
        %988 = vmatpush1.msra.mxu0 0.0
        %989 = vmatprep.subr.mxu0 0.0
        %990 = vmatpush1.msra.mxu0 0.0
        %991 = vmatprep.subr.mxu0 0.0
        %992 = vmatpush1.msra.mxu0 0.0
        %993 = vmatprep.subr.mxu0 0.0
        %994 = vmatpush1.msra.mxu0 0.0
        %995 = vmatprep.subr.mxu0 0.0
        %996 = vmatpush1.msra.mxu0 0.0
        %997 = vmatprep.subr.mxu0 0.0
        %998 = vmatpush1.msra.mxu0 0.0
        %999 = vmatprep.subr.mxu0 0.0
        %1000 = vmatpush1.msra.mxu0 0.0
        %1001 = vmatprep.subr.mxu0 0.0
        %1002 = vmatpush1.msra.mxu0 0.0
        %1003 = vmatprep.subr.mxu0 0.0
        %1004 = vmatpush1.msra.mxu0 0.0
        %1005 = vmatprep.subr.mxu0 0.0
        %1006 = vmatpush1.msra.mxu0 0.0
        %1007 = vmatprep.subr.mxu0 0.0
        %1008 = vmatpush1.msra.mxu0 0.0
        %1009 = vmatprep.subr.mxu0 0.0
        %1010 = vmatpush1.msra.mxu0 0.0
        %1011 = vmatprep.subr.mxu0 0.0
        %1012 = vmatpush1.msra.mxu0 0.0
        %1013 = vmatprep.subr.mxu0 0.0
        %1014 = vmatpush1.msra.mxu0 0.0
        %1015 = vmatprep.subr.mxu0 0.0
        %1016 = vmatpush1.msra.mxu0 0.0
        %1017 = vmatprep.subr.mxu0 0.0
        %1018 = vmatpush1.msra.mxu0 0.0
        %1019 = vmatprep.subr.mxu0 0.0
        %1020 = vmatpush1.msra.mxu0 0.0
        %1021 = vmatprep.subr.mxu0 0.0
        %1022 = vmatpush1.msra.mxu0 0.0
        %1023 = vmatprep.mubr.f32.mxu0 0.0
        %1024 = vmatmul.mubr.f32.gmra.mrb[0].mxu0 %v954
        %v1025 = vpop.f32.mrb[0].mxu0
        %v1026 = vadd.f32 %v493, %v1025
        %v1027 = vpop.f32.mrb[0].mxu0
        %1028 = vdwg.mxu0
        %v1030 = vsel %vm495, %v251, 0
        %v1033 = vsel %vm499, %v324, 0
        %1035 = vmatprep.subr.mxu0 0.0
        %1036 = vmatpush1.msra.mxu0 %v321
        %1037 = vmatprep.subr.mxu0 0.0
        %1038 = vmatpush1.msra.mxu0 %v322
        %1039 = vmatprep.subr.mxu0 0.0
        %1040 = vmatpush1.msra.mxu0 %v323
        %1041 = vmatprep.subr.mxu0 0.0
        %1042 = vmatpush1.msra.mxu0 %v1033
        %1043 = vmatprep.subr.mxu0 0.0
        %1044 = vmatpush1.msra.mxu0 0.0
        %1045 = vmatprep.subr.mxu0 0.0
        %1046 = vmatpush1.msra.mxu0 0.0
        %1047 = vmatprep.subr.mxu0 0.0
        %1048 = vmatpush1.msra.mxu0 0.0
        %1049 = vmatprep.subr.mxu0 0.0
        %1050 = vmatpush1.msra.mxu0 0.0
        %1051 = vmatprep.subr.mxu0 0.0
        %1052 = vmatpush1.msra.mxu0 0.0
        %1053 = vmatprep.subr.mxu0 0.0
        %1054 = vmatpush1.msra.mxu0 0.0
        %1055 = vmatprep.subr.mxu0 0.0
        %1056 = vmatpush1.msra.mxu0 0.0
        %1057 = vmatprep.subr.mxu0 0.0
        %1058 = vmatpush1.msra.mxu0 0.0
        %1059 = vmatprep.subr.mxu0 0.0
        %1060 = vmatpush1.msra.mxu0 0.0
        %1061 = vmatprep.subr.mxu0 0.0
        %1062 = vmatpush1.msra.mxu0 0.0
        %1063 = vmatprep.subr.mxu0 0.0
        %1064 = vmatpush1.msra.mxu0 0.0
        %1065 = vmatprep.subr.mxu0 0.0
        %1066 = vmatpush1.msra.mxu0 0.0
        %1067 = vmatprep.subr.mxu0 0.0
        %1068 = vmatpush1.msra.mxu0 0.0
        %1069 = vmatprep.subr.mxu0 0.0
        %1070 = vmatpush1.msra.mxu0 0.0
        %1071 = vmatprep.subr.mxu0 0.0
        %1072 = vmatpush1.msra.mxu0 0.0
        %1073 = vmatprep.subr.mxu0 0.0
        %1074 = vmatpush1.msra.mxu0 0.0
        %1075 = vmatprep.subr.mxu0 0.0
        %1076 = vmatpush1.msra.mxu0 0.0
        %1077 = vmatprep.subr.mxu0 0.0
        %1078 = vmatpush1.msra.mxu0 0.0
        %1079 = vmatprep.subr.mxu0 0.0
        %1080 = vmatpush1.msra.mxu0 0.0
        %1081 = vmatprep.subr.mxu0 0.0
        %1082 = vmatpush1.msra.mxu0 0.0
        %1083 = vmatprep.subr.mxu0 0.0
        %1084 = vmatpush1.msra.mxu0 0.0
        %1085 = vmatprep.subr.mxu0 0.0
        %1086 = vmatpush1.msra.mxu0 0.0
        %1087 = vmatprep.subr.mxu0 0.0
        %1088 = vmatpush1.msra.mxu0 0.0
        %1089 = vmatprep.subr.mxu0 0.0
        %1090 = vmatpush1.msra.mxu0 0.0
        %1091 = vmatprep.subr.mxu0 0.0
        %1092 = vmatpush1.msra.mxu0 0.0
        %1093 = vmatprep.subr.mxu0 0.0
        %1094 = vmatpush1.msra.mxu0 0.0
        %1095 = vmatprep.subr.mxu0 0.0
        %1096 = vmatpush1.msra.mxu0 0.0
        %1097 = vmatprep.subr.mxu0 0.0
        %1098 = vmatpush1.msra.mxu0 0.0
        %1099 = vmatprep.mubr.f32.mxu0 0.0
        %1100 = vmatmul.mubr.f32.gmra.mrb[0].mxu0 %v1030
        %v1101 = vpop.f32.mrb[0].mxu0
        %v1102 = vadd.f32 %v493, %v1101
        %v1103 = vpop.f32.mrb[0].mxu0
        %1104 = vdwg.mxu0
        %v1106 = vsel %vm495, %v252, 0
        %v1109 = vsel %vm499, %v328, 0
        %1111 = vmatprep.subr.mxu0 0.0
        %1112 = vmatpush1.msra.mxu0 %v325
        %1113 = vmatprep.subr.mxu0 0.0
        %1114 = vmatpush1.msra.mxu0 %v326
        %1115 = vmatprep.subr.mxu0 0.0
        %1116 = vmatpush1.msra.mxu0 %v327
        %1117 = vmatprep.subr.mxu0 0.0
        %1118 = vmatpush1.msra.mxu0 %v1109
        %1119 = vmatprep.subr.mxu0 0.0
        %1120 = vmatpush1.msra.mxu0 0.0
        %1121 = vmatprep.subr.mxu0 0.0
        %1122 = vmatpush1.msra.mxu0 0.0
        %1123 = vmatprep.subr.mxu0 0.0
        %1124 = vmatpush1.msra.mxu0 0.0
        %1125 = vmatprep.subr.mxu0 0.0
        %1126 = vmatpush1.msra.mxu0 0.0
        %1127 = vmatprep.subr.mxu0 0.0
        %1128 = vmatpush1.msra.mxu0 0.0
        %1129 = vmatprep.subr.mxu0 0.0
        %1130 = vmatpush1.msra.mxu0 0.0
        %1131 = vmatprep.subr.mxu0 0.0
        %1132 = vmatpush1.msra.mxu0 0.0
        %1133 = vmatprep.subr.mxu0 0.0
        %1134 = vmatpush1.msra.mxu0 0.0
        %1135 = vmatprep.subr.mxu0 0.0
        %1136 = vmatpush1.msra.mxu0 0.0
        %1137 = vmatprep.subr.mxu0 0.0
        %1138 = vmatpush1.msra.mxu0 0.0
        %1139 = vmatprep.subr.mxu0 0.0
        %1140 = vmatpush1.msra.mxu0 0.0
        %1141 = vmatprep.subr.mxu0 0.0
        %1142 = vmatpush1.msra.mxu0 0.0
        %1143 = vmatprep.subr.mxu0 0.0
        %1144 = vmatpush1.msra.mxu0 0.0
        %1145 = vmatprep.subr.mxu0 0.0
        %1146 = vmatpush1.msra.mxu0 0.0
        %1147 = vmatprep.subr.mxu0 0.0
        %1148 = vmatpush1.msra.mxu0 0.0
        %1149 = vmatprep.subr.mxu0 0.0
        %1150 = vmatpush1.msra.mxu0 0.0
        %1151 = vmatprep.subr.mxu0 0.0
        %1152 = vmatpush1.msra.mxu0 0.0
        %1153 = vmatprep.subr.mxu0 0.0
        %1154 = vmatpush1.msra.mxu0 0.0
        %1155 = vmatprep.subr.mxu0 0.0
        %1156 = vmatpush1.msra.mxu0 0.0
        %1157 = vmatprep.subr.mxu0 0.0
        %1158 = vmatpush1.msra.mxu0 0.0
        %1159 = vmatprep.subr.mxu0 0.0
        %1160 = vmatpush1.msra.mxu0 0.0
        %1161 = vmatprep.subr.mxu0 0.0
        %1162 = vmatpush1.msra.mxu0 0.0
        %1163 = vmatprep.subr.mxu0 0.0
        %1164 = vmatpush1.msra.mxu0 0.0
        %1165 = vmatprep.subr.mxu0 0.0
        %1166 = vmatpush1.msra.mxu0 0.0
        %1167 = vmatprep.subr.mxu0 0.0
        %1168 = vmatpush1.msra.mxu0 0.0
        %1169 = vmatprep.subr.mxu0 0.0
        %1170 = vmatpush1.msra.mxu0 0.0
        %1171 = vmatprep.subr.mxu0 0.0
        %1172 = vmatpush1.msra.mxu0 0.0
        %1173 = vmatprep.subr.mxu0 0.0
        %1174 = vmatpush1.msra.mxu0 0.0
        %1175 = vmatprep.mubr.f32.mxu0 0.0
        %1176 = vmatmul.mubr.f32.gmra.mrb[0].mxu0 %v1106
        %v1177 = vpop.f32.mrb[0].mxu0
        %v1178 = vadd.f32 %v493, %v1177
        %v1179 = vpop.f32.mrb[0].mxu0
        %1180 = vdwg.mxu0
        %v1182 = vsel %vm495, %v253, 0
        %v1185 = vsel %vm499, %v332, 0
        %1187 = vmatprep.subr.mxu0 0.0
        %1188 = vmatpush1.msra.mxu0 %v329
        %1189 = vmatprep.subr.mxu0 0.0
        %1190 = vmatpush1.msra.mxu0 %v330
        %1191 = vmatprep.subr.mxu0 0.0
        %1192 = vmatpush1.msra.mxu0 %v331
        %1193 = vmatprep.subr.mxu0 0.0
        %1194 = vmatpush1.msra.mxu0 %v1185
        %1195 = vmatprep.subr.mxu0 0.0
        %1196 = vmatpush1.msra.mxu0 0.0
        %1197 = vmatprep.subr.mxu0 0.0
        %1198 = vmatpush1.msra.mxu0 0.0
        %1199 = vmatprep.subr.mxu0 0.0
        %1200 = vmatpush1.msra.mxu0 0.0
        %1201 = vmatprep.subr.mxu0 0.0
        %1202 = vmatpush1.msra.mxu0 0.0
        %1203 = vmatprep.subr.mxu0 0.0
        %1204 = vmatpush1.msra.mxu0 0.0
        %1205 = vmatprep.subr.mxu0 0.0
        %1206 = vmatpush1.msra.mxu0 0.0
        %1207 = vmatprep.subr.mxu0 0.0
        %1208 = vmatpush1.msra.mxu0 0.0
        %1209 = vmatprep.subr.mxu0 0.0
        %1210 = vmatpush1.msra.mxu0 0.0
        %1211 = vmatprep.subr.mxu0 0.0
        %1212 = vmatpush1.msra.mxu0 0.0
        %1213 = vmatprep.subr.mxu0 0.0
        %1214 = vmatpush1.msra.mxu0 0.0
        %1215 = vmatprep.subr.mxu0 0.0
        %1216 = vmatpush1.msra.mxu0 0.0
        %1217 = vmatprep.subr.mxu0 0.0
        %1218 = vmatpush1.msra.mxu0 0.0
        %1219 = vmatprep.subr.mxu0 0.0
        %1220 = vmatpush1.msra.mxu0 0.0
        %1221 = vmatprep.subr.mxu0 0.0
        %1222 = vmatpush1.msra.mxu0 0.0
        %1223 = vmatprep.subr.mxu0 0.0
        %1224 = vmatpush1.msra.mxu0 0.0
        %1225 = vmatprep.subr.mxu0 0.0
        %1226 = vmatpush1.msra.mxu0 0.0
        %1227 = vmatprep.subr.mxu0 0.0
        %1228 = vmatpush1.msra.mxu0 0.0
        %1229 = vmatprep.subr.mxu0 0.0
        %1230 = vmatpush1.msra.mxu0 0.0
        %1231 = vmatprep.subr.mxu0 0.0
        %1232 = vmatpush1.msra.mxu0 0.0
        %1233 = vmatprep.subr.mxu0 0.0
        %1234 = vmatpush1.msra.mxu0 0.0
        %1235 = vmatprep.subr.mxu0 0.0
        %1236 = vmatpush1.msra.mxu0 0.0
        %1237 = vmatprep.subr.mxu0 0.0
        %1238 = vmatpush1.msra.mxu0 0.0
        %1239 = vmatprep.subr.mxu0 0.0
        %1240 = vmatpush1.msra.mxu0 0.0
        %1241 = vmatprep.subr.mxu0 0.0
        %1242 = vmatpush1.msra.mxu0 0.0
        %1243 = vmatprep.subr.mxu0 0.0
        %1244 = vmatpush1.msra.mxu0 0.0
        %1245 = vmatprep.subr.mxu0 0.0
        %1246 = vmatpush1.msra.mxu0 0.0
        %1247 = vmatprep.subr.mxu0 0.0
        %1248 = vmatpush1.msra.mxu0 0.0
        %1249 = vmatprep.subr.mxu0 0.0
        %1250 = vmatpush1.msra.mxu0 0.0
        %1251 = vmatprep.mubr.f32.mxu0 0.0
        %1252 = vmatmul.mubr.f32.gmra.mrb[0].mxu0 %v1182
        %v1253 = vpop.f32.mrb[0].mxu0
        %v1254 = vadd.f32 %v493, %v1253
        %v1255 = vpop.f32.mrb[0].mxu0
        %1256 = vdwg.mxu0
        %v1258 = vsel %vm495, %v254, 0
        %v1261 = vsel %vm499, %v336, 0
        %1263 = vmatprep.subr.mxu0 0.0
        %1264 = vmatpush1.msra.mxu0 %v333
        %1265 = vmatprep.subr.mxu0 0.0
        %1266 = vmatpush1.msra.mxu0 %v334
        %1267 = vmatprep.subr.mxu0 0.0
        %1268 = vmatpush1.msra.mxu0 %v335
        %1269 = vmatprep.subr.mxu0 0.0
        %1270 = vmatpush1.msra.mxu0 %v1261
        %1271 = vmatprep.subr.mxu0 0.0
        %1272 = vmatpush1.msra.mxu0 0.0
        %1273 = vmatprep.subr.mxu0 0.0
        %1274 = vmatpush1.msra.mxu0 0.0
        %1275 = vmatprep.subr.mxu0 0.0
        %1276 = vmatpush1.msra.mxu0 0.0
        %1277 = vmatprep.subr.mxu0 0.0
        %1278 = vmatpush1.msra.mxu0 0.0
        %1279 = vmatprep.subr.mxu0 0.0
        %1280 = vmatpush1.msra.mxu0 0.0
        %1281 = vmatprep.subr.mxu0 0.0
        %1282 = vmatpush1.msra.mxu0 0.0
        %1283 = vmatprep.subr.mxu0 0.0
        %1284 = vmatpush1.msra.mxu0 0.0
        %1285 = vmatprep.subr.mxu0 0.0
        %1286 = vmatpush1.msra.mxu0 0.0
        %1287 = vmatprep.subr.mxu0 0.0
        %1288 = vmatpush1.msra.mxu0 0.0
        %1289 = vmatprep.subr.mxu0 0.0
        %1290 = vmatpush1.msra.mxu0 0.0
        %1291 = vmatprep.subr.mxu0 0.0
        %1292 = vmatpush1.msra.mxu0 0.0
        %1293 = vmatprep.subr.mxu0 0.0
        %1294 = vmatpush1.msra.mxu0 0.0
        %1295 = vmatprep.subr.mxu0 0.0
        %1296 = vmatpush1.msra.mxu0 0.0
        %1297 = vmatprep.subr.mxu0 0.0
        %1298 = vmatpush1.msra.mxu0 0.0
        %1299 = vmatprep.subr.mxu0 0.0
        %1300 = vmatpush1.msra.mxu0 0.0
        %1301 = vmatprep.subr.mxu0 0.0
        %1302 = vmatpush1.msra.mxu0 0.0
        %1303 = vmatprep.subr.mxu0 0.0
        %1304 = vmatpush1.msra.mxu0 0.0
        %1305 = vmatprep.subr.mxu0 0.0
        %1306 = vmatpush1.msra.mxu0 0.0
        %1307 = vmatprep.subr.mxu0 0.0
        %1308 = vmatpush1.msra.mxu0 0.0
        %1309 = vmatprep.subr.mxu0 0.0
        %1310 = vmatpush1.msra.mxu0 0.0
        %1311 = vmatprep.subr.mxu0 0.0
        %1312 = vmatpush1.msra.mxu0 0.0
        %1313 = vmatprep.subr.mxu0 0.0
        %1314 = vmatpush1.msra.mxu0 0.0
        %1315 = vmatprep.subr.mxu0 0.0
        %1316 = vmatpush1.msra.mxu0 0.0
        %1317 = vmatprep.subr.mxu0 0.0
        %1318 = vmatpush1.msra.mxu0 0.0
        %1319 = vmatprep.subr.mxu0 0.0
        %1320 = vmatpush1.msra.mxu0 0.0
        %1321 = vmatprep.subr.mxu0 0.0
        %1322 = vmatpush1.msra.mxu0 0.0
        %1323 = vmatprep.subr.mxu0 0.0
        %1324 = vmatpush1.msra.mxu0 0.0
        %1325 = vmatprep.subr.mxu0 0.0
        %1326 = vmatpush1.msra.mxu0 0.0
        %1327 = vmatprep.mubr.f32.mxu0 0.0
        %1328 = vmatmul.mubr.f32.gmra.mrb[0].mxu0 %v1258
        %v1329 = vpop.f32.mrb[0].mxu0
        %v1330 = vadd.f32 %v493, %v1329
        %v1331 = vpop.f32.mrb[0].mxu0
        %1332 = vdwg.mxu0
        %v1334 = vsel %vm495, %v255, 0
        %v1337 = vsel %vm499, %v340, 0
        %1339 = vmatprep.subr.mxu0 0.0
        %1340 = vmatpush1.msra.mxu0 %v337
        %1341 = vmatprep.subr.mxu0 0.0
        %1342 = vmatpush1.msra.mxu0 %v338
        %1343 = vmatprep.subr.mxu0 0.0
        %1344 = vmatpush1.msra.mxu0 %v339
        %1345 = vmatprep.subr.mxu0 0.0
        %1346 = vmatpush1.msra.mxu0 %v1337
        %1347 = vmatprep.subr.mxu0 0.0
        %1348 = vmatpush1.msra.mxu0 0.0
        %1349 = vmatprep.subr.mxu0 0.0
        %1350 = vmatpush1.msra.mxu0 0.0
        %1351 = vmatprep.subr.mxu0 0.0
        %1352 = vmatpush1.msra.mxu0 0.0
        %1353 = vmatprep.subr.mxu0 0.0
        %1354 = vmatpush1.msra.mxu0 0.0
        %1355 = vmatprep.subr.mxu0 0.0
        %1356 = vmatpush1.msra.mxu0 0.0
        %1357 = vmatprep.subr.mxu0 0.0
        %1358 = vmatpush1.msra.mxu0 0.0
        %1359 = vmatprep.subr.mxu0 0.0
        %1360 = vmatpush1.msra.mxu0 0.0
        %1361 = vmatprep.subr.mxu0 0.0
        %1362 = vmatpush1.msra.mxu0 0.0
        %1363 = vmatprep.subr.mxu0 0.0
        %1364 = vmatpush1.msra.mxu0 0.0
        %1365 = vmatprep.subr.mxu0 0.0
        %1366 = vmatpush1.msra.mxu0 0.0
        %1367 = vmatprep.subr.mxu0 0.0
        %1368 = vmatpush1.msra.mxu0 0.0
        %1369 = vmatprep.subr.mxu0 0.0
        %1370 = vmatpush1.msra.mxu0 0.0
        %1371 = vmatprep.subr.mxu0 0.0
        %1372 = vmatpush1.msra.mxu0 0.0
        %1373 = vmatprep.subr.mxu0 0.0
        %1374 = vmatpush1.msra.mxu0 0.0
        %1375 = vmatprep.subr.mxu0 0.0
        %1376 = vmatpush1.msra.mxu0 0.0
        %1377 = vmatprep.subr.mxu0 0.0
        %1378 = vmatpush1.msra.mxu0 0.0
        %1379 = vmatprep.subr.mxu0 0.0
        %1380 = vmatpush1.msra.mxu0 0.0
        %1381 = vmatprep.subr.mxu0 0.0
        %1382 = vmatpush1.msra.mxu0 0.0
        %1383 = vmatprep.subr.mxu0 0.0
        %1384 = vmatpush1.msra.mxu0 0.0
        %1385 = vmatprep.subr.mxu0 0.0
        %1386 = vmatpush1.msra.mxu0 0.0
        %1387 = vmatprep.subr.mxu0 0.0
        %1388 = vmatpush1.msra.mxu0 0.0
        %1389 = vmatprep.subr.mxu0 0.0
        %1390 = vmatpush1.msra.mxu0 0.0
        %1391 = vmatprep.subr.mxu0 0.0
        %1392 = vmatpush1.msra.mxu0 0.0
        %1393 = vmatprep.subr.mxu0 0.0
        %1394 = vmatpush1.msra.mxu0 0.0
        %1395 = vmatprep.subr.mxu0 0.0
        %1396 = vmatpush1.msra.mxu0 0.0
        %1397 = vmatprep.subr.mxu0 0.0
        %1398 = vmatpush1.msra.mxu0 0.0
        %1399 = vmatprep.subr.mxu0 0.0
        %1400 = vmatpush1.msra.mxu0 0.0
        %1401 = vmatprep.subr.mxu0 0.0
        %1402 = vmatpush1.msra.mxu0 0.0
        %1403 = vmatprep.mubr.f32.mxu0 0.0
        %1404 = vmatmul.mubr.f32.gmra.mrb[0].mxu0 %v1334
        %v1405 = vpop.f32.mrb[0].mxu0
        %v1406 = vadd.f32 %v493, %v1405
        %v1407 = vpop.f32.mrb[0].mxu0
        %1408 = vdwg.mxu0
        %v1410 = vsel %vm495, %v256, 0
        %v1413 = vsel %vm499, %v344, 0
        %1415 = vmatprep.subr.mxu0 0.0
        %1416 = vmatpush1.msra.mxu0 %v341
        %1417 = vmatprep.subr.mxu0 0.0
        %1418 = vmatpush1.msra.mxu0 %v342
        %1419 = vmatprep.subr.mxu0 0.0
        %1420 = vmatpush1.msra.mxu0 %v343
        %1421 = vmatprep.subr.mxu0 0.0
        %1422 = vmatpush1.msra.mxu0 %v1413
        %1423 = vmatprep.subr.mxu0 0.0
        %1424 = vmatpush1.msra.mxu0 0.0
        %1425 = vmatprep.subr.mxu0 0.0
        %1426 = vmatpush1.msra.mxu0 0.0
        %1427 = vmatprep.subr.mxu0 0.0
        %1428 = vmatpush1.msra.mxu0 0.0
        %1429 = vmatprep.subr.mxu0 0.0
        %1430 = vmatpush1.msra.mxu0 0.0
        %1431 = vmatprep.subr.mxu0 0.0
        %1432 = vmatpush1.msra.mxu0 0.0
        %1433 = vmatprep.subr.mxu0 0.0
        %1434 = vmatpush1.msra.mxu0 0.0
        %1435 = vmatprep.subr.mxu0 0.0
        %1436 = vmatpush1.msra.mxu0 0.0
        %1437 = vmatprep.subr.mxu0 0.0
        %1438 = vmatpush1.msra.mxu0 0.0
        %1439 = vmatprep.subr.mxu0 0.0
        %1440 = vmatpush1.msra.mxu0 0.0
        %1441 = vmatprep.subr.mxu0 0.0
        %1442 = vmatpush1.msra.mxu0 0.0
        %1443 = vmatprep.subr.mxu0 0.0
        %1444 = vmatpush1.msra.mxu0 0.0
        %1445 = vmatprep.subr.mxu0 0.0
        %1446 = vmatpush1.msra.mxu0 0.0
        %1447 = vmatprep.subr.mxu0 0.0
        %1448 = vmatpush1.msra.mxu0 0.0
        %1449 = vmatprep.subr.mxu0 0.0
        %1450 = vmatpush1.msra.mxu0 0.0
        %1451 = vmatprep.subr.mxu0 0.0
        %1452 = vmatpush1.msra.mxu0 0.0
        %1453 = vmatprep.subr.mxu0 0.0
        %1454 = vmatpush1.msra.mxu0 0.0
        %1455 = vmatprep.subr.mxu0 0.0
        %1456 = vmatpush1.msra.mxu0 0.0
        %1457 = vmatprep.subr.mxu0 0.0
        %1458 = vmatpush1.msra.mxu0 0.0
        %1459 = vmatprep.subr.mxu0 0.0
        %1460 = vmatpush1.msra.mxu0 0.0
        %1461 = vmatprep.subr.mxu0 0.0
        %1462 = vmatpush1.msra.mxu0 0.0
        %1463 = vmatprep.subr.mxu0 0.0
        %1464 = vmatpush1.msra.mxu0 0.0
        %1465 = vmatprep.subr.mxu0 0.0
        %1466 = vmatpush1.msra.mxu0 0.0
        %1467 = vmatprep.subr.mxu0 0.0
        %1468 = vmatpush1.msra.mxu0 0.0
        %1469 = vmatprep.subr.mxu0 0.0
        %1470 = vmatpush1.msra.mxu0 0.0
        %1471 = vmatprep.subr.mxu0 0.0
        %1472 = vmatpush1.msra.mxu0 0.0
        %1473 = vmatprep.subr.mxu0 0.0
        %1474 = vmatpush1.msra.mxu0 0.0
        %1475 = vmatprep.subr.mxu0 0.0
        %1476 = vmatpush1.msra.mxu0 0.0
        %1477 = vmatprep.subr.mxu0 0.0
        %1478 = vmatpush1.msra.mxu0 0.0
        %1479 = vmatprep.mubr.f32.mxu0 0.0
        %1480 = vmatmul.mubr.f32.gmra.mrb[0].mxu0 %v1410
        %v1481 = vpop.f32.mrb[0].mxu0
        %v1482 = vadd.f32 %v493, %v1481
        %v1483 = vpop.f32.mrb[0].mxu0
        %1484 = vdwg.mxu0
        %v1486 = vsel %vm495, %v257, 0
        %v1489 = vsel %vm499, %v348, 0
        %1491 = vmatprep.subr.mxu0 0.0
        %1492 = vmatpush1.msra.mxu0 %v345
        %1493 = vmatprep.subr.mxu0 0.0
        %1494 = vmatpush1.msra.mxu0 %v346
        %1495 = vmatprep.subr.mxu0 0.0
        %1496 = vmatpush1.msra.mxu0 %v347
        %1497 = vmatprep.subr.mxu0 0.0
        %1498 = vmatpush1.msra.mxu0 %v1489
        %1499 = vmatprep.subr.mxu0 0.0
        %1500 = vmatpush1.msra.mxu0 0.0
        %1501 = vmatprep.subr.mxu0 0.0
        %1502 = vmatpush1.msra.mxu0 0.0
        %1503 = vmatprep.subr.mxu0 0.0
        %1504 = vmatpush1.msra.mxu0 0.0
        %1505 = vmatprep.subr.mxu0 0.0
        %1506 = vmatpush1.msra.mxu0 0.0
        %1507 = vmatprep.subr.mxu0 0.0
        %1508 = vmatpush1.msra.mxu0 0.0
        %1509 = vmatprep.subr.mxu0 0.0
        %1510 = vmatpush1.msra.mxu0 0.0
        %1511 = vmatprep.subr.mxu0 0.0
        %1512 = vmatpush1.msra.mxu0 0.0
        %1513 = vmatprep.subr.mxu0 0.0
        %1514 = vmatpush1.msra.mxu0 0.0
        %1515 = vmatprep.subr.mxu0 0.0
        %1516 = vmatpush1.msra.mxu0 0.0
        %1517 = vmatprep.subr.mxu0 0.0
        %1518 = vmatpush1.msra.mxu0 0.0
        %1519 = vmatprep.subr.mxu0 0.0
        %1520 = vmatpush1.msra.mxu0 0.0
        %1521 = vmatprep.subr.mxu0 0.0
        %1522 = vmatpush1.msra.mxu0 0.0
        %1523 = vmatprep.subr.mxu0 0.0
        %1524 = vmatpush1.msra.mxu0 0.0
        %1525 = vmatprep.subr.mxu0 0.0
        %1526 = vmatpush1.msra.mxu0 0.0
        %1527 = vmatprep.subr.mxu0 0.0
        %1528 = vmatpush1.msra.mxu0 0.0
        %1529 = vmatprep.subr.mxu0 0.0
        %1530 = vmatpush1.msra.mxu0 0.0
        %1531 = vmatprep.subr.mxu0 0.0
        %1532 = vmatpush1.msra.mxu0 0.0
        %1533 = vmatprep.subr.mxu0 0.0
        %1534 = vmatpush1.msra.mxu0 0.0
        %1535 = vmatprep.subr.mxu0 0.0
        %1536 = vmatpush1.msra.mxu0 0.0
        %1537 = vmatprep.subr.mxu0 0.0
        %1538 = vmatpush1.msra.mxu0 0.0
        %1539 = vmatprep.subr.mxu0 0.0
        %1540 = vmatpush1.msra.mxu0 0.0
        %1541 = vmatprep.subr.mxu0 0.0
        %1542 = vmatpush1.msra.mxu0 0.0
        %1543 = vmatprep.subr.mxu0 0.0
        %1544 = vmatpush1.msra.mxu0 0.0
        %1545 = vmatprep.subr.mxu0 0.0
        %1546 = vmatpush1.msra.mxu0 0.0
        %1547 = vmatprep.subr.mxu0 0.0
        %1548 = vmatpush1.msra.mxu0 0.0
        %1549 = vmatprep.subr.mxu0 0.0
        %1550 = vmatpush1.msra.mxu0 0.0
        %1551 = vmatprep.subr.mxu0 0.0
        %1552 = vmatpush1.msra.mxu0 0.0
        %1553 = vmatprep.subr.mxu0 0.0
        %1554 = vmatpush1.msra.mxu0 0.0
        %1555 = vmatprep.mubr.f32.mxu0 0.0
        %1556 = vmatmul.mubr.f32.gmra.mrb[0].mxu0 %v1486
        %v1557 = vpop.f32.mrb[0].mxu0
        %v1558 = vadd.f32 %v493, %v1557
        %v1559 = vpop.f32.mrb[0].mxu0
        %1560 = vdwg.mxu0
        %v1562 = vsel %vm495, %v258, 0
        %v1565 = vsel %vm499, %v352, 0
        %1567 = vmatprep.subr.mxu0 0.0
        %1568 = vmatpush1.msra.mxu0 %v349
        %1569 = vmatprep.subr.mxu0 0.0
        %1570 = vmatpush1.msra.mxu0 %v350
        %1571 = vmatprep.subr.mxu0 0.0
        %1572 = vmatpush1.msra.mxu0 %v351
        %1573 = vmatprep.subr.mxu0 0.0
        %1574 = vmatpush1.msra.mxu0 %v1565
        %1575 = vmatprep.subr.mxu0 0.0
        %1576 = vmatpush1.msra.mxu0 0.0
        %1577 = vmatprep.subr.mxu0 0.0
        %1578 = vmatpush1.msra.mxu0 0.0
        %1579 = vmatprep.subr.mxu0 0.0
        %1580 = vmatpush1.msra.mxu0 0.0
        %1581 = vmatprep.subr.mxu0 0.0
        %1582 = vmatpush1.msra.mxu0 0.0
        %1583 = vmatprep.subr.mxu0 0.0
        %1584 = vmatpush1.msra.mxu0 0.0
        %1585 = vmatprep.subr.mxu0 0.0
        %1586 = vmatpush1.msra.mxu0 0.0
        %1587 = vmatprep.subr.mxu0 0.0
        %1588 = vmatpush1.msra.mxu0 0.0
        %1589 = vmatprep.subr.mxu0 0.0
        %1590 = vmatpush1.msra.mxu0 0.0
        %1591 = vmatprep.subr.mxu0 0.0
        %1592 = vmatpush1.msra.mxu0 0.0
        %1593 = vmatprep.subr.mxu0 0.0
        %1594 = vmatpush1.msra.mxu0 0.0
        %1595 = vmatprep.subr.mxu0 0.0
        %1596 = vmatpush1.msra.mxu0 0.0
        %1597 = vmatprep.subr.mxu0 0.0
        %1598 = vmatpush1.msra.mxu0 0.0
        %1599 = vmatprep.subr.mxu0 0.0
        %1600 = vmatpush1.msra.mxu0 0.0
        %1601 = vmatprep.subr.mxu0 0.0
        %1602 = vmatpush1.msra.mxu0 0.0
        %1603 = vmatprep.subr.mxu0 0.0
        %1604 = vmatpush1.msra.mxu0 0.0
        %1605 = vmatprep.subr.mxu0 0.0
        %1606 = vmatpush1.msra.mxu0 0.0
        %1607 = vmatprep.subr.mxu0 0.0
        %1608 = vmatpush1.msra.mxu0 0.0
        %1609 = vmatprep.subr.mxu0 0.0
        %1610 = vmatpush1.msra.mxu0 0.0
        %1611 = vmatprep.subr.mxu0 0.0
        %1612 = vmatpush1.msra.mxu0 0.0
        %1613 = vmatprep.subr.mxu0 0.0
        %1614 = vmatpush1.msra.mxu0 0.0
        %1615 = vmatprep.subr.mxu0 0.0
        %1616 = vmatpush1.msra.mxu0 0.0
        %1617 = vmatprep.subr.mxu0 0.0
        %1618 = vmatpush1.msra.mxu0 0.0
        %1619 = vmatprep.subr.mxu0 0.0
        %1620 = vmatpush1.msra.mxu0 0.0
        %1621 = vmatprep.subr.mxu0 0.0
        %1622 = vmatpush1.msra.mxu0 0.0
        %1623 = vmatprep.subr.mxu0 0.0
        %1624 = vmatpush1.msra.mxu0 0.0
        %1625 = vmatprep.subr.mxu0 0.0
        %1626 = vmatpush1.msra.mxu0 0.0
        %1627 = vmatprep.subr.mxu0 0.0
        %1628 = vmatpush1.msra.mxu0 0.0
        %1629 = vmatprep.subr.mxu0 0.0
        %1630 = vmatpush1.msra.mxu0 0.0
        %1631 = vmatprep.mubr.f32.mxu0 0.0
        %1632 = vmatmul.mubr.f32.gmra.mrb[0].mxu0 %v1562
        %v1633 = vpop.f32.mrb[0].mxu0
        %v1634 = vadd.f32 %v493, %v1633
        %v1635 = vpop.f32.mrb[0].mxu0
        %1636 = vdwg.mxu0
        %v1638 = vsel %vm495, %v259, 0
        %v1641 = vsel %vm499, %v356, 0
        %1643 = vmatprep.subr.mxu0 0.0
        %1644 = vmatpush1.msra.mxu0 %v353
        %1645 = vmatprep.subr.mxu0 0.0
        %1646 = vmatpush1.msra.mxu0 %v354
        %1647 = vmatprep.subr.mxu0 0.0
        %1648 = vmatpush1.msra.mxu0 %v355
        %1649 = vmatprep.subr.mxu0 0.0
        %1650 = vmatpush1.msra.mxu0 %v1641
        %1651 = vmatprep.subr.mxu0 0.0
        %1652 = vmatpush1.msra.mxu0 0.0
        %1653 = vmatprep.subr.mxu0 0.0
        %1654 = vmatpush1.msra.mxu0 0.0
        %1655 = vmatprep.subr.mxu0 0.0
        %1656 = vmatpush1.msra.mxu0 0.0
        %1657 = vmatprep.subr.mxu0 0.0
        %1658 = vmatpush1.msra.mxu0 0.0
        %1659 = vmatprep.subr.mxu0 0.0
        %1660 = vmatpush1.msra.mxu0 0.0
        %1661 = vmatprep.subr.mxu0 0.0
        %1662 = vmatpush1.msra.mxu0 0.0
        %1663 = vmatprep.subr.mxu0 0.0
        %1664 = vmatpush1.msra.mxu0 0.0
        %1665 = vmatprep.subr.mxu0 0.0
        %1666 = vmatpush1.msra.mxu0 0.0
        %1667 = vmatprep.subr.mxu0 0.0
        %1668 = vmatpush1.msra.mxu0 0.0
        %1669 = vmatprep.subr.mxu0 0.0
        %1670 = vmatpush1.msra.mxu0 0.0
        %1671 = vmatprep.subr.mxu0 0.0
        %1672 = vmatpush1.msra.mxu0 0.0
        %1673 = vmatprep.subr.mxu0 0.0
        %1674 = vmatpush1.msra.mxu0 0.0
        %1675 = vmatprep.subr.mxu0 0.0
        %1676 = vmatpush1.msra.mxu0 0.0
        %1677 = vmatprep.subr.mxu0 0.0
        %1678 = vmatpush1.msra.mxu0 0.0
        %1679 = vmatprep.subr.mxu0 0.0
        %1680 = vmatpush1.msra.mxu0 0.0
        %1681 = vmatprep.subr.mxu0 0.0
        %1682 = vmatpush1.msra.mxu0 0.0
        %1683 = vmatprep.subr.mxu0 0.0
        %1684 = vmatpush1.msra.mxu0 0.0
        %1685 = vmatprep.subr.mxu0 0.0
        %1686 = vmatpush1.msra.mxu0 0.0
        %1687 = vmatprep.subr.mxu0 0.0
        %1688 = vmatpush1.msra.mxu0 0.0
        %1689 = vmatprep.subr.mxu0 0.0
        %1690 = vmatpush1.msra.mxu0 0.0
        %1691 = vmatprep.subr.mxu0 0.0
        %1692 = vmatpush1.msra.mxu0 0.0
        %1693 = vmatprep.subr.mxu0 0.0
        %1694 = vmatpush1.msra.mxu0 0.0
        %1695 = vmatprep.subr.mxu0 0.0
        %1696 = vmatpush1.msra.mxu0 0.0
        %1697 = vmatprep.subr.mxu0 0.0
        %1698 = vmatpush1.msra.mxu0 0.0
        %1699 = vmatprep.subr.mxu0 0.0
        %1700 = vmatpush1.msra.mxu0 0.0
        %1701 = vmatprep.subr.mxu0 0.0
        %1702 = vmatpush1.msra.mxu0 0.0
        %1703 = vmatprep.subr.mxu0 0.0
        %1704 = vmatpush1.msra.mxu0 0.0
        %1705 = vmatprep.subr.mxu0 0.0
        %1706 = vmatpush1.msra.mxu0 0.0
        %1707 = vmatprep.mubr.f32.mxu0 0.0
        %1708 = vmatmul.mubr.f32.gmra.mrb[0].mxu0 %v1638
        %v1709 = vpop.f32.mrb[0].mxu0
        %v1710 = vadd.f32 %v493, %v1709
        %v1711 = vpop.f32.mrb[0].mxu0
        %1712 = vdwg.mxu0
        %v1714 = vsel %vm495, %v260, 0
        %v1717 = vsel %vm499, %v360, 0
        %1719 = vmatprep.subr.mxu0 0.0
        %1720 = vmatpush1.msra.mxu0 %v357
        %1721 = vmatprep.subr.mxu0 0.0
        %1722 = vmatpush1.msra.mxu0 %v358
        %1723 = vmatprep.subr.mxu0 0.0
        %1724 = vmatpush1.msra.mxu0 %v359
        %1725 = vmatprep.subr.mxu0 0.0
        %1726 = vmatpush1.msra.mxu0 %v1717
        %1727 = vmatprep.subr.mxu0 0.0
        %1728 = vmatpush1.msra.mxu0 0.0
        %1729 = vmatprep.subr.mxu0 0.0
        %1730 = vmatpush1.msra.mxu0 0.0
        %1731 = vmatprep.subr.mxu0 0.0
        %1732 = vmatpush1.msra.mxu0 0.0
        %1733 = vmatprep.subr.mxu0 0.0
        %1734 = vmatpush1.msra.mxu0 0.0
        %1735 = vmatprep.subr.mxu0 0.0
        %1736 = vmatpush1.msra.mxu0 0.0
        %1737 = vmatprep.subr.mxu0 0.0
        %1738 = vmatpush1.msra.mxu0 0.0
        %1739 = vmatprep.subr.mxu0 0.0
        %1740 = vmatpush1.msra.mxu0 0.0
        %1741 = vmatprep.subr.mxu0 0.0
        %1742 = vmatpush1.msra.mxu0 0.0
        %1743 = vmatprep.subr.mxu0 0.0
        %1744 = vmatpush1.msra.mxu0 0.0
        %1745 = vmatprep.subr.mxu0 0.0
        %1746 = vmatpush1.msra.mxu0 0.0
        %1747 = vmatprep.subr.mxu0 0.0
        %1748 = vmatpush1.msra.mxu0 0.0
        %1749 = vmatprep.subr.mxu0 0.0
        %1750 = vmatpush1.msra.mxu0 0.0
        %1751 = vmatprep.subr.mxu0 0.0
        %1752 = vmatpush1.msra.mxu0 0.0
        %1753 = vmatprep.subr.mxu0 0.0
        %1754 = vmatpush1.msra.mxu0 0.0
        %1755 = vmatprep.subr.mxu0 0.0
        %1756 = vmatpush1.msra.mxu0 0.0
        %1757 = vmatprep.subr.mxu0 0.0
        %1758 = vmatpush1.msra.mxu0 0.0
        %1759 = vmatprep.subr.mxu0 0.0
        %1760 = vmatpush1.msra.mxu0 0.0
        %1761 = vmatprep.subr.mxu0 0.0
        %1762 = vmatpush1.msra.mxu0 0.0
        %1763 = vmatprep.subr.mxu0 0.0
        %1764 = vmatpush1.msra.mxu0 0.0
        %1765 = vmatprep.subr.mxu0 0.0
        %1766 = vmatpush1.msra.mxu0 0.0
        %1767 = vmatprep.subr.mxu0 0.0
        %1768 = vmatpush1.msra.mxu0 0.0
        %1769 = vmatprep.subr.mxu0 0.0
        %1770 = vmatpush1.msra.mxu0 0.0
        %1771 = vmatprep.subr.mxu0 0.0
        %1772 = vmatpush1.msra.mxu0 0.0
        %1773 = vmatprep.subr.mxu0 0.0
        %1774 = vmatpush1.msra.mxu0 0.0
        %1775 = vmatprep.subr.mxu0 0.0
        %1776 = vmatpush1.msra.mxu0 0.0
        %1777 = vmatprep.subr.mxu0 0.0
        %1778 = vmatpush1.msra.mxu0 0.0
        %1779 = vmatprep.subr.mxu0 0.0
        %1780 = vmatpush1.msra.mxu0 0.0
        %1781 = vmatprep.subr.mxu0 0.0
        %1782 = vmatpush1.msra.mxu0 0.0
        %1783 = vmatprep.mubr.f32.mxu0 0.0
        %1784 = vmatmul.mubr.f32.gmra.mrb[0].mxu0 %v1714
        %v1785 = vpop.f32.mrb[0].mxu0
        %v1786 = vadd.f32 %v493, %v1785
        %v1787 = vpop.f32.mrb[0].mxu0
        %1788 = vdwg.mxu0
        %v1790 = vsel %vm495, %v261, 0
        %v1793 = vsel %vm499, %v364, 0
        %1795 = vmatprep.subr.mxu0 0.0
        %1796 = vmatpush1.msra.mxu0 %v361
        %1797 = vmatprep.subr.mxu0 0.0
        %1798 = vmatpush1.msra.mxu0 %v362
        %1799 = vmatprep.subr.mxu0 0.0
        %1800 = vmatpush1.msra.mxu0 %v363
        %1801 = vmatprep.subr.mxu0 0.0
        %1802 = vmatpush1.msra.mxu0 %v1793
        %1803 = vmatprep.subr.mxu0 0.0
        %1804 = vmatpush1.msra.mxu0 0.0
        %1805 = vmatprep.subr.mxu0 0.0
        %1806 = vmatpush1.msra.mxu0 0.0
        %1807 = vmatprep.subr.mxu0 0.0
        %1808 = vmatpush1.msra.mxu0 0.0
        %1809 = vmatprep.subr.mxu0 0.0
        %1810 = vmatpush1.msra.mxu0 0.0
        %1811 = vmatprep.subr.mxu0 0.0
        %1812 = vmatpush1.msra.mxu0 0.0
        %1813 = vmatprep.subr.mxu0 0.0
        %1814 = vmatpush1.msra.mxu0 0.0
        %1815 = vmatprep.subr.mxu0 0.0
        %1816 = vmatpush1.msra.mxu0 0.0
        %1817 = vmatprep.subr.mxu0 0.0
        %1818 = vmatpush1.msra.mxu0 0.0
        %1819 = vmatprep.subr.mxu0 0.0
        %1820 = vmatpush1.msra.mxu0 0.0
        %1821 = vmatprep.subr.mxu0 0.0
        %1822 = vmatpush1.msra.mxu0 0.0
        %1823 = vmatprep.subr.mxu0 0.0
        %1824 = vmatpush1.msra.mxu0 0.0
        %1825 = vmatprep.subr.mxu0 0.0
        %1826 = vmatpush1.msra.mxu0 0.0
        %1827 = vmatprep.subr.mxu0 0.0
        %1828 = vmatpush1.msra.mxu0 0.0
        %1829 = vmatprep.subr.mxu0 0.0
        %1830 = vmatpush1.msra.mxu0 0.0
        %1831 = vmatprep.subr.mxu0 0.0
        %1832 = vmatpush1.msra.mxu0 0.0
        %1833 = vmatprep.subr.mxu0 0.0
        %1834 = vmatpush1.msra.mxu0 0.0
        %1835 = vmatprep.subr.mxu0 0.0
        %1836 = vmatpush1.msra.mxu0 0.0
        %1837 = vmatprep.subr.mxu0 0.0
        %1838 = vmatpush1.msra.mxu0 0.0
        %1839 = vmatprep.subr.mxu0 0.0
        %1840 = vmatpush1.msra.mxu0 0.0
        %1841 = vmatprep.subr.mxu0 0.0
        %1842 = vmatpush1.msra.mxu0 0.0
        %1843 = vmatprep.subr.mxu0 0.0
        %1844 = vmatpush1.msra.mxu0 0.0
        %1845 = vmatprep.subr.mxu0 0.0
        %1846 = vmatpush1.msra.mxu0 0.0
        %1847 = vmatprep.subr.mxu0 0.0
        %1848 = vmatpush1.msra.mxu0 0.0
        %1849 = vmatprep.subr.mxu0 0.0
        %1850 = vmatpush1.msra.mxu0 0.0
        %1851 = vmatprep.subr.mxu0 0.0
        %1852 = vmatpush1.msra.mxu0 0.0
        %1853 = vmatprep.subr.mxu0 0.0
        %1854 = vmatpush1.msra.mxu0 0.0
        %1855 = vmatprep.subr.mxu0 0.0
        %1856 = vmatpush1.msra.mxu0 0.0
        %1857 = vmatprep.subr.mxu0 0.0
        %1858 = vmatpush1.msra.mxu0 0.0
        %1859 = vmatprep.mubr.f32.mxu0 0.0
        %1860 = vmatmul.mubr.f32.gmra.mrb[0].mxu0 %v1790
        %v1861 = vpop.f32.mrb[0].mxu0
        %v1862 = vadd.f32 %v493, %v1861
        %v1863 = vpop.f32.mrb[0].mxu0
        %1864 = vdwg.mxu0
        %v1866 = vsel %vm495, %v262, 0
        %v1869 = vsel %vm499, %v368, 0
        %1871 = vmatprep.subr.mxu0 0.0
        %1872 = vmatpush1.msra.mxu0 %v365
        %1873 = vmatprep.subr.mxu0 0.0
        %1874 = vmatpush1.msra.mxu0 %v366
        %1875 = vmatprep.subr.mxu0 0.0
        %1876 = vmatpush1.msra.mxu0 %v367
        %1877 = vmatprep.subr.mxu0 0.0
        %1878 = vmatpush1.msra.mxu0 %v1869
        %1879 = vmatprep.subr.mxu0 0.0
        %1880 = vmatpush1.msra.mxu0 0.0
        %1881 = vmatprep.subr.mxu0 0.0
        %1882 = vmatpush1.msra.mxu0 0.0
        %1883 = vmatprep.subr.mxu0 0.0
        %1884 = vmatpush1.msra.mxu0 0.0
        %1885 = vmatprep.subr.mxu0 0.0
        %1886 = vmatpush1.msra.mxu0 0.0
        %1887 = vmatprep.subr.mxu0 0.0
        %1888 = vmatpush1.msra.mxu0 0.0
        %1889 = vmatprep.subr.mxu0 0.0
        %1890 = vmatpush1.msra.mxu0 0.0
        %1891 = vmatprep.subr.mxu0 0.0
        %1892 = vmatpush1.msra.mxu0 0.0
        %1893 = vmatprep.subr.mxu0 0.0
        %1894 = vmatpush1.msra.mxu0 0.0
        %1895 = vmatprep.subr.mxu0 0.0
        %1896 = vmatpush1.msra.mxu0 0.0
        %1897 = vmatprep.subr.mxu0 0.0
        %1898 = vmatpush1.msra.mxu0 0.0
        %1899 = vmatprep.subr.mxu0 0.0
        %1900 = vmatpush1.msra.mxu0 0.0
        %1901 = vmatprep.subr.mxu0 0.0
        %1902 = vmatpush1.msra.mxu0 0.0
        %1903 = vmatprep.subr.mxu0 0.0
        %1904 = vmatpush1.msra.mxu0 0.0
        %1905 = vmatprep.subr.mxu0 0.0
        %1906 = vmatpush1.msra.mxu0 0.0
        %1907 = vmatprep.subr.mxu0 0.0
        %1908 = vmatpush1.msra.mxu0 0.0
        %1909 = vmatprep.subr.mxu0 0.0
        %1910 = vmatpush1.msra.mxu0 0.0
        %1911 = vmatprep.subr.mxu0 0.0
        %1912 = vmatpush1.msra.mxu0 0.0
        %1913 = vmatprep.subr.mxu0 0.0
        %1914 = vmatpush1.msra.mxu0 0.0
        %1915 = vmatprep.subr.mxu0 0.0
        %1916 = vmatpush1.msra.mxu0 0.0
        %1917 = vmatprep.subr.mxu0 0.0
        %1918 = vmatpush1.msra.mxu0 0.0
        %1919 = vmatprep.subr.mxu0 0.0
        %1920 = vmatpush1.msra.mxu0 0.0
        %1921 = vmatprep.subr.mxu0 0.0
        %1922 = vmatpush1.msra.mxu0 0.0
        %1923 = vmatprep.subr.mxu0 0.0
        %1924 = vmatpush1.msra.mxu0 0.0
        %1925 = vmatprep.subr.mxu0 0.0
        %1926 = vmatpush1.msra.mxu0 0.0
        %1927 = vmatprep.subr.mxu0 0.0
        %1928 = vmatpush1.msra.mxu0 0.0
        %1929 = vmatprep.subr.mxu0 0.0
        %1930 = vmatpush1.msra.mxu0 0.0
        %1931 = vmatprep.subr.mxu0 0.0
        %1932 = vmatpush1.msra.mxu0 0.0
        %1933 = vmatprep.subr.mxu0 0.0
        %1934 = vmatpush1.msra.mxu0 0.0
        %1935 = vmatprep.mubr.f32.mxu0 0.0
        %1936 = vmatmul.mubr.f32.gmra.mrb[0].mxu0 %v1866
        %v1937 = vpop.f32.mrb[0].mxu0
        %v1938 = vadd.f32 %v493, %v1937
        %v1939 = vpop.f32.mrb[0].mxu0
        %1940 = vdwg.mxu0
        %v1942 = vsel %vm495, %v263, 0
        %v1945 = vsel %vm499, %v372, 0
        %1947 = vmatprep.subr.mxu0 0.0
        %1948 = vmatpush1.msra.mxu0 %v369
        %1949 = vmatprep.subr.mxu0 0.0
        %1950 = vmatpush1.msra.mxu0 %v370
        %1951 = vmatprep.subr.mxu0 0.0
        %1952 = vmatpush1.msra.mxu0 %v371
        %1953 = vmatprep.subr.mxu0 0.0
        %1954 = vmatpush1.msra.mxu0 %v1945
        %1955 = vmatprep.subr.mxu0 0.0
        %1956 = vmatpush1.msra.mxu0 0.0
        %1957 = vmatprep.subr.mxu0 0.0
        %1958 = vmatpush1.msra.mxu0 0.0
        %1959 = vmatprep.subr.mxu0 0.0
        %1960 = vmatpush1.msra.mxu0 0.0
        %1961 = vmatprep.subr.mxu0 0.0
        %1962 = vmatpush1.msra.mxu0 0.0
        %1963 = vmatprep.subr.mxu0 0.0
        %1964 = vmatpush1.msra.mxu0 0.0
        %1965 = vmatprep.subr.mxu0 0.0
        %1966 = vmatpush1.msra.mxu0 0.0
        %1967 = vmatprep.subr.mxu0 0.0
        %1968 = vmatpush1.msra.mxu0 0.0
        %1969 = vmatprep.subr.mxu0 0.0
        %1970 = vmatpush1.msra.mxu0 0.0
        %1971 = vmatprep.subr.mxu0 0.0
        %1972 = vmatpush1.msra.mxu0 0.0
        %1973 = vmatprep.subr.mxu0 0.0
        %1974 = vmatpush1.msra.mxu0 0.0
        %1975 = vmatprep.subr.mxu0 0.0
        %1976 = vmatpush1.msra.mxu0 0.0
        %1977 = vmatprep.subr.mxu0 0.0
        %1978 = vmatpush1.msra.mxu0 0.0
        %1979 = vmatprep.subr.mxu0 0.0
        %1980 = vmatpush1.msra.mxu0 0.0
        %1981 = vmatprep.subr.mxu0 0.0
        %1982 = vmatpush1.msra.mxu0 0.0
        %1983 = vmatprep.subr.mxu0 0.0
        %1984 = vmatpush1.msra.mxu0 0.0
        %1985 = vmatprep.subr.mxu0 0.0
        %1986 = vmatpush1.msra.mxu0 0.0
        %1987 = vmatprep.subr.mxu0 0.0
        %1988 = vmatpush1.msra.mxu0 0.0
        %1989 = vmatprep.subr.mxu0 0.0
        %1990 = vmatpush1.msra.mxu0 0.0
        %1991 = vmatprep.subr.mxu0 0.0
        %1992 = vmatpush1.msra.mxu0 0.0
        %1993 = vmatprep.subr.mxu0 0.0
        %1994 = vmatpush1.msra.mxu0 0.0
        %1995 = vmatprep.subr.mxu0 0.0
        %1996 = vmatpush1.msra.mxu0 0.0
        %1997 = vmatprep.subr.mxu0 0.0
        %1998 = vmatpush1.msra.mxu0 0.0
        %1999 = vmatprep.subr.mxu0 0.0
        %2000 = vmatpush1.msra.mxu0 0.0
        %2001 = vmatprep.subr.mxu0 0.0
        %2002 = vmatpush1.msra.mxu0 0.0
        %2003 = vmatprep.subr.mxu0 0.0
        %2004 = vmatpush1.msra.mxu0 0.0
        %2005 = vmatprep.subr.mxu0 0.0
        %2006 = vmatpush1.msra.mxu0 0.0
        %2007 = vmatprep.subr.mxu0 0.0
        %2008 = vmatpush1.msra.mxu0 0.0
        %2009 = vmatprep.subr.mxu0 0.0
        %2010 = vmatpush1.msra.mxu0 0.0
        %2011 = vmatprep.mubr.f32.mxu0 0.0
        %2012 = vmatmul.mubr.f32.gmra.mrb[0].mxu0 %v1942
        %v2013 = vpop.f32.mrb[0].mxu0
        %v2014 = vadd.f32 %v493, %v2013
        %v2015 = vpop.f32.mrb[0].mxu0
        %2016 = vdwg.mxu0
        %v2018 = vsel %vm495, %v264, 0
        %v2021 = vsel %vm499, %v376, 0
        %2023 = vmatprep.subr.mxu0 0.0
        %2024 = vmatpush1.msra.mxu0 %v373
        %2025 = vmatprep.subr.mxu0 0.0
        %2026 = vmatpush1.msra.mxu0 %v374
        %2027 = vmatprep.subr.mxu0 0.0
        %2028 = vmatpush1.msra.mxu0 %v375
        %2029 = vmatprep.subr.mxu0 0.0
        %2030 = vmatpush1.msra.mxu0 %v2021
        %2031 = vmatprep.subr.mxu0 0.0
        %2032 = vmatpush1.msra.mxu0 0.0
        %2033 = vmatprep.subr.mxu0 0.0
        %2034 = vmatpush1.msra.mxu0 0.0
        %2035 = vmatprep.subr.mxu0 0.0
        %2036 = vmatpush1.msra.mxu0 0.0
        %2037 = vmatprep.subr.mxu0 0.0
        %2038 = vmatpush1.msra.mxu0 0.0
        %2039 = vmatprep.subr.mxu0 0.0
        %2040 = vmatpush1.msra.mxu0 0.0
        %2041 = vmatprep.subr.mxu0 0.0
        %2042 = vmatpush1.msra.mxu0 0.0
        %2043 = vmatprep.subr.mxu0 0.0
        %2044 = vmatpush1.msra.mxu0 0.0
        %2045 = vmatprep.subr.mxu0 0.0
        %2046 = vmatpush1.msra.mxu0 0.0
        %2047 = vmatprep.subr.mxu0 0.0
        %2048 = vmatpush1.msra.mxu0 0.0
        %2049 = vmatprep.subr.mxu0 0.0
        %2050 = vmatpush1.msra.mxu0 0.0
        %2051 = vmatprep.subr.mxu0 0.0
        %2052 = vmatpush1.msra.mxu0 0.0
        %2053 = vmatprep.subr.mxu0 0.0
        %2054 = vmatpush1.msra.mxu0 0.0
        %2055 = vmatprep.subr.mxu0 0.0
        %2056 = vmatpush1.msra.mxu0 0.0
        %2057 = vmatprep.subr.mxu0 0.0
        %2058 = vmatpush1.msra.mxu0 0.0
        %2059 = vmatprep.subr.mxu0 0.0
        %2060 = vmatpush1.msra.mxu0 0.0
        %2061 = vmatprep.subr.mxu0 0.0
        %2062 = vmatpush1.msra.mxu0 0.0
        %2063 = vmatprep.subr.mxu0 0.0
        %2064 = vmatpush1.msra.mxu0 0.0
        %2065 = vmatprep.subr.mxu0 0.0
        %2066 = vmatpush1.msra.mxu0 0.0
        %2067 = vmatprep.subr.mxu0 0.0
        %2068 = vmatpush1.msra.mxu0 0.0
        %2069 = vmatprep.subr.mxu0 0.0
        %2070 = vmatpush1.msra.mxu0 0.0
        %2071 = vmatprep.subr.mxu0 0.0
        %2072 = vmatpush1.msra.mxu0 0.0
        %2073 = vmatprep.subr.mxu0 0.0
        %2074 = vmatpush1.msra.mxu0 0.0
        %2075 = vmatprep.subr.mxu0 0.0
        %2076 = vmatpush1.msra.mxu0 0.0
        %2077 = vmatprep.subr.mxu0 0.0
        %2078 = vmatpush1.msra.mxu0 0.0
        %2079 = vmatprep.subr.mxu0 0.0
        %2080 = vmatpush1.msra.mxu0 0.0
        %2081 = vmatprep.subr.mxu0 0.0
        %2082 = vmatpush1.msra.mxu0 0.0
        %2083 = vmatprep.subr.mxu0 0.0
        %2084 = vmatpush1.msra.mxu0 0.0
        %2085 = vmatprep.subr.mxu0 0.0
        %2086 = vmatpush1.msra.mxu0 0.0
        %2087 = vmatprep.mubr.f32.mxu0 0.0
        %2088 = vmatmul.mubr.f32.gmra.mrb[0].mxu0 %v2018
        %v2089 = vpop.f32.mrb[0].mxu0
        %v2090 = vadd.f32 %v493, %v2089
        %v2091 = vpop.f32.mrb[0].mxu0
        %2092 = vdwg.mxu0
        %v2094 = vsel %vm495, %v265, 0
        %v2097 = vsel %vm499, %v380, 0
        %2099 = vmatprep.subr.mxu0 0.0
        %2100 = vmatpush1.msra.mxu0 %v377
        %2101 = vmatprep.subr.mxu0 0.0
        %2102 = vmatpush1.msra.mxu0 %v378
        %2103 = vmatprep.subr.mxu0 0.0
        %2104 = vmatpush1.msra.mxu0 %v379
        %2105 = vmatprep.subr.mxu0 0.0
        %2106 = vmatpush1.msra.mxu0 %v2097
        %2107 = vmatprep.subr.mxu0 0.0
        %2108 = vmatpush1.msra.mxu0 0.0
        %2109 = vmatprep.subr.mxu0 0.0
        %2110 = vmatpush1.msra.mxu0 0.0
        %2111 = vmatprep.subr.mxu0 0.0
        %2112 = vmatpush1.msra.mxu0 0.0
        %2113 = vmatprep.subr.mxu0 0.0
        %2114 = vmatpush1.msra.mxu0 0.0
        %2115 = vmatprep.subr.mxu0 0.0
        %2116 = vmatpush1.msra.mxu0 0.0
        %2117 = vmatprep.subr.mxu0 0.0
        %2118 = vmatpush1.msra.mxu0 0.0
        %2119 = vmatprep.subr.mxu0 0.0
        %2120 = vmatpush1.msra.mxu0 0.0
        %2121 = vmatprep.subr.mxu0 0.0
        %2122 = vmatpush1.msra.mxu0 0.0
        %2123 = vmatprep.subr.mxu0 0.0
        %2124 = vmatpush1.msra.mxu0 0.0
        %2125 = vmatprep.subr.mxu0 0.0
        %2126 = vmatpush1.msra.mxu0 0.0
        %2127 = vmatprep.subr.mxu0 0.0
        %2128 = vmatpush1.msra.mxu0 0.0
        %2129 = vmatprep.subr.mxu0 0.0
        %2130 = vmatpush1.msra.mxu0 0.0
        %2131 = vmatprep.subr.mxu0 0.0
        %2132 = vmatpush1.msra.mxu0 0.0
        %2133 = vmatprep.subr.mxu0 0.0
        %2134 = vmatpush1.msra.mxu0 0.0
        %2135 = vmatprep.subr.mxu0 0.0
        %2136 = vmatpush1.msra.mxu0 0.0
        %2137 = vmatprep.subr.mxu0 0.0
        %2138 = vmatpush1.msra.mxu0 0.0
        %2139 = vmatprep.subr.mxu0 0.0
        %2140 = vmatpush1.msra.mxu0 0.0
        %2141 = vmatprep.subr.mxu0 0.0
        %2142 = vmatpush1.msra.mxu0 0.0
        %2143 = vmatprep.subr.mxu0 0.0
        %2144 = vmatpush1.msra.mxu0 0.0
        %2145 = vmatprep.subr.mxu0 0.0
        %2146 = vmatpush1.msra.mxu0 0.0
        %2147 = vmatprep.subr.mxu0 0.0
        %2148 = vmatpush1.msra.mxu0 0.0
        %2149 = vmatprep.subr.mxu0 0.0
        %2150 = vmatpush1.msra.mxu0 0.0
        %2151 = vmatprep.subr.mxu0 0.0
        %2152 = vmatpush1.msra.mxu0 0.0
        %2153 = vmatprep.subr.mxu0 0.0
        %2154 = vmatpush1.msra.mxu0 0.0
        %2155 = vmatprep.subr.mxu0 0.0
        %2156 = vmatpush1.msra.mxu0 0.0
        %2157 = vmatprep.subr.mxu0 0.0
        %2158 = vmatpush1.msra.mxu0 0.0
        %2159 = vmatprep.subr.mxu0 0.0
        %2160 = vmatpush1.msra.mxu0 0.0
        %2161 = vmatprep.subr.mxu0 0.0
        %2162 = vmatpush1.msra.mxu0 0.0
        %2163 = vmatprep.mubr.f32.mxu0 0.0
        %2164 = vmatmul.mubr.f32.gmra.mrb[0].mxu0 %v2094
        %v2165 = vpop.f32.mrb[0].mxu0
        %v2166 = vadd.f32 %v493, %v2165
        %v2167 = vpop.f32.mrb[0].mxu0
        %2168 = vdwg.mxu0
        %v2170 = vsel %vm495, %v266, 0
        %v2173 = vsel %vm499, %v384, 0
        %2175 = vmatprep.subr.mxu0 0.0
        %2176 = vmatpush1.msra.mxu0 %v381
        %2177 = vmatprep.subr.mxu0 0.0
        %2178 = vmatpush1.msra.mxu0 %v382
        %2179 = vmatprep.subr.mxu0 0.0
        %2180 = vmatpush1.msra.mxu0 %v383
        %2181 = vmatprep.subr.mxu0 0.0
        %2182 = vmatpush1.msra.mxu0 %v2173
        %2183 = vmatprep.subr.mxu0 0.0
        %2184 = vmatpush1.msra.mxu0 0.0
        %2185 = vmatprep.subr.mxu0 0.0
        %2186 = vmatpush1.msra.mxu0 0.0
        %2187 = vmatprep.subr.mxu0 0.0
        %2188 = vmatpush1.msra.mxu0 0.0
        %2189 = vmatprep.subr.mxu0 0.0
        %2190 = vmatpush1.msra.mxu0 0.0
        %2191 = vmatprep.subr.mxu0 0.0
        %2192 = vmatpush1.msra.mxu0 0.0
        %2193 = vmatprep.subr.mxu0 0.0
        %2194 = vmatpush1.msra.mxu0 0.0
        %2195 = vmatprep.subr.mxu0 0.0
        %2196 = vmatpush1.msra.mxu0 0.0
        %2197 = vmatprep.subr.mxu0 0.0
        %2198 = vmatpush1.msra.mxu0 0.0
        %2199 = vmatprep.subr.mxu0 0.0
        %2200 = vmatpush1.msra.mxu0 0.0
        %2201 = vmatprep.subr.mxu0 0.0
        %2202 = vmatpush1.msra.mxu0 0.0
        %2203 = vmatprep.subr.mxu0 0.0
        %2204 = vmatpush1.msra.mxu0 0.0
        %2205 = vmatprep.subr.mxu0 0.0
        %2206 = vmatpush1.msra.mxu0 0.0
        %2207 = vmatprep.subr.mxu0 0.0
        %2208 = vmatpush1.msra.mxu0 0.0
        %2209 = vmatprep.subr.mxu0 0.0
        %2210 = vmatpush1.msra.mxu0 0.0
        %2211 = vmatprep.subr.mxu0 0.0
        %2212 = vmatpush1.msra.mxu0 0.0
        %2213 = vmatprep.subr.mxu0 0.0
        %2214 = vmatpush1.msra.mxu0 0.0
        %2215 = vmatprep.subr.mxu0 0.0
        %2216 = vmatpush1.msra.mxu0 0.0
        %2217 = vmatprep.subr.mxu0 0.0
        %2218 = vmatpush1.msra.mxu0 0.0
        %2219 = vmatprep.subr.mxu0 0.0
        %2220 = vmatpush1.msra.mxu0 0.0
        %2221 = vmatprep.subr.mxu0 0.0
        %2222 = vmatpush1.msra.mxu0 0.0
        %2223 = vmatprep.subr.mxu0 0.0
        %2224 = vmatpush1.msra.mxu0 0.0
        %2225 = vmatprep.subr.mxu0 0.0
        %2226 = vmatpush1.msra.mxu0 0.0
        %2227 = vmatprep.subr.mxu0 0.0
        %2228 = vmatpush1.msra.mxu0 0.0
        %2229 = vmatprep.subr.mxu0 0.0
        %2230 = vmatpush1.msra.mxu0 0.0
        %2231 = vmatprep.subr.mxu0 0.0
        %2232 = vmatpush1.msra.mxu0 0.0
        %2233 = vmatprep.subr.mxu0 0.0
        %2234 = vmatpush1.msra.mxu0 0.0
        %2235 = vmatprep.subr.mxu0 0.0
        %2236 = vmatpush1.msra.mxu0 0.0
        %2237 = vmatprep.subr.mxu0 0.0
        %2238 = vmatpush1.msra.mxu0 0.0
        %2239 = vmatprep.mubr.f32.mxu0 0.0
        %2240 = vmatmul.mubr.f32.gmra.mrb[0].mxu0 %v2170
        %v2241 = vpop.f32.mrb[0].mxu0
        %v2242 = vadd.f32 %v493, %v2241
        %v2243 = vpop.f32.mrb[0].mxu0
        %2244 = vdwg.mxu0
        %v2246 = vsel %vm495, %v267, 0
        %v2249 = vsel %vm499, %v388, 0
        %2251 = vmatprep.subr.mxu0 0.0
        %2252 = vmatpush1.msra.mxu0 %v385
        %2253 = vmatprep.subr.mxu0 0.0
        %2254 = vmatpush1.msra.mxu0 %v386
        %2255 = vmatprep.subr.mxu0 0.0
        %2256 = vmatpush1.msra.mxu0 %v387
        %2257 = vmatprep.subr.mxu0 0.0
        %2258 = vmatpush1.msra.mxu0 %v2249
        %2259 = vmatprep.subr.mxu0 0.0
        %2260 = vmatpush1.msra.mxu0 0.0
        %2261 = vmatprep.subr.mxu0 0.0
        %2262 = vmatpush1.msra.mxu0 0.0
        %2263 = vmatprep.subr.mxu0 0.0
        %2264 = vmatpush1.msra.mxu0 0.0
        %2265 = vmatprep.subr.mxu0 0.0
        %2266 = vmatpush1.msra.mxu0 0.0
        %2267 = vmatprep.subr.mxu0 0.0
        %2268 = vmatpush1.msra.mxu0 0.0
        %2269 = vmatprep.subr.mxu0 0.0
        %2270 = vmatpush1.msra.mxu0 0.0
        %2271 = vmatprep.subr.mxu0 0.0
        %2272 = vmatpush1.msra.mxu0 0.0
        %2273 = vmatprep.subr.mxu0 0.0
        %2274 = vmatpush1.msra.mxu0 0.0
        %2275 = vmatprep.subr.mxu0 0.0
        %2276 = vmatpush1.msra.mxu0 0.0
        %2277 = vmatprep.subr.mxu0 0.0
        %2278 = vmatpush1.msra.mxu0 0.0
        %2279 = vmatprep.subr.mxu0 0.0
        %2280 = vmatpush1.msra.mxu0 0.0
        %2281 = vmatprep.subr.mxu0 0.0
        %2282 = vmatpush1.msra.mxu0 0.0
        %2283 = vmatprep.subr.mxu0 0.0
        %2284 = vmatpush1.msra.mxu0 0.0
        %2285 = vmatprep.subr.mxu0 0.0
        %2286 = vmatpush1.msra.mxu0 0.0
        %2287 = vmatprep.subr.mxu0 0.0
        %2288 = vmatpush1.msra.mxu0 0.0
        %2289 = vmatprep.subr.mxu0 0.0
        %2290 = vmatpush1.msra.mxu0 0.0
        %2291 = vmatprep.subr.mxu0 0.0
        %2292 = vmatpush1.msra.mxu0 0.0
        %2293 = vmatprep.subr.mxu0 0.0
        %2294 = vmatpush1.msra.mxu0 0.0
        %2295 = vmatprep.subr.mxu0 0.0
        %2296 = vmatpush1.msra.mxu0 0.0
        %2297 = vmatprep.subr.mxu0 0.0
        %2298 = vmatpush1.msra.mxu0 0.0
        %2299 = vmatprep.subr.mxu0 0.0
        %2300 = vmatpush1.msra.mxu0 0.0
        %2301 = vmatprep.subr.mxu0 0.0
        %2302 = vmatpush1.msra.mxu0 0.0
        %2303 = vmatprep.subr.mxu0 0.0
        %2304 = vmatpush1.msra.mxu0 0.0
        %2305 = vmatprep.subr.mxu0 0.0
        %2306 = vmatpush1.msra.mxu0 0.0
        %2307 = vmatprep.subr.mxu0 0.0
        %2308 = vmatpush1.msra.mxu0 0.0
        %2309 = vmatprep.subr.mxu0 0.0
        %2310 = vmatpush1.msra.mxu0 0.0
        %2311 = vmatprep.subr.mxu0 0.0
        %2312 = vmatpush1.msra.mxu0 0.0
        %2313 = vmatprep.subr.mxu0 0.0
        %2314 = vmatpush1.msra.mxu0 0.0
        %2315 = vmatprep.mubr.f32.mxu0 0.0
        %2316 = vmatmul.mubr.f32.gmra.mrb[0].mxu0 %v2246
        %v2317 = vpop.f32.mrb[0].mxu0
        %v2318 = vadd.f32 %v493, %v2317
        %v2319 = vpop.f32.mrb[0].mxu0
        %2320 = vdwg.mxu0
        %v2322 = vsel %vm495, %v268, 0
        %v2325 = vsel %vm499, %v392, 0
        %2327 = vmatprep.subr.mxu0 0.0
        %2328 = vmatpush1.msra.mxu0 %v389
        %2329 = vmatprep.subr.mxu0 0.0
        %2330 = vmatpush1.msra.mxu0 %v390
        %2331 = vmatprep.subr.mxu0 0.0
        %2332 = vmatpush1.msra.mxu0 %v391
        %2333 = vmatprep.subr.mxu0 0.0
        %2334 = vmatpush1.msra.mxu0 %v2325
        %2335 = vmatprep.subr.mxu0 0.0
        %2336 = vmatpush1.msra.mxu0 0.0
        %2337 = vmatprep.subr.mxu0 0.0
        %2338 = vmatpush1.msra.mxu0 0.0
        %2339 = vmatprep.subr.mxu0 0.0
        %2340 = vmatpush1.msra.mxu0 0.0
        %2341 = vmatprep.subr.mxu0 0.0
        %2342 = vmatpush1.msra.mxu0 0.0
        %2343 = vmatprep.subr.mxu0 0.0
        %2344 = vmatpush1.msra.mxu0 0.0
        %2345 = vmatprep.subr.mxu0 0.0
        %2346 = vmatpush1.msra.mxu0 0.0
        %2347 = vmatprep.subr.mxu0 0.0
        %2348 = vmatpush1.msra.mxu0 0.0
        %2349 = vmatprep.subr.mxu0 0.0
        %2350 = vmatpush1.msra.mxu0 0.0
        %2351 = vmatprep.subr.mxu0 0.0
        %2352 = vmatpush1.msra.mxu0 0.0
        %2353 = vmatprep.subr.mxu0 0.0
        %2354 = vmatpush1.msra.mxu0 0.0
        %2355 = vmatprep.subr.mxu0 0.0
        %2356 = vmatpush1.msra.mxu0 0.0
        %2357 = vmatprep.subr.mxu0 0.0
        %2358 = vmatpush1.msra.mxu0 0.0
        %2359 = vmatprep.subr.mxu0 0.0
        %2360 = vmatpush1.msra.mxu0 0.0
        %2361 = vmatprep.subr.mxu0 0.0
        %2362 = vmatpush1.msra.mxu0 0.0
        %2363 = vmatprep.subr.mxu0 0.0
        %2364 = vmatpush1.msra.mxu0 0.0
        %2365 = vmatprep.subr.mxu0 0.0
        %2366 = vmatpush1.msra.mxu0 0.0
        %2367 = vmatprep.subr.mxu0 0.0
        %2368 = vmatpush1.msra.mxu0 0.0
        %2369 = vmatprep.subr.mxu0 0.0
        %2370 = vmatpush1.msra.mxu0 0.0
        %2371 = vmatprep.subr.mxu0 0.0
        %2372 = vmatpush1.msra.mxu0 0.0
        %2373 = vmatprep.subr.mxu0 0.0
        %2374 = vmatpush1.msra.mxu0 0.0
        %2375 = vmatprep.subr.mxu0 0.0
        %2376 = vmatpush1.msra.mxu0 0.0
        %2377 = vmatprep.subr.mxu0 0.0
        %2378 = vmatpush1.msra.mxu0 0.0
        %2379 = vmatprep.subr.mxu0 0.0
        %2380 = vmatpush1.msra.mxu0 0.0
        %2381 = vmatprep.subr.mxu0 0.0
        %2382 = vmatpush1.msra.mxu0 0.0
        %2383 = vmatprep.subr.mxu0 0.0
        %2384 = vmatpush1.msra.mxu0 0.0
        %2385 = vmatprep.subr.mxu0 0.0
        %2386 = vmatpush1.msra.mxu0 0.0
        %2387 = vmatprep.subr.mxu0 0.0
        %2388 = vmatpush1.msra.mxu0 0.0
        %2389 = vmatprep.subr.mxu0 0.0
        %2390 = vmatpush1.msra.mxu0 0.0
        %2391 = vmatprep.mubr.f32.mxu0 0.0
        %2392 = vmatmul.mubr.f32.gmra.mrb[0].mxu0 %v2322
        %v2393 = vpop.f32.mrb[0].mxu0
        %v2394 = vadd.f32 %v493, %v2393
        %v2395 = vpop.f32.mrb[0].mxu0
        %2396 = vdwg.mxu0
        %v2398 = vsel %vm495, %v269, 0
        %v2401 = vsel %vm499, %v396, 0
        %2403 = vmatprep.subr.mxu0 0.0
        %2404 = vmatpush1.msra.mxu0 %v393
        %2405 = vmatprep.subr.mxu0 0.0
        %2406 = vmatpush1.msra.mxu0 %v394
        %2407 = vmatprep.subr.mxu0 0.0
        %2408 = vmatpush1.msra.mxu0 %v395
        %2409 = vmatprep.subr.mxu0 0.0
        %2410 = vmatpush1.msra.mxu0 %v2401
        %2411 = vmatprep.subr.mxu0 0.0
        %2412 = vmatpush1.msra.mxu0 0.0
        %2413 = vmatprep.subr.mxu0 0.0
        %2414 = vmatpush1.msra.mxu0 0.0
        %2415 = vmatprep.subr.mxu0 0.0
        %2416 = vmatpush1.msra.mxu0 0.0
        %2417 = vmatprep.subr.mxu0 0.0
        %2418 = vmatpush1.msra.mxu0 0.0
        %2419 = vmatprep.subr.mxu0 0.0
        %2420 = vmatpush1.msra.mxu0 0.0
        %2421 = vmatprep.subr.mxu0 0.0
        %2422 = vmatpush1.msra.mxu0 0.0
        %2423 = vmatprep.subr.mxu0 0.0
        %2424 = vmatpush1.msra.mxu0 0.0
        %2425 = vmatprep.subr.mxu0 0.0
        %2426 = vmatpush1.msra.mxu0 0.0
        %2427 = vmatprep.subr.mxu0 0.0
        %2428 = vmatpush1.msra.mxu0 0.0
        %2429 = vmatprep.subr.mxu0 0.0
        %2430 = vmatpush1.msra.mxu0 0.0
        %2431 = vmatprep.subr.mxu0 0.0
        %2432 = vmatpush1.msra.mxu0 0.0
        %2433 = vmatprep.subr.mxu0 0.0
        %2434 = vmatpush1.msra.mxu0 0.0
        %2435 = vmatprep.subr.mxu0 0.0
        %2436 = vmatpush1.msra.mxu0 0.0
        %2437 = vmatprep.subr.mxu0 0.0
        %2438 = vmatpush1.msra.mxu0 0.0
        %2439 = vmatprep.subr.mxu0 0.0
        %2440 = vmatpush1.msra.mxu0 0.0
        %2441 = vmatprep.subr.mxu0 0.0
        %2442 = vmatpush1.msra.mxu0 0.0
        %2443 = vmatprep.subr.mxu0 0.0
        %2444 = vmatpush1.msra.mxu0 0.0
        %2445 = vmatprep.subr.mxu0 0.0
        %2446 = vmatpush1.msra.mxu0 0.0
        %2447 = vmatprep.subr.mxu0 0.0
        %2448 = vmatpush1.msra.mxu0 0.0
        %2449 = vmatprep.subr.mxu0 0.0
        %2450 = vmatpush1.msra.mxu0 0.0
        %2451 = vmatprep.subr.mxu0 0.0
        %2452 = vmatpush1.msra.mxu0 0.0
        %2453 = vmatprep.subr.mxu0 0.0
        %2454 = vmatpush1.msra.mxu0 0.0
        %2455 = vmatprep.subr.mxu0 0.0
        %2456 = vmatpush1.msra.mxu0 0.0
        %2457 = vmatprep.subr.mxu0 0.0
        %2458 = vmatpush1.msra.mxu0 0.0
        %2459 = vmatprep.subr.mxu0 0.0
        %2460 = vmatpush1.msra.mxu0 0.0
        %2461 = vmatprep.subr.mxu0 0.0
        %2462 = vmatpush1.msra.mxu0 0.0
        %2463 = vmatprep.subr.mxu0 0.0
        %2464 = vmatpush1.msra.mxu0 0.0
        %2465 = vmatprep.subr.mxu0 0.0
        %2466 = vmatpush1.msra.mxu0 0.0
        %2467 = vmatprep.mubr.f32.mxu0 0.0
        %2468 = vmatmul.mubr.f32.gmra.mrb[0].mxu0 %v2398
        %v2469 = vpop.f32.mrb[0].mxu0
        %v2470 = vadd.f32 %v493, %v2469
        %v2471 = vpop.f32.mrb[0].mxu0
        %2472 = vdwg.mxu0
        %v2474 = vsel %vm495, %v270, 0
        %v2477 = vsel %vm499, %v400, 0
        %2479 = vmatprep.subr.mxu0 0.0
        %2480 = vmatpush1.msra.mxu0 %v397
        %2481 = vmatprep.subr.mxu0 0.0
        %2482 = vmatpush1.msra.mxu0 %v398
        %2483 = vmatprep.subr.mxu0 0.0
        %2484 = vmatpush1.msra.mxu0 %v399
        %2485 = vmatprep.subr.mxu0 0.0
        %2486 = vmatpush1.msra.mxu0 %v2477
        %2487 = vmatprep.subr.mxu0 0.0
        %2488 = vmatpush1.msra.mxu0 0.0
        %2489 = vmatprep.subr.mxu0 0.0
        %2490 = vmatpush1.msra.mxu0 0.0
        %2491 = vmatprep.subr.mxu0 0.0
        %2492 = vmatpush1.msra.mxu0 0.0
        %2493 = vmatprep.subr.mxu0 0.0
        %2494 = vmatpush1.msra.mxu0 0.0
        %2495 = vmatprep.subr.mxu0 0.0
        %2496 = vmatpush1.msra.mxu0 0.0
        %2497 = vmatprep.subr.mxu0 0.0
        %2498 = vmatpush1.msra.mxu0 0.0
        %2499 = vmatprep.subr.mxu0 0.0
        %2500 = vmatpush1.msra.mxu0 0.0
        %2501 = vmatprep.subr.mxu0 0.0
        %2502 = vmatpush1.msra.mxu0 0.0
        %2503 = vmatprep.subr.mxu0 0.0
        %2504 = vmatpush1.msra.mxu0 0.0
        %2505 = vmatprep.subr.mxu0 0.0
        %2506 = vmatpush1.msra.mxu0 0.0
        %2507 = vmatprep.subr.mxu0 0.0
        %2508 = vmatpush1.msra.mxu0 0.0
        %2509 = vmatprep.subr.mxu0 0.0
        %2510 = vmatpush1.msra.mxu0 0.0
        %2511 = vmatprep.subr.mxu0 0.0
        %2512 = vmatpush1.msra.mxu0 0.0
        %2513 = vmatprep.subr.mxu0 0.0
        %2514 = vmatpush1.msra.mxu0 0.0
        %2515 = vmatprep.subr.mxu0 0.0
        %2516 = vmatpush1.msra.mxu0 0.0
        %2517 = vmatprep.subr.mxu0 0.0
        %2518 = vmatpush1.msra.mxu0 0.0
        %2519 = vmatprep.subr.mxu0 0.0
        %2520 = vmatpush1.msra.mxu0 0.0
        %2521 = vmatprep.subr.mxu0 0.0
        %2522 = vmatpush1.msra.mxu0 0.0
        %2523 = vmatprep.subr.mxu0 0.0
        %2524 = vmatpush1.msra.mxu0 0.0
        %2525 = vmatprep.subr.mxu0 0.0
        %2526 = vmatpush1.msra.mxu0 0.0
        %2527 = vmatprep.subr.mxu0 0.0
        %2528 = vmatpush1.msra.mxu0 0.0
        %2529 = vmatprep.subr.mxu0 0.0
        %2530 = vmatpush1.msra.mxu0 0.0
        %2531 = vmatprep.subr.mxu0 0.0
        %2532 = vmatpush1.msra.mxu0 0.0
        %2533 = vmatprep.subr.mxu0 0.0
        %2534 = vmatpush1.msra.mxu0 0.0
        %2535 = vmatprep.subr.mxu0 0.0
        %2536 = vmatpush1.msra.mxu0 0.0
        %2537 = vmatprep.subr.mxu0 0.0
        %2538 = vmatpush1.msra.mxu0 0.0
        %2539 = vmatprep.subr.mxu0 0.0
        %2540 = vmatpush1.msra.mxu0 0.0
        %2541 = vmatprep.subr.mxu0 0.0
        %2542 = vmatpush1.msra.mxu0 0.0
        %2543 = vmatprep.mubr.f32.mxu0 0.0
        %2544 = vmatmul.mubr.f32.gmra.mrb[0].mxu0 %v2474
        %v2545 = vpop.f32.mrb[0].mxu0
        %v2546 = vadd.f32 %v493, %v2545
        %v2547 = vpop.f32.mrb[0].mxu0
        %2548 = vdwg.mxu0
        %v2550 = vsel %vm495, %v271, 0
        %v2553 = vsel %vm499, %v404, 0
        %2555 = vmatprep.subr.mxu0 0.0
        %2556 = vmatpush1.msra.mxu0 %v401
        %2557 = vmatprep.subr.mxu0 0.0
        %2558 = vmatpush1.msra.mxu0 %v402
        %2559 = vmatprep.subr.mxu0 0.0
        %2560 = vmatpush1.msra.mxu0 %v403
        %2561 = vmatprep.subr.mxu0 0.0
        %2562 = vmatpush1.msra.mxu0 %v2553
        %2563 = vmatprep.subr.mxu0 0.0
        %2564 = vmatpush1.msra.mxu0 0.0
        %2565 = vmatprep.subr.mxu0 0.0
        %2566 = vmatpush1.msra.mxu0 0.0
        %2567 = vmatprep.subr.mxu0 0.0
        %2568 = vmatpush1.msra.mxu0 0.0
        %2569 = vmatprep.subr.mxu0 0.0
        %2570 = vmatpush1.msra.mxu0 0.0
        %2571 = vmatprep.subr.mxu0 0.0
        %2572 = vmatpush1.msra.mxu0 0.0
        %2573 = vmatprep.subr.mxu0 0.0
        %2574 = vmatpush1.msra.mxu0 0.0
        %2575 = vmatprep.subr.mxu0 0.0
        %2576 = vmatpush1.msra.mxu0 0.0
        %2577 = vmatprep.subr.mxu0 0.0
        %2578 = vmatpush1.msra.mxu0 0.0
        %2579 = vmatprep.subr.mxu0 0.0
        %2580 = vmatpush1.msra.mxu0 0.0
        %2581 = vmatprep.subr.mxu0 0.0
        %2582 = vmatpush1.msra.mxu0 0.0
        %2583 = vmatprep.subr.mxu0 0.0
        %2584 = vmatpush1.msra.mxu0 0.0
        %2585 = vmatprep.subr.mxu0 0.0
        %2586 = vmatpush1.msra.mxu0 0.0
        %2587 = vmatprep.subr.mxu0 0.0
        %2588 = vmatpush1.msra.mxu0 0.0
        %2589 = vmatprep.subr.mxu0 0.0
        %2590 = vmatpush1.msra.mxu0 0.0
        %2591 = vmatprep.subr.mxu0 0.0
        %2592 = vmatpush1.msra.mxu0 0.0
        %2593 = vmatprep.subr.mxu0 0.0
        %2594 = vmatpush1.msra.mxu0 0.0
        %2595 = vmatprep.subr.mxu0 0.0
        %2596 = vmatpush1.msra.mxu0 0.0
        %2597 = vmatprep.subr.mxu0 0.0
        %2598 = vmatpush1.msra.mxu0 0.0
        %2599 = vmatprep.subr.mxu0 0.0
        %2600 = vmatpush1.msra.mxu0 0.0
        %2601 = vmatprep.subr.mxu0 0.0
        %2602 = vmatpush1.msra.mxu0 0.0
        %2603 = vmatprep.subr.mxu0 0.0
        %2604 = vmatpush1.msra.mxu0 0.0
        %2605 = vmatprep.subr.mxu0 0.0
        %2606 = vmatpush1.msra.mxu0 0.0
        %2607 = vmatprep.subr.mxu0 0.0
        %2608 = vmatpush1.msra.mxu0 0.0
        %2609 = vmatprep.subr.mxu0 0.0
        %2610 = vmatpush1.msra.mxu0 0.0
        %2611 = vmatprep.subr.mxu0 0.0
        %2612 = vmatpush1.msra.mxu0 0.0
        %2613 = vmatprep.subr.mxu0 0.0
        %2614 = vmatpush1.msra.mxu0 0.0
        %2615 = vmatprep.subr.mxu0 0.0
        %2616 = vmatpush1.msra.mxu0 0.0
        %2617 = vmatprep.subr.mxu0 0.0
        %2618 = vmatpush1.msra.mxu0 0.0
        %2619 = vmatprep.mubr.f32.mxu0 0.0
        %2620 = vmatmul.mubr.f32.gmra.mrb[0].mxu0 %v2550
        %v2621 = vpop.f32.mrb[0].mxu0
        %v2622 = vadd.f32 %v493, %v2621
        %v2623 = vpop.f32.mrb[0].mxu0
        %2624 = vdwg.mxu0
        %v2626 = vsel %vm495, %v272, 0
        %v2629 = vsel %vm499, %v408, 0
        %2631 = vmatprep.subr.mxu0 0.0
        %2632 = vmatpush1.msra.mxu0 %v405
        %2633 = vmatprep.subr.mxu0 0.0
        %2634 = vmatpush1.msra.mxu0 %v406
        %2635 = vmatprep.subr.mxu0 0.0
        %2636 = vmatpush1.msra.mxu0 %v407
        %2637 = vmatprep.subr.mxu0 0.0
        %2638 = vmatpush1.msra.mxu0 %v2629
        %2639 = vmatprep.subr.mxu0 0.0
        %2640 = vmatpush1.msra.mxu0 0.0
        %2641 = vmatprep.subr.mxu0 0.0
        %2642 = vmatpush1.msra.mxu0 0.0
        %2643 = vmatprep.subr.mxu0 0.0
        %2644 = vmatpush1.msra.mxu0 0.0
        %2645 = vmatprep.subr.mxu0 0.0
        %2646 = vmatpush1.msra.mxu0 0.0
        %2647 = vmatprep.subr.mxu0 0.0
        %2648 = vmatpush1.msra.mxu0 0.0
        %2649 = vmatprep.subr.mxu0 0.0
        %2650 = vmatpush1.msra.mxu0 0.0
        %2651 = vmatprep.subr.mxu0 0.0
        %2652 = vmatpush1.msra.mxu0 0.0
        %2653 = vmatprep.subr.mxu0 0.0
        %2654 = vmatpush1.msra.mxu0 0.0
        %2655 = vmatprep.subr.mxu0 0.0
        %2656 = vmatpush1.msra.mxu0 0.0
        %2657 = vmatprep.subr.mxu0 0.0
        %2658 = vmatpush1.msra.mxu0 0.0
        %2659 = vmatprep.subr.mxu0 0.0
        %2660 = vmatpush1.msra.mxu0 0.0
        %2661 = vmatprep.subr.mxu0 0.0
        %2662 = vmatpush1.msra.mxu0 0.0
        %2663 = vmatprep.subr.mxu0 0.0
        %2664 = vmatpush1.msra.mxu0 0.0
        %2665 = vmatprep.subr.mxu0 0.0
        %2666 = vmatpush1.msra.mxu0 0.0
        %2667 = vmatprep.subr.mxu0 0.0
        %2668 = vmatpush1.msra.mxu0 0.0
        %2669 = vmatprep.subr.mxu0 0.0
        %2670 = vmatpush1.msra.mxu0 0.0
        %2671 = vmatprep.subr.mxu0 0.0
        %2672 = vmatpush1.msra.mxu0 0.0
        %2673 = vmatprep.subr.mxu0 0.0
        %2674 = vmatpush1.msra.mxu0 0.0
        %2675 = vmatprep.subr.mxu0 0.0
        %2676 = vmatpush1.msra.mxu0 0.0
        %2677 = vmatprep.subr.mxu0 0.0
        %2678 = vmatpush1.msra.mxu0 0.0
        %2679 = vmatprep.subr.mxu0 0.0
        %2680 = vmatpush1.msra.mxu0 0.0
        %2681 = vmatprep.subr.mxu0 0.0
        %2682 = vmatpush1.msra.mxu0 0.0
        %2683 = vmatprep.subr.mxu0 0.0
        %2684 = vmatpush1.msra.mxu0 0.0
        %2685 = vmatprep.subr.mxu0 0.0
        %2686 = vmatpush1.msra.mxu0 0.0
        %2687 = vmatprep.subr.mxu0 0.0
        %2688 = vmatpush1.msra.mxu0 0.0
        %2689 = vmatprep.subr.mxu0 0.0
        %2690 = vmatpush1.msra.mxu0 0.0
        %2691 = vmatprep.subr.mxu0 0.0
        %2692 = vmatpush1.msra.mxu0 0.0
        %2693 = vmatprep.subr.mxu0 0.0
        %2694 = vmatpush1.msra.mxu0 0.0
        %2695 = vmatprep.mubr.f32.mxu0 0.0
        %2696 = vmatmul.mubr.f32.gmra.mrb[0].mxu0 %v2626
        %v2697 = vpop.f32.mrb[0].mxu0
        %v2698 = vadd.f32 %v493, %v2697
        %v2699 = vpop.f32.mrb[0].mxu0
        %2700 = vdwg.mxu0
        %v2702 = vsel %vm495, %v273, 0
        %v2705 = vsel %vm499, %v412, 0
        %2707 = vmatprep.subr.mxu0 0.0
        %2708 = vmatpush1.msra.mxu0 %v409
        %2709 = vmatprep.subr.mxu0 0.0
        %2710 = vmatpush1.msra.mxu0 %v410
        %2711 = vmatprep.subr.mxu0 0.0
        %2712 = vmatpush1.msra.mxu0 %v411
        %2713 = vmatprep.subr.mxu0 0.0
        %2714 = vmatpush1.msra.mxu0 %v2705
        %2715 = vmatprep.subr.mxu0 0.0
        %2716 = vmatpush1.msra.mxu0 0.0
        %2717 = vmatprep.subr.mxu0 0.0
        %2718 = vmatpush1.msra.mxu0 0.0
        %2719 = vmatprep.subr.mxu0 0.0
        %2720 = vmatpush1.msra.mxu0 0.0
        %2721 = vmatprep.subr.mxu0 0.0
        %2722 = vmatpush1.msra.mxu0 0.0
        %2723 = vmatprep.subr.mxu0 0.0
        %2724 = vmatpush1.msra.mxu0 0.0
        %2725 = vmatprep.subr.mxu0 0.0
        %2726 = vmatpush1.msra.mxu0 0.0
        %2727 = vmatprep.subr.mxu0 0.0
        %2728 = vmatpush1.msra.mxu0 0.0
        %2729 = vmatprep.subr.mxu0 0.0
        %2730 = vmatpush1.msra.mxu0 0.0
        %2731 = vmatprep.subr.mxu0 0.0
        %2732 = vmatpush1.msra.mxu0 0.0
        %2733 = vmatprep.subr.mxu0 0.0
        %2734 = vmatpush1.msra.mxu0 0.0
        %2735 = vmatprep.subr.mxu0 0.0
        %2736 = vmatpush1.msra.mxu0 0.0
        %2737 = vmatprep.subr.mxu0 0.0
        %2738 = vmatpush1.msra.mxu0 0.0
        %2739 = vmatprep.subr.mxu0 0.0
        %2740 = vmatpush1.msra.mxu0 0.0
        %2741 = vmatprep.subr.mxu0 0.0
        %2742 = vmatpush1.msra.mxu0 0.0
        %2743 = vmatprep.subr.mxu0 0.0
        %2744 = vmatpush1.msra.mxu0 0.0
        %2745 = vmatprep.subr.mxu0 0.0
        %2746 = vmatpush1.msra.mxu0 0.0
        %2747 = vmatprep.subr.mxu0 0.0
        %2748 = vmatpush1.msra.mxu0 0.0
        %2749 = vmatprep.subr.mxu0 0.0
        %2750 = vmatpush1.msra.mxu0 0.0
        %2751 = vmatprep.subr.mxu0 0.0
        %2752 = vmatpush1.msra.mxu0 0.0
        %2753 = vmatprep.subr.mxu0 0.0
        %2754 = vmatpush1.msra.mxu0 0.0
        %2755 = vmatprep.subr.mxu0 0.0
        %2756 = vmatpush1.msra.mxu0 0.0
        %2757 = vmatprep.subr.mxu0 0.0
        %2758 = vmatpush1.msra.mxu0 0.0
        %2759 = vmatprep.subr.mxu0 0.0
        %2760 = vmatpush1.msra.mxu0 0.0
        %2761 = vmatprep.subr.mxu0 0.0
        %2762 = vmatpush1.msra.mxu0 0.0
        %2763 = vmatprep.subr.mxu0 0.0
        %2764 = vmatpush1.msra.mxu0 0.0
        %2765 = vmatprep.subr.mxu0 0.0
        %2766 = vmatpush1.msra.mxu0 0.0
        %2767 = vmatprep.subr.mxu0 0.0
        %2768 = vmatpush1.msra.mxu0 0.0
        %2769 = vmatprep.subr.mxu0 0.0
        %2770 = vmatpush1.msra.mxu0 0.0
        %2771 = vmatprep.mubr.f32.mxu0 0.0
        %2772 = vmatmul.mubr.f32.gmra.mrb[0].mxu0 %v2702
        %v2773 = vpop.f32.mrb[0].mxu0
        %v2774 = vadd.f32 %v493, %v2773
        %v2775 = vpop.f32.mrb[0].mxu0
        %2776 = vdwg.mxu0
        %v2778 = vsel %vm495, %v274, 0
        %v2781 = vsel %vm499, %v416, 0
        %2783 = vmatprep.subr.mxu0 0.0
        %2784 = vmatpush1.msra.mxu0 %v413
        %2785 = vmatprep.subr.mxu0 0.0
        %2786 = vmatpush1.msra.mxu0 %v414
        %2787 = vmatprep.subr.mxu0 0.0
        %2788 = vmatpush1.msra.mxu0 %v415
        %2789 = vmatprep.subr.mxu0 0.0
        %2790 = vmatpush1.msra.mxu0 %v2781
        %2791 = vmatprep.subr.mxu0 0.0
        %2792 = vmatpush1.msra.mxu0 0.0
        %2793 = vmatprep.subr.mxu0 0.0
        %2794 = vmatpush1.msra.mxu0 0.0
        %2795 = vmatprep.subr.mxu0 0.0
        %2796 = vmatpush1.msra.mxu0 0.0
        %2797 = vmatprep.subr.mxu0 0.0
        %2798 = vmatpush1.msra.mxu0 0.0
        %2799 = vmatprep.subr.mxu0 0.0
        %2800 = vmatpush1.msra.mxu0 0.0
        %2801 = vmatprep.subr.mxu0 0.0
        %2802 = vmatpush1.msra.mxu0 0.0
        %2803 = vmatprep.subr.mxu0 0.0
        %2804 = vmatpush1.msra.mxu0 0.0
        %2805 = vmatprep.subr.mxu0 0.0
        %2806 = vmatpush1.msra.mxu0 0.0
        %2807 = vmatprep.subr.mxu0 0.0
        %2808 = vmatpush1.msra.mxu0 0.0
        %2809 = vmatprep.subr.mxu0 0.0
        %2810 = vmatpush1.msra.mxu0 0.0
        %2811 = vmatprep.subr.mxu0 0.0
        %2812 = vmatpush1.msra.mxu0 0.0
        %2813 = vmatprep.subr.mxu0 0.0
        %2814 = vmatpush1.msra.mxu0 0.0
        %2815 = vmatprep.subr.mxu0 0.0
        %2816 = vmatpush1.msra.mxu0 0.0
        %2817 = vmatprep.subr.mxu0 0.0
        %2818 = vmatpush1.msra.mxu0 0.0
        %2819 = vmatprep.subr.mxu0 0.0
        %2820 = vmatpush1.msra.mxu0 0.0
        %2821 = vmatprep.subr.mxu0 0.0
        %2822 = vmatpush1.msra.mxu0 0.0
        %2823 = vmatprep.subr.mxu0 0.0
        %2824 = vmatpush1.msra.mxu0 0.0
        %2825 = vmatprep.subr.mxu0 0.0
        %2826 = vmatpush1.msra.mxu0 0.0
        %2827 = vmatprep.subr.mxu0 0.0
        %2828 = vmatpush1.msra.mxu0 0.0
        %2829 = vmatprep.subr.mxu0 0.0
        %2830 = vmatpush1.msra.mxu0 0.0
        %2831 = vmatprep.subr.mxu0 0.0
        %2832 = vmatpush1.msra.mxu0 0.0
        %2833 = vmatprep.subr.mxu0 0.0
        %2834 = vmatpush1.msra.mxu0 0.0
        %2835 = vmatprep.subr.mxu0 0.0
        %2836 = vmatpush1.msra.mxu0 0.0
        %2837 = vmatprep.subr.mxu0 0.0
        %2838 = vmatpush1.msra.mxu0 0.0
        %2839 = vmatprep.subr.mxu0 0.0
        %2840 = vmatpush1.msra.mxu0 0.0
        %2841 = vmatprep.subr.mxu0 0.0
        %2842 = vmatpush1.msra.mxu0 0.0
        %2843 = vmatprep.subr.mxu0 0.0
        %2844 = vmatpush1.msra.mxu0 0.0
        %2845 = vmatprep.subr.mxu0 0.0
        %2846 = vmatpush1.msra.mxu0 0.0
        %2847 = vmatprep.mubr.f32.mxu0 0.0
        %2848 = vmatmul.mubr.f32.gmra.mrb[0].mxu0 %v2778
        %v2849 = vpop.f32.mrb[0].mxu0
        %v2850 = vadd.f32 %v493, %v2849
        %v2851 = vpop.f32.mrb[0].mxu0
        %2852 = vdwg.mxu0
        %v2854 = vsel %vm495, %v275, 0
        %v2857 = vsel %vm499, %v420, 0
        %2859 = vmatprep.subr.mxu0 0.0
        %2860 = vmatpush1.msra.mxu0 %v417
        %2861 = vmatprep.subr.mxu0 0.0
        %2862 = vmatpush1.msra.mxu0 %v418
        %2863 = vmatprep.subr.mxu0 0.0
        %2864 = vmatpush1.msra.mxu0 %v419
        %2865 = vmatprep.subr.mxu0 0.0
        %2866 = vmatpush1.msra.mxu0 %v2857
        %2867 = vmatprep.subr.mxu0 0.0
        %2868 = vmatpush1.msra.mxu0 0.0
        %2869 = vmatprep.subr.mxu0 0.0
        %2870 = vmatpush1.msra.mxu0 0.0
        %2871 = vmatprep.subr.mxu0 0.0
        %2872 = vmatpush1.msra.mxu0 0.0
        %2873 = vmatprep.subr.mxu0 0.0
        %2874 = vmatpush1.msra.mxu0 0.0
        %2875 = vmatprep.subr.mxu0 0.0
        %2876 = vmatpush1.msra.mxu0 0.0
        %2877 = vmatprep.subr.mxu0 0.0
        %2878 = vmatpush1.msra.mxu0 0.0
        %2879 = vmatprep.subr.mxu0 0.0
        %2880 = vmatpush1.msra.mxu0 0.0
        %2881 = vmatprep.subr.mxu0 0.0
        %2882 = vmatpush1.msra.mxu0 0.0
        %2883 = vmatprep.subr.mxu0 0.0
        %2884 = vmatpush1.msra.mxu0 0.0
        %2885 = vmatprep.subr.mxu0 0.0
        %2886 = vmatpush1.msra.mxu0 0.0
        %2887 = vmatprep.subr.mxu0 0.0
        %2888 = vmatpush1.msra.mxu0 0.0
        %2889 = vmatprep.subr.mxu0 0.0
        %2890 = vmatpush1.msra.mxu0 0.0
        %2891 = vmatprep.subr.mxu0 0.0
        %2892 = vmatpush1.msra.mxu0 0.0
        %2893 = vmatprep.subr.mxu0 0.0
        %2894 = vmatpush1.msra.mxu0 0.0
        %2895 = vmatprep.subr.mxu0 0.0
        %2896 = vmatpush1.msra.mxu0 0.0
        %2897 = vmatprep.subr.mxu0 0.0
        %2898 = vmatpush1.msra.mxu0 0.0
        %2899 = vmatprep.subr.mxu0 0.0
        %2900 = vmatpush1.msra.mxu0 0.0
        %2901 = vmatprep.subr.mxu0 0.0
        %2902 = vmatpush1.msra.mxu0 0.0
        %2903 = vmatprep.subr.mxu0 0.0
        %2904 = vmatpush1.msra.mxu0 0.0
        %2905 = vmatprep.subr.mxu0 0.0
        %2906 = vmatpush1.msra.mxu0 0.0
        %2907 = vmatprep.subr.mxu0 0.0
        %2908 = vmatpush1.msra.mxu0 0.0
        %2909 = vmatprep.subr.mxu0 0.0
        %2910 = vmatpush1.msra.mxu0 0.0
        %2911 = vmatprep.subr.mxu0 0.0
        %2912 = vmatpush1.msra.mxu0 0.0
        %2913 = vmatprep.subr.mxu0 0.0
        %2914 = vmatpush1.msra.mxu0 0.0
        %2915 = vmatprep.subr.mxu0 0.0
        %2916 = vmatpush1.msra.mxu0 0.0
        %2917 = vmatprep.subr.mxu0 0.0
        %2918 = vmatpush1.msra.mxu0 0.0
        %2919 = vmatprep.subr.mxu0 0.0
        %2920 = vmatpush1.msra.mxu0 0.0
        %2921 = vmatprep.subr.mxu0 0.0
        %2922 = vmatpush1.msra.mxu0 0.0
        %2923 = vmatprep.mubr.f32.mxu0 0.0
        %2924 = vmatmul.mubr.f32.gmra.mrb[0].mxu0 %v2854
        %v2925 = vpop.f32.mrb[0].mxu0
        %v2926 = vadd.f32 %v493, %v2925
        %v2927 = vpop.f32.mrb[0].mxu0
        %2928 = vdwg.mxu0
        %v2930 = vsel %vm495, %v276, 0
        %v2933 = vsel %vm499, %v424, 0
        %2935 = vmatprep.subr.mxu0 0.0
        %2936 = vmatpush1.msra.mxu0 %v421
        %2937 = vmatprep.subr.mxu0 0.0
        %2938 = vmatpush1.msra.mxu0 %v422
        %2939 = vmatprep.subr.mxu0 0.0
        %2940 = vmatpush1.msra.mxu0 %v423
        %2941 = vmatprep.subr.mxu0 0.0
        %2942 = vmatpush1.msra.mxu0 %v2933
        %2943 = vmatprep.subr.mxu0 0.0
        %2944 = vmatpush1.msra.mxu0 0.0
        %2945 = vmatprep.subr.mxu0 0.0
        %2946 = vmatpush1.msra.mxu0 0.0
        %2947 = vmatprep.subr.mxu0 0.0
        %2948 = vmatpush1.msra.mxu0 0.0
        %2949 = vmatprep.subr.mxu0 0.0
        %2950 = vmatpush1.msra.mxu0 0.0
        %2951 = vmatprep.subr.mxu0 0.0
        %2952 = vmatpush1.msra.mxu0 0.0
        %2953 = vmatprep.subr.mxu0 0.0
        %2954 = vmatpush1.msra.mxu0 0.0
        %2955 = vmatprep.subr.mxu0 0.0
        %2956 = vmatpush1.msra.mxu0 0.0
        %2957 = vmatprep.subr.mxu0 0.0
        %2958 = vmatpush1.msra.mxu0 0.0
        %2959 = vmatprep.subr.mxu0 0.0
        %2960 = vmatpush1.msra.mxu0 0.0
        %2961 = vmatprep.subr.mxu0 0.0
        %2962 = vmatpush1.msra.mxu0 0.0
        %2963 = vmatprep.subr.mxu0 0.0
        %2964 = vmatpush1.msra.mxu0 0.0
        %2965 = vmatprep.subr.mxu0 0.0
        %2966 = vmatpush1.msra.mxu0 0.0
        %2967 = vmatprep.subr.mxu0 0.0
        %2968 = vmatpush1.msra.mxu0 0.0
        %2969 = vmatprep.subr.mxu0 0.0
        %2970 = vmatpush1.msra.mxu0 0.0
        %2971 = vmatprep.subr.mxu0 0.0
        %2972 = vmatpush1.msra.mxu0 0.0
        %2973 = vmatprep.subr.mxu0 0.0
        %2974 = vmatpush1.msra.mxu0 0.0
        %2975 = vmatprep.subr.mxu0 0.0
        %2976 = vmatpush1.msra.mxu0 0.0
        %2977 = vmatprep.subr.mxu0 0.0
        %2978 = vmatpush1.msra.mxu0 0.0
        %2979 = vmatprep.subr.mxu0 0.0
        %2980 = vmatpush1.msra.mxu0 0.0
        %2981 = vmatprep.subr.mxu0 0.0
        %2982 = vmatpush1.msra.mxu0 0.0
        %2983 = vmatprep.subr.mxu0 0.0
        %2984 = vmatpush1.msra.mxu0 0.0
        %2985 = vmatprep.subr.mxu0 0.0
        %2986 = vmatpush1.msra.mxu0 0.0
        %2987 = vmatprep.subr.mxu0 0.0
        %2988 = vmatpush1.msra.mxu0 0.0
        %2989 = vmatprep.subr.mxu0 0.0
        %2990 = vmatpush1.msra.mxu0 0.0
        %2991 = vmatprep.subr.mxu0 0.0
        %2992 = vmatpush1.msra.mxu0 0.0
        %2993 = vmatprep.subr.mxu0 0.0
        %2994 = vmatpush1.msra.mxu0 0.0
        %2995 = vmatprep.subr.mxu0 0.0
        %2996 = vmatpush1.msra.mxu0 0.0
        %2997 = vmatprep.subr.mxu0 0.0
        %2998 = vmatpush1.msra.mxu0 0.0
        %2999 = vmatprep.mubr.f32.mxu0 0.0
        %3000 = vmatmul.mubr.f32.gmra.mrb[0].mxu0 %v2930
        %v3001 = vpop.f32.mrb[0].mxu0
        %v3002 = vadd.f32 %v493, %v3001
        %v3003 = vpop.f32.mrb[0].mxu0
        %3004 = vdwg.mxu0
        %v3006 = vsel %vm495, %v277, 0
        %v3009 = vsel %vm499, %v428, 0
        %3011 = vmatprep.subr.mxu0 0.0
        %3012 = vmatpush1.msra.mxu0 %v425
        %3013 = vmatprep.subr.mxu0 0.0
        %3014 = vmatpush1.msra.mxu0 %v426
        %3015 = vmatprep.subr.mxu0 0.0
        %3016 = vmatpush1.msra.mxu0 %v427
        %3017 = vmatprep.subr.mxu0 0.0
        %3018 = vmatpush1.msra.mxu0 %v3009
        %3019 = vmatprep.subr.mxu0 0.0
        %3020 = vmatpush1.msra.mxu0 0.0
        %3021 = vmatprep.subr.mxu0 0.0
        %3022 = vmatpush1.msra.mxu0 0.0
        %3023 = vmatprep.subr.mxu0 0.0
        %3024 = vmatpush1.msra.mxu0 0.0
        %3025 = vmatprep.subr.mxu0 0.0
        %3026 = vmatpush1.msra.mxu0 0.0
        %3027 = vmatprep.subr.mxu0 0.0
        %3028 = vmatpush1.msra.mxu0 0.0
        %3029 = vmatprep.subr.mxu0 0.0
        %3030 = vmatpush1.msra.mxu0 0.0
        %3031 = vmatprep.subr.mxu0 0.0
        %3032 = vmatpush1.msra.mxu0 0.0
        %3033 = vmatprep.subr.mxu0 0.0
        %3034 = vmatpush1.msra.mxu0 0.0
        %3035 = vmatprep.subr.mxu0 0.0
        %3036 = vmatpush1.msra.mxu0 0.0
        %3037 = vmatprep.subr.mxu0 0.0
        %3038 = vmatpush1.msra.mxu0 0.0
        %3039 = vmatprep.subr.mxu0 0.0
        %3040 = vmatpush1.msra.mxu0 0.0
        %3041 = vmatprep.subr.mxu0 0.0
        %3042 = vmatpush1.msra.mxu0 0.0
        %3043 = vmatprep.subr.mxu0 0.0
        %3044 = vmatpush1.msra.mxu0 0.0
        %3045 = vmatprep.subr.mxu0 0.0
        %3046 = vmatpush1.msra.mxu0 0.0
        %3047 = vmatprep.subr.mxu0 0.0
        %3048 = vmatpush1.msra.mxu0 0.0
        %3049 = vmatprep.subr.mxu0 0.0
        %3050 = vmatpush1.msra.mxu0 0.0
        %3051 = vmatprep.subr.mxu0 0.0
        %3052 = vmatpush1.msra.mxu0 0.0
        %3053 = vmatprep.subr.mxu0 0.0
        %3054 = vmatpush1.msra.mxu0 0.0
        %3055 = vmatprep.subr.mxu0 0.0
        %3056 = vmatpush1.msra.mxu0 0.0
        %3057 = vmatprep.subr.mxu0 0.0
        %3058 = vmatpush1.msra.mxu0 0.0
        %3059 = vmatprep.subr.mxu0 0.0
        %3060 = vmatpush1.msra.mxu0 0.0
        %3061 = vmatprep.subr.mxu0 0.0
        %3062 = vmatpush1.msra.mxu0 0.0
        %3063 = vmatprep.subr.mxu0 0.0
        %3064 = vmatpush1.msra.mxu0 0.0
        %3065 = vmatprep.subr.mxu0 0.0
        %3066 = vmatpush1.msra.mxu0 0.0
        %3067 = vmatprep.subr.mxu0 0.0
        %3068 = vmatpush1.msra.mxu0 0.0
        %3069 = vmatprep.subr.mxu0 0.0
        %3070 = vmatpush1.msra.mxu0 0.0
        %3071 = vmatprep.subr.mxu0 0.0
        %3072 = vmatpush1.msra.mxu0 0.0
        %3073 = vmatprep.subr.mxu0 0.0
        %3074 = vmatpush1.msra.mxu0 0.0
        %3075 = vmatprep.mubr.f32.mxu0 0.0
        %3076 = vmatmul.mubr.f32.gmra.mrb[0].mxu0 %v3006
        %v3077 = vpop.f32.mrb[0].mxu0
        %v3078 = vadd.f32 %v493, %v3077
        %v3079 = vpop.f32.mrb[0].mxu0
        %3080 = vdwg.mxu0
        %v3082 = vsel %vm495, %v278, 0
        %v3085 = vsel %vm499, %v432, 0
        %3087 = vmatprep.subr.mxu0 0.0
        %3088 = vmatpush1.msra.mxu0 %v429
        %3089 = vmatprep.subr.mxu0 0.0
        %3090 = vmatpush1.msra.mxu0 %v430
        %3091 = vmatprep.subr.mxu0 0.0
        %3092 = vmatpush1.msra.mxu0 %v431
        %3093 = vmatprep.subr.mxu0 0.0
        %3094 = vmatpush1.msra.mxu0 %v3085
        %3095 = vmatprep.subr.mxu0 0.0
        %3096 = vmatpush1.msra.mxu0 0.0
        %3097 = vmatprep.subr.mxu0 0.0
        %3098 = vmatpush1.msra.mxu0 0.0
        %3099 = vmatprep.subr.mxu0 0.0
        %3100 = vmatpush1.msra.mxu0 0.0
        %3101 = vmatprep.subr.mxu0 0.0
        %3102 = vmatpush1.msra.mxu0 0.0
        %3103 = vmatprep.subr.mxu0 0.0
        %3104 = vmatpush1.msra.mxu0 0.0
        %3105 = vmatprep.subr.mxu0 0.0
        %3106 = vmatpush1.msra.mxu0 0.0
        %3107 = vmatprep.subr.mxu0 0.0
        %3108 = vmatpush1.msra.mxu0 0.0
        %3109 = vmatprep.subr.mxu0 0.0
        %3110 = vmatpush1.msra.mxu0 0.0
        %3111 = vmatprep.subr.mxu0 0.0
        %3112 = vmatpush1.msra.mxu0 0.0
        %3113 = vmatprep.subr.mxu0 0.0
        %3114 = vmatpush1.msra.mxu0 0.0
        %3115 = vmatprep.subr.mxu0 0.0
        %3116 = vmatpush1.msra.mxu0 0.0
        %3117 = vmatprep.subr.mxu0 0.0
        %3118 = vmatpush1.msra.mxu0 0.0
        %3119 = vmatprep.subr.mxu0 0.0
        %3120 = vmatpush1.msra.mxu0 0.0
        %3121 = vmatprep.subr.mxu0 0.0
        %3122 = vmatpush1.msra.mxu0 0.0
        %3123 = vmatprep.subr.mxu0 0.0
        %3124 = vmatpush1.msra.mxu0 0.0
        %3125 = vmatprep.subr.mxu0 0.0
        %3126 = vmatpush1.msra.mxu0 0.0
        %3127 = vmatprep.subr.mxu0 0.0
        %3128 = vmatpush1.msra.mxu0 0.0
        %3129 = vmatprep.subr.mxu0 0.0
        %3130 = vmatpush1.msra.mxu0 0.0
        %3131 = vmatprep.subr.mxu0 0.0
        %3132 = vmatpush1.msra.mxu0 0.0
        %3133 = vmatprep.subr.mxu0 0.0
        %3134 = vmatpush1.msra.mxu0 0.0
        %3135 = vmatprep.subr.mxu0 0.0
        %3136 = vmatpush1.msra.mxu0 0.0
        %3137 = vmatprep.subr.mxu0 0.0
        %3138 = vmatpush1.msra.mxu0 0.0
        %3139 = vmatprep.subr.mxu0 0.0
        %3140 = vmatpush1.msra.mxu0 0.0
        %3141 = vmatprep.subr.mxu0 0.0
        %3142 = vmatpush1.msra.mxu0 0.0
        %3143 = vmatprep.subr.mxu0 0.0
        %3144 = vmatpush1.msra.mxu0 0.0
        %3145 = vmatprep.subr.mxu0 0.0
        %3146 = vmatpush1.msra.mxu0 0.0
        %3147 = vmatprep.subr.mxu0 0.0
        %3148 = vmatpush1.msra.mxu0 0.0
        %3149 = vmatprep.subr.mxu0 0.0
        %3150 = vmatpush1.msra.mxu0 0.0
        %3151 = vmatprep.mubr.f32.mxu0 0.0
        %3152 = vmatmul.mubr.f32.gmra.mrb[0].mxu0 %v3082
        %v3153 = vpop.f32.mrb[0].mxu0
        %v3154 = vadd.f32 %v493, %v3153
        %v3155 = vpop.f32.mrb[0].mxu0
        %3156 = vdwg.mxu0
        %v3158 = vsel %vm495, %v279, 0
        %v3161 = vsel %vm499, %v436, 0
        %3163 = vmatprep.subr.mxu0 0.0
        %3164 = vmatpush1.msra.mxu0 %v433
        %3165 = vmatprep.subr.mxu0 0.0
        %3166 = vmatpush1.msra.mxu0 %v434
        %3167 = vmatprep.subr.mxu0 0.0
        %3168 = vmatpush1.msra.mxu0 %v435
        %3169 = vmatprep.subr.mxu0 0.0
        %3170 = vmatpush1.msra.mxu0 %v3161
        %3171 = vmatprep.subr.mxu0 0.0
        %3172 = vmatpush1.msra.mxu0 0.0
        %3173 = vmatprep.subr.mxu0 0.0
        %3174 = vmatpush1.msra.mxu0 0.0
        %3175 = vmatprep.subr.mxu0 0.0
        %3176 = vmatpush1.msra.mxu0 0.0
        %3177 = vmatprep.subr.mxu0 0.0
        %3178 = vmatpush1.msra.mxu0 0.0
        %3179 = vmatprep.subr.mxu0 0.0
        %3180 = vmatpush1.msra.mxu0 0.0
        %3181 = vmatprep.subr.mxu0 0.0
        %3182 = vmatpush1.msra.mxu0 0.0
        %3183 = vmatprep.subr.mxu0 0.0
        %3184 = vmatpush1.msra.mxu0 0.0
        %3185 = vmatprep.subr.mxu0 0.0
        %3186 = vmatpush1.msra.mxu0 0.0
        %3187 = vmatprep.subr.mxu0 0.0
        %3188 = vmatpush1.msra.mxu0 0.0
        %3189 = vmatprep.subr.mxu0 0.0
        %3190 = vmatpush1.msra.mxu0 0.0
        %3191 = vmatprep.subr.mxu0 0.0
        %3192 = vmatpush1.msra.mxu0 0.0
        %3193 = vmatprep.subr.mxu0 0.0
        %3194 = vmatpush1.msra.mxu0 0.0
        %3195 = vmatprep.subr.mxu0 0.0
        %3196 = vmatpush1.msra.mxu0 0.0
        %3197 = vmatprep.subr.mxu0 0.0
        %3198 = vmatpush1.msra.mxu0 0.0
        %3199 = vmatprep.subr.mxu0 0.0
        %3200 = vmatpush1.msra.mxu0 0.0
        %3201 = vmatprep.subr.mxu0 0.0
        %3202 = vmatpush1.msra.mxu0 0.0
        %3203 = vmatprep.subr.mxu0 0.0
        %3204 = vmatpush1.msra.mxu0 0.0
        %3205 = vmatprep.subr.mxu0 0.0
        %3206 = vmatpush1.msra.mxu0 0.0
        %3207 = vmatprep.subr.mxu0 0.0
        %3208 = vmatpush1.msra.mxu0 0.0
        %3209 = vmatprep.subr.mxu0 0.0
        %3210 = vmatpush1.msra.mxu0 0.0
        %3211 = vmatprep.subr.mxu0 0.0
        %3212 = vmatpush1.msra.mxu0 0.0
        %3213 = vmatprep.subr.mxu0 0.0
        %3214 = vmatpush1.msra.mxu0 0.0
        %3215 = vmatprep.subr.mxu0 0.0
        %3216 = vmatpush1.msra.mxu0 0.0
        %3217 = vmatprep.subr.mxu0 0.0
        %3218 = vmatpush1.msra.mxu0 0.0
        %3219 = vmatprep.subr.mxu0 0.0
        %3220 = vmatpush1.msra.mxu0 0.0
        %3221 = vmatprep.subr.mxu0 0.0
        %3222 = vmatpush1.msra.mxu0 0.0
        %3223 = vmatprep.subr.mxu0 0.0
        %3224 = vmatpush1.msra.mxu0 0.0
        %3225 = vmatprep.subr.mxu0 0.0
        %3226 = vmatpush1.msra.mxu0 0.0
        %3227 = vmatprep.mubr.f32.mxu0 0.0
        %3228 = vmatmul.mubr.f32.gmra.mrb[0].mxu0 %v3158
        %v3229 = vpop.f32.mrb[0].mxu0
        %v3230 = vadd.f32 %v493, %v3229
        %v3231 = vpop.f32.mrb[0].mxu0
        %3232 = vdwg.mxu0
        %v3234 = vsel %vm495, %v280, 0
        %v3237 = vsel %vm499, %v440, 0
        %3239 = vmatprep.subr.mxu0 0.0
        %3240 = vmatpush1.msra.mxu0 %v437
        %3241 = vmatprep.subr.mxu0 0.0
        %3242 = vmatpush1.msra.mxu0 %v438
        %3243 = vmatprep.subr.mxu0 0.0
        %3244 = vmatpush1.msra.mxu0 %v439
        %3245 = vmatprep.subr.mxu0 0.0
        %3246 = vmatpush1.msra.mxu0 %v3237
        %3247 = vmatprep.subr.mxu0 0.0
        %3248 = vmatpush1.msra.mxu0 0.0
        %3249 = vmatprep.subr.mxu0 0.0
        %3250 = vmatpush1.msra.mxu0 0.0
        %3251 = vmatprep.subr.mxu0 0.0
        %3252 = vmatpush1.msra.mxu0 0.0
        %3253 = vmatprep.subr.mxu0 0.0
        %3254 = vmatpush1.msra.mxu0 0.0
        %3255 = vmatprep.subr.mxu0 0.0
        %3256 = vmatpush1.msra.mxu0 0.0
        %3257 = vmatprep.subr.mxu0 0.0
        %3258 = vmatpush1.msra.mxu0 0.0
        %3259 = vmatprep.subr.mxu0 0.0
        %3260 = vmatpush1.msra.mxu0 0.0
        %3261 = vmatprep.subr.mxu0 0.0
        %3262 = vmatpush1.msra.mxu0 0.0
        %3263 = vmatprep.subr.mxu0 0.0
        %3264 = vmatpush1.msra.mxu0 0.0
        %3265 = vmatprep.subr.mxu0 0.0
        %3266 = vmatpush1.msra.mxu0 0.0
        %3267 = vmatprep.subr.mxu0 0.0
        %3268 = vmatpush1.msra.mxu0 0.0
        %3269 = vmatprep.subr.mxu0 0.0
        %3270 = vmatpush1.msra.mxu0 0.0
        %3271 = vmatprep.subr.mxu0 0.0
        %3272 = vmatpush1.msra.mxu0 0.0
        %3273 = vmatprep.subr.mxu0 0.0
        %3274 = vmatpush1.msra.mxu0 0.0
        %3275 = vmatprep.subr.mxu0 0.0
        %3276 = vmatpush1.msra.mxu0 0.0
        %3277 = vmatprep.subr.mxu0 0.0
        %3278 = vmatpush1.msra.mxu0 0.0
        %3279 = vmatprep.subr.mxu0 0.0
        %3280 = vmatpush1.msra.mxu0 0.0
        %3281 = vmatprep.subr.mxu0 0.0
        %3282 = vmatpush1.msra.mxu0 0.0
        %3283 = vmatprep.subr.mxu0 0.0
        %3284 = vmatpush1.msra.mxu0 0.0
        %3285 = vmatprep.subr.mxu0 0.0
        %3286 = vmatpush1.msra.mxu0 0.0
        %3287 = vmatprep.subr.mxu0 0.0
        %3288 = vmatpush1.msra.mxu0 0.0
        %3289 = vmatprep.subr.mxu0 0.0
        %3290 = vmatpush1.msra.mxu0 0.0
        %3291 = vmatprep.subr.mxu0 0.0
        %3292 = vmatpush1.msra.mxu0 0.0
        %3293 = vmatprep.subr.mxu0 0.0
        %3294 = vmatpush1.msra.mxu0 0.0
        %3295 = vmatprep.subr.mxu0 0.0
        %3296 = vmatpush1.msra.mxu0 0.0
        %3297 = vmatprep.subr.mxu0 0.0
        %3298 = vmatpush1.msra.mxu0 0.0
        %3299 = vmatprep.subr.mxu0 0.0
        %3300 = vmatpush1.msra.mxu0 0.0
        %3301 = vmatprep.subr.mxu0 0.0
        %3302 = vmatpush1.msra.mxu0 0.0
        %3303 = vmatprep.mubr.f32.mxu0 0.0
        %3304 = vmatmul.mubr.f32.gmra.mrb[0].mxu0 %v3234
        %v3305 = vpop.f32.mrb[0].mxu0
        %v3306 = vadd.f32 %v493, %v3305
        %v3307 = vpop.f32.mrb[0].mxu0
        %3308 = vdwg.mxu0
        %v3310 = vsel %vm495, %v281, 0
        %v3313 = vsel %vm499, %v444, 0
        %3315 = vmatprep.subr.mxu0 0.0
        %3316 = vmatpush1.msra.mxu0 %v441
        %3317 = vmatprep.subr.mxu0 0.0
        %3318 = vmatpush1.msra.mxu0 %v442
        %3319 = vmatprep.subr.mxu0 0.0
        %3320 = vmatpush1.msra.mxu0 %v443
        %3321 = vmatprep.subr.mxu0 0.0
        %3322 = vmatpush1.msra.mxu0 %v3313
        %3323 = vmatprep.subr.mxu0 0.0
        %3324 = vmatpush1.msra.mxu0 0.0
        %3325 = vmatprep.subr.mxu0 0.0
        %3326 = vmatpush1.msra.mxu0 0.0
        %3327 = vmatprep.subr.mxu0 0.0
        %3328 = vmatpush1.msra.mxu0 0.0
        %3329 = vmatprep.subr.mxu0 0.0
        %3330 = vmatpush1.msra.mxu0 0.0
        %3331 = vmatprep.subr.mxu0 0.0
        %3332 = vmatpush1.msra.mxu0 0.0
        %3333 = vmatprep.subr.mxu0 0.0
        %3334 = vmatpush1.msra.mxu0 0.0
        %3335 = vmatprep.subr.mxu0 0.0
        %3336 = vmatpush1.msra.mxu0 0.0
        %3337 = vmatprep.subr.mxu0 0.0
        %3338 = vmatpush1.msra.mxu0 0.0
        %3339 = vmatprep.subr.mxu0 0.0
        %3340 = vmatpush1.msra.mxu0 0.0
        %3341 = vmatprep.subr.mxu0 0.0
        %3342 = vmatpush1.msra.mxu0 0.0
        %3343 = vmatprep.subr.mxu0 0.0
        %3344 = vmatpush1.msra.mxu0 0.0
        %3345 = vmatprep.subr.mxu0 0.0
        %3346 = vmatpush1.msra.mxu0 0.0
        %3347 = vmatprep.subr.mxu0 0.0
        %3348 = vmatpush1.msra.mxu0 0.0
        %3349 = vmatprep.subr.mxu0 0.0
        %3350 = vmatpush1.msra.mxu0 0.0
        %3351 = vmatprep.subr.mxu0 0.0
        %3352 = vmatpush1.msra.mxu0 0.0
        %3353 = vmatprep.subr.mxu0 0.0
        %3354 = vmatpush1.msra.mxu0 0.0
        %3355 = vmatprep.subr.mxu0 0.0
        %3356 = vmatpush1.msra.mxu0 0.0
        %3357 = vmatprep.subr.mxu0 0.0
        %3358 = vmatpush1.msra.mxu0 0.0
        %3359 = vmatprep.subr.mxu0 0.0
        %3360 = vmatpush1.msra.mxu0 0.0
        %3361 = vmatprep.subr.mxu0 0.0
        %3362 = vmatpush1.msra.mxu0 0.0
        %3363 = vmatprep.subr.mxu0 0.0
        %3364 = vmatpush1.msra.mxu0 0.0
        %3365 = vmatprep.subr.mxu0 0.0
        %3366 = vmatpush1.msra.mxu0 0.0
        %3367 = vmatprep.subr.mxu0 0.0
        %3368 = vmatpush1.msra.mxu0 0.0
        %3369 = vmatprep.subr.mxu0 0.0
        %3370 = vmatpush1.msra.mxu0 0.0
        %3371 = vmatprep.subr.mxu0 0.0
        %3372 = vmatpush1.msra.mxu0 0.0
        %3373 = vmatprep.subr.mxu0 0.0
        %3374 = vmatpush1.msra.mxu0 0.0
        %3375 = vmatprep.subr.mxu0 0.0
        %3376 = vmatpush1.msra.mxu0 0.0
        %3377 = vmatprep.subr.mxu0 0.0
        %3378 = vmatpush1.msra.mxu0 0.0
        %3379 = vmatprep.mubr.f32.mxu0 0.0
        %3380 = vmatmul.mubr.f32.gmra.mrb[0].mxu0 %v3310
        %v3381 = vpop.f32.mrb[0].mxu0
        %v3382 = vadd.f32 %v493, %v3381
        %v3383 = vpop.f32.mrb[0].mxu0
        %3384 = vdwg.mxu0
        %v3386 = vsel %vm495, %v282, 0
        %v3389 = vsel %vm499, %v448, 0
        %3391 = vmatprep.subr.mxu0 0.0
        %3392 = vmatpush1.msra.mxu0 %v445
        %3393 = vmatprep.subr.mxu0 0.0
        %3394 = vmatpush1.msra.mxu0 %v446
        %3395 = vmatprep.subr.mxu0 0.0
        %3396 = vmatpush1.msra.mxu0 %v447
        %3397 = vmatprep.subr.mxu0 0.0
        %3398 = vmatpush1.msra.mxu0 %v3389
        %3399 = vmatprep.subr.mxu0 0.0
        %3400 = vmatpush1.msra.mxu0 0.0
        %3401 = vmatprep.subr.mxu0 0.0
        %3402 = vmatpush1.msra.mxu0 0.0
        %3403 = vmatprep.subr.mxu0 0.0
        %3404 = vmatpush1.msra.mxu0 0.0
        %3405 = vmatprep.subr.mxu0 0.0
        %3406 = vmatpush1.msra.mxu0 0.0
        %3407 = vmatprep.subr.mxu0 0.0
        %3408 = vmatpush1.msra.mxu0 0.0
        %3409 = vmatprep.subr.mxu0 0.0
        %3410 = vmatpush1.msra.mxu0 0.0
        %3411 = vmatprep.subr.mxu0 0.0
        %3412 = vmatpush1.msra.mxu0 0.0
        %3413 = vmatprep.subr.mxu0 0.0
        %3414 = vmatpush1.msra.mxu0 0.0
        %3415 = vmatprep.subr.mxu0 0.0
        %3416 = vmatpush1.msra.mxu0 0.0
        %3417 = vmatprep.subr.mxu0 0.0
        %3418 = vmatpush1.msra.mxu0 0.0
        %3419 = vmatprep.subr.mxu0 0.0
        %3420 = vmatpush1.msra.mxu0 0.0
        %3421 = vmatprep.subr.mxu0 0.0
        %3422 = vmatpush1.msra.mxu0 0.0
        %3423 = vmatprep.subr.mxu0 0.0
        %3424 = vmatpush1.msra.mxu0 0.0
        %3425 = vmatprep.subr.mxu0 0.0
        %3426 = vmatpush1.msra.mxu0 0.0
        %3427 = vmatprep.subr.mxu0 0.0
        %3428 = vmatpush1.msra.mxu0 0.0
        %3429 = vmatprep.subr.mxu0 0.0
        %3430 = vmatpush1.msra.mxu0 0.0
        %3431 = vmatprep.subr.mxu0 0.0
        %3432 = vmatpush1.msra.mxu0 0.0
        %3433 = vmatprep.subr.mxu0 0.0
        %3434 = vmatpush1.msra.mxu0 0.0
        %3435 = vmatprep.subr.mxu0 0.0
        %3436 = vmatpush1.msra.mxu0 0.0
        %3437 = vmatprep.subr.mxu0 0.0
        %3438 = vmatpush1.msra.mxu0 0.0
        %3439 = vmatprep.subr.mxu0 0.0
        %3440 = vmatpush1.msra.mxu0 0.0
        %3441 = vmatprep.subr.mxu0 0.0
        %3442 = vmatpush1.msra.mxu0 0.0
        %3443 = vmatprep.subr.mxu0 0.0
        %3444 = vmatpush1.msra.mxu0 0.0
        %3445 = vmatprep.subr.mxu0 0.0
        %3446 = vmatpush1.msra.mxu0 0.0
        %3447 = vmatprep.subr.mxu0 0.0
        %3448 = vmatpush1.msra.mxu0 0.0
        %3449 = vmatprep.subr.mxu0 0.0
        %3450 = vmatpush1.msra.mxu0 0.0
        %3451 = vmatprep.subr.mxu0 0.0
        %3452 = vmatpush1.msra.mxu0 0.0
        %3453 = vmatprep.subr.mxu0 0.0
        %3454 = vmatpush1.msra.mxu0 0.0
        %3455 = vmatprep.mubr.f32.mxu0 0.0
        %3456 = vmatmul.mubr.f32.gmra.mrb[0].mxu0 %v3386
        %v3457 = vpop.f32.mrb[0].mxu0
        %v3458 = vadd.f32 %v493, %v3457
        %v3459 = vpop.f32.mrb[0].mxu0
        %3460 = vdwg.mxu0
        %v3462 = vsel %vm495, %v283, 0
        %v3465 = vsel %vm499, %v452, 0
        %3467 = vmatprep.subr.mxu0 0.0
        %3468 = vmatpush1.msra.mxu0 %v449
        %3469 = vmatprep.subr.mxu0 0.0
        %3470 = vmatpush1.msra.mxu0 %v450
        %3471 = vmatprep.subr.mxu0 0.0
        %3472 = vmatpush1.msra.mxu0 %v451
        %3473 = vmatprep.subr.mxu0 0.0
        %3474 = vmatpush1.msra.mxu0 %v3465
        %3475 = vmatprep.subr.mxu0 0.0
        %3476 = vmatpush1.msra.mxu0 0.0
        %3477 = vmatprep.subr.mxu0 0.0
        %3478 = vmatpush1.msra.mxu0 0.0
        %3479 = vmatprep.subr.mxu0 0.0
        %3480 = vmatpush1.msra.mxu0 0.0
        %3481 = vmatprep.subr.mxu0 0.0
        %3482 = vmatpush1.msra.mxu0 0.0
        %3483 = vmatprep.subr.mxu0 0.0
        %3484 = vmatpush1.msra.mxu0 0.0
        %3485 = vmatprep.subr.mxu0 0.0
        %3486 = vmatpush1.msra.mxu0 0.0
        %3487 = vmatprep.subr.mxu0 0.0
        %3488 = vmatpush1.msra.mxu0 0.0
        %3489 = vmatprep.subr.mxu0 0.0
        %3490 = vmatpush1.msra.mxu0 0.0
        %3491 = vmatprep.subr.mxu0 0.0
        %3492 = vmatpush1.msra.mxu0 0.0
        %3493 = vmatprep.subr.mxu0 0.0
        %3494 = vmatpush1.msra.mxu0 0.0
        %3495 = vmatprep.subr.mxu0 0.0
        %3496 = vmatpush1.msra.mxu0 0.0
        %3497 = vmatprep.subr.mxu0 0.0
        %3498 = vmatpush1.msra.mxu0 0.0
        %3499 = vmatprep.subr.mxu0 0.0
        %3500 = vmatpush1.msra.mxu0 0.0
        %3501 = vmatprep.subr.mxu0 0.0
        %3502 = vmatpush1.msra.mxu0 0.0
        %3503 = vmatprep.subr.mxu0 0.0
        %3504 = vmatpush1.msra.mxu0 0.0
        %3505 = vmatprep.subr.mxu0 0.0
        %3506 = vmatpush1.msra.mxu0 0.0
        %3507 = vmatprep.subr.mxu0 0.0
        %3508 = vmatpush1.msra.mxu0 0.0
        %3509 = vmatprep.subr.mxu0 0.0
        %3510 = vmatpush1.msra.mxu0 0.0
        %3511 = vmatprep.subr.mxu0 0.0
        %3512 = vmatpush1.msra.mxu0 0.0
        %3513 = vmatprep.subr.mxu0 0.0
        %3514 = vmatpush1.msra.mxu0 0.0
        %3515 = vmatprep.subr.mxu0 0.0
        %3516 = vmatpush1.msra.mxu0 0.0
        %3517 = vmatprep.subr.mxu0 0.0
        %3518 = vmatpush1.msra.mxu0 0.0
        %3519 = vmatprep.subr.mxu0 0.0
        %3520 = vmatpush1.msra.mxu0 0.0
        %3521 = vmatprep.subr.mxu0 0.0
        %3522 = vmatpush1.msra.mxu0 0.0
        %3523 = vmatprep.subr.mxu0 0.0
        %3524 = vmatpush1.msra.mxu0 0.0
        %3525 = vmatprep.subr.mxu0 0.0
        %3526 = vmatpush1.msra.mxu0 0.0
        %3527 = vmatprep.subr.mxu0 0.0
        %3528 = vmatpush1.msra.mxu0 0.0
        %3529 = vmatprep.subr.mxu0 0.0
        %3530 = vmatpush1.msra.mxu0 0.0
        %3531 = vmatprep.mubr.f32.mxu0 0.0
        %3532 = vmatmul.mubr.f32.gmra.mrb[0].mxu0 %v3462
        %v3533 = vpop.f32.mrb[0].mxu0
        %v3534 = vadd.f32 %v493, %v3533
        %v3535 = vpop.f32.mrb[0].mxu0
        %3536 = vdwg.mxu0
        %v3538 = vsel %vm495, %v284, 0
        %v3541 = vsel %vm499, %v456, 0
        %3543 = vmatprep.subr.mxu0 0.0
        %3544 = vmatpush1.msra.mxu0 %v453
        %3545 = vmatprep.subr.mxu0 0.0
        %3546 = vmatpush1.msra.mxu0 %v454
        %3547 = vmatprep.subr.mxu0 0.0
        %3548 = vmatpush1.msra.mxu0 %v455
        %3549 = vmatprep.subr.mxu0 0.0
        %3550 = vmatpush1.msra.mxu0 %v3541
        %3551 = vmatprep.subr.mxu0 0.0
        %3552 = vmatpush1.msra.mxu0 0.0
        %3553 = vmatprep.subr.mxu0 0.0
        %3554 = vmatpush1.msra.mxu0 0.0
        %3555 = vmatprep.subr.mxu0 0.0
        %3556 = vmatpush1.msra.mxu0 0.0
        %3557 = vmatprep.subr.mxu0 0.0
        %3558 = vmatpush1.msra.mxu0 0.0
        %3559 = vmatprep.subr.mxu0 0.0
        %3560 = vmatpush1.msra.mxu0 0.0
        %3561 = vmatprep.subr.mxu0 0.0
        %3562 = vmatpush1.msra.mxu0 0.0
        %3563 = vmatprep.subr.mxu0 0.0
        %3564 = vmatpush1.msra.mxu0 0.0
        %3565 = vmatprep.subr.mxu0 0.0
        %3566 = vmatpush1.msra.mxu0 0.0
        %3567 = vmatprep.subr.mxu0 0.0
        %3568 = vmatpush1.msra.mxu0 0.0
        %3569 = vmatprep.subr.mxu0 0.0
        %3570 = vmatpush1.msra.mxu0 0.0
        %3571 = vmatprep.subr.mxu0 0.0
        %3572 = vmatpush1.msra.mxu0 0.0
        %3573 = vmatprep.subr.mxu0 0.0
        %3574 = vmatpush1.msra.mxu0 0.0
        %3575 = vmatprep.subr.mxu0 0.0
        %3576 = vmatpush1.msra.mxu0 0.0
        %3577 = vmatprep.subr.mxu0 0.0
        %3578 = vmatpush1.msra.mxu0 0.0
        %3579 = vmatprep.subr.mxu0 0.0
        %3580 = vmatpush1.msra.mxu0 0.0
        %3581 = vmatprep.subr.mxu0 0.0
        %3582 = vmatpush1.msra.mxu0 0.0
        %3583 = vmatprep.subr.mxu0 0.0
        %3584 = vmatpush1.msra.mxu0 0.0
        %3585 = vmatprep.subr.mxu0 0.0
        %3586 = vmatpush1.msra.mxu0 0.0
        %3587 = vmatprep.subr.mxu0 0.0
        %3588 = vmatpush1.msra.mxu0 0.0
        %3589 = vmatprep.subr.mxu0 0.0
        %3590 = vmatpush1.msra.mxu0 0.0
        %3591 = vmatprep.subr.mxu0 0.0
        %3592 = vmatpush1.msra.mxu0 0.0
        %3593 = vmatprep.subr.mxu0 0.0
        %3594 = vmatpush1.msra.mxu0 0.0
        %3595 = vmatprep.subr.mxu0 0.0
        %3596 = vmatpush1.msra.mxu0 0.0
        %3597 = vmatprep.subr.mxu0 0.0
        %3598 = vmatpush1.msra.mxu0 0.0
        %3599 = vmatprep.subr.mxu0 0.0
        %3600 = vmatpush1.msra.mxu0 0.0
        %3601 = vmatprep.subr.mxu0 0.0
        %3602 = vmatpush1.msra.mxu0 0.0
        %3603 = vmatprep.subr.mxu0 0.0
        %3604 = vmatpush1.msra.mxu0 0.0
        %3605 = vmatprep.subr.mxu0 0.0
        %3606 = vmatpush1.msra.mxu0 0.0
        %3607 = vmatprep.mubr.f32.mxu0 0.0
        %3608 = vmatmul.mubr.f32.gmra.mrb[0].mxu0 %v3538
        %v3609 = vpop.f32.mrb[0].mxu0
        %v3610 = vadd.f32 %v493, %v3609
        %v3611 = vpop.f32.mrb[0].mxu0
        %3612 = vdwg.mxu0
        %v3614 = vsel %vm495, %v285, 0
        %v3617 = vsel %vm499, %v460, 0
        %3619 = vmatprep.subr.mxu0 0.0
        %3620 = vmatpush1.msra.mxu0 %v457
        %3621 = vmatprep.subr.mxu0 0.0
        %3622 = vmatpush1.msra.mxu0 %v458
        %3623 = vmatprep.subr.mxu0 0.0
        %3624 = vmatpush1.msra.mxu0 %v459
        %3625 = vmatprep.subr.mxu0 0.0
        %3626 = vmatpush1.msra.mxu0 %v3617
        %3627 = vmatprep.subr.mxu0 0.0
        %3628 = vmatpush1.msra.mxu0 0.0
        %3629 = vmatprep.subr.mxu0 0.0
        %3630 = vmatpush1.msra.mxu0 0.0
        %3631 = vmatprep.subr.mxu0 0.0
        %3632 = vmatpush1.msra.mxu0 0.0
        %3633 = vmatprep.subr.mxu0 0.0
        %3634 = vmatpush1.msra.mxu0 0.0
        %3635 = vmatprep.subr.mxu0 0.0
        %3636 = vmatpush1.msra.mxu0 0.0
        %3637 = vmatprep.subr.mxu0 0.0
        %3638 = vmatpush1.msra.mxu0 0.0
        %3639 = vmatprep.subr.mxu0 0.0
        %3640 = vmatpush1.msra.mxu0 0.0
        %3641 = vmatprep.subr.mxu0 0.0
        %3642 = vmatpush1.msra.mxu0 0.0
        %3643 = vmatprep.subr.mxu0 0.0
        %3644 = vmatpush1.msra.mxu0 0.0
        %3645 = vmatprep.subr.mxu0 0.0
        %3646 = vmatpush1.msra.mxu0 0.0
        %3647 = vmatprep.subr.mxu0 0.0
        %3648 = vmatpush1.msra.mxu0 0.0
        %3649 = vmatprep.subr.mxu0 0.0
        %3650 = vmatpush1.msra.mxu0 0.0
        %3651 = vmatprep.subr.mxu0 0.0
        %3652 = vmatpush1.msra.mxu0 0.0
        %3653 = vmatprep.subr.mxu0 0.0
        %3654 = vmatpush1.msra.mxu0 0.0
        %3655 = vmatprep.subr.mxu0 0.0
        %3656 = vmatpush1.msra.mxu0 0.0
        %3657 = vmatprep.subr.mxu0 0.0
        %3658 = vmatpush1.msra.mxu0 0.0
        %3659 = vmatprep.subr.mxu0 0.0
        %3660 = vmatpush1.msra.mxu0 0.0
        %3661 = vmatprep.subr.mxu0 0.0
        %3662 = vmatpush1.msra.mxu0 0.0
        %3663 = vmatprep.subr.mxu0 0.0
        %3664 = vmatpush1.msra.mxu0 0.0
        %3665 = vmatprep.subr.mxu0 0.0
        %3666 = vmatpush1.msra.mxu0 0.0
        %3667 = vmatprep.subr.mxu0 0.0
        %3668 = vmatpush1.msra.mxu0 0.0
        %3669 = vmatprep.subr.mxu0 0.0
        %3670 = vmatpush1.msra.mxu0 0.0
        %3671 = vmatprep.subr.mxu0 0.0
        %3672 = vmatpush1.msra.mxu0 0.0
        %3673 = vmatprep.subr.mxu0 0.0
        %3674 = vmatpush1.msra.mxu0 0.0
        %3675 = vmatprep.subr.mxu0 0.0
        %3676 = vmatpush1.msra.mxu0 0.0
        %3677 = vmatprep.subr.mxu0 0.0
        %3678 = vmatpush1.msra.mxu0 0.0
        %3679 = vmatprep.subr.mxu0 0.0
        %3680 = vmatpush1.msra.mxu0 0.0
        %3681 = vmatprep.subr.mxu0 0.0
        %3682 = vmatpush1.msra.mxu0 0.0
        %3683 = vmatprep.mubr.f32.mxu0 0.0
        %3684 = vmatmul.mubr.f32.gmra.mrb[0].mxu0 %v3614
        %v3685 = vpop.f32.mrb[0].mxu0
        %v3686 = vadd.f32 %v493, %v3685
        %v3687 = vpop.f32.mrb[0].mxu0
        %3688 = vdwg.mxu0
        %v3690 = vsel %vm495, %v286, 0
        %v3693 = vsel %vm499, %v464, 0
        %3695 = vmatprep.subr.mxu0 0.0
        %3696 = vmatpush1.msra.mxu0 %v461
        %3697 = vmatprep.subr.mxu0 0.0
        %3698 = vmatpush1.msra.mxu0 %v462
        %3699 = vmatprep.subr.mxu0 0.0
        %3700 = vmatpush1.msra.mxu0 %v463
        %3701 = vmatprep.subr.mxu0 0.0
        %3702 = vmatpush1.msra.mxu0 %v3693
        %3703 = vmatprep.subr.mxu0 0.0
        %3704 = vmatpush1.msra.mxu0 0.0
        %3705 = vmatprep.subr.mxu0 0.0
        %3706 = vmatpush1.msra.mxu0 0.0
        %3707 = vmatprep.subr.mxu0 0.0
        %3708 = vmatpush1.msra.mxu0 0.0
        %3709 = vmatprep.subr.mxu0 0.0
        %3710 = vmatpush1.msra.mxu0 0.0
        %3711 = vmatprep.subr.mxu0 0.0
        %3712 = vmatpush1.msra.mxu0 0.0
        %3713 = vmatprep.subr.mxu0 0.0
        %3714 = vmatpush1.msra.mxu0 0.0
        %3715 = vmatprep.subr.mxu0 0.0
        %3716 = vmatpush1.msra.mxu0 0.0
        %3717 = vmatprep.subr.mxu0 0.0
        %3718 = vmatpush1.msra.mxu0 0.0
        %3719 = vmatprep.subr.mxu0 0.0
        %3720 = vmatpush1.msra.mxu0 0.0
        %3721 = vmatprep.subr.mxu0 0.0
        %3722 = vmatpush1.msra.mxu0 0.0
        %3723 = vmatprep.subr.mxu0 0.0
        %3724 = vmatpush1.msra.mxu0 0.0
        %3725 = vmatprep.subr.mxu0 0.0
        %3726 = vmatpush1.msra.mxu0 0.0
        %3727 = vmatprep.subr.mxu0 0.0
        %3728 = vmatpush1.msra.mxu0 0.0
        %3729 = vmatprep.subr.mxu0 0.0
        %3730 = vmatpush1.msra.mxu0 0.0
        %3731 = vmatprep.subr.mxu0 0.0
        %3732 = vmatpush1.msra.mxu0 0.0
        %3733 = vmatprep.subr.mxu0 0.0
        %3734 = vmatpush1.msra.mxu0 0.0
        %3735 = vmatprep.subr.mxu0 0.0
        %3736 = vmatpush1.msra.mxu0 0.0
        %3737 = vmatprep.subr.mxu0 0.0
        %3738 = vmatpush1.msra.mxu0 0.0
        %3739 = vmatprep.subr.mxu0 0.0
        %3740 = vmatpush1.msra.mxu0 0.0
        %3741 = vmatprep.subr.mxu0 0.0
        %3742 = vmatpush1.msra.mxu0 0.0
        %3743 = vmatprep.subr.mxu0 0.0
        %3744 = vmatpush1.msra.mxu0 0.0
        %3745 = vmatprep.subr.mxu0 0.0
        %3746 = vmatpush1.msra.mxu0 0.0
        %3747 = vmatprep.subr.mxu0 0.0
        %3748 = vmatpush1.msra.mxu0 0.0
        %3749 = vmatprep.subr.mxu0 0.0
        %3750 = vmatpush1.msra.mxu0 0.0
        %3751 = vmatprep.subr.mxu0 0.0
        %3752 = vmatpush1.msra.mxu0 0.0
        %3753 = vmatprep.subr.mxu0 0.0
        %3754 = vmatpush1.msra.mxu0 0.0
        %3755 = vmatprep.subr.mxu0 0.0
        %3756 = vmatpush1.msra.mxu0 0.0
        %3757 = vmatprep.subr.mxu0 0.0
        %3758 = vmatpush1.msra.mxu0 0.0
        %3759 = vmatprep.mubr.f32.mxu0 0.0
        %3760 = vmatmul.mubr.f32.gmra.mrb[0].mxu0 %v3690
        %v3761 = vpop.f32.mrb[0].mxu0
        %v3762 = vadd.f32 %v493, %v3761
        %v3763 = vpop.f32.mrb[0].mxu0
        %3764 = vdwg.mxu0
        %v3766 = vsel %vm495, %v287, 0
        %v3769 = vsel %vm499, %v468, 0
        %3771 = vmatprep.subr.mxu0 0.0
        %3772 = vmatpush1.msra.mxu0 %v465
        %3773 = vmatprep.subr.mxu0 0.0
        %3774 = vmatpush1.msra.mxu0 %v466
        %3775 = vmatprep.subr.mxu0 0.0
        %3776 = vmatpush1.msra.mxu0 %v467
        %3777 = vmatprep.subr.mxu0 0.0
        %3778 = vmatpush1.msra.mxu0 %v3769
        %3779 = vmatprep.subr.mxu0 0.0
        %3780 = vmatpush1.msra.mxu0 0.0
        %3781 = vmatprep.subr.mxu0 0.0
        %3782 = vmatpush1.msra.mxu0 0.0
        %3783 = vmatprep.subr.mxu0 0.0
        %3784 = vmatpush1.msra.mxu0 0.0
        %3785 = vmatprep.subr.mxu0 0.0
        %3786 = vmatpush1.msra.mxu0 0.0
        %3787 = vmatprep.subr.mxu0 0.0
        %3788 = vmatpush1.msra.mxu0 0.0
        %3789 = vmatprep.subr.mxu0 0.0
        %3790 = vmatpush1.msra.mxu0 0.0
        %3791 = vmatprep.subr.mxu0 0.0
        %3792 = vmatpush1.msra.mxu0 0.0
        %3793 = vmatprep.subr.mxu0 0.0
        %3794 = vmatpush1.msra.mxu0 0.0
        %3795 = vmatprep.subr.mxu0 0.0
        %3796 = vmatpush1.msra.mxu0 0.0
        %3797 = vmatprep.subr.mxu0 0.0
        %3798 = vmatpush1.msra.mxu0 0.0
        %3799 = vmatprep.subr.mxu0 0.0
        %3800 = vmatpush1.msra.mxu0 0.0
        %3801 = vmatprep.subr.mxu0 0.0
        %3802 = vmatpush1.msra.mxu0 0.0
        %3803 = vmatprep.subr.mxu0 0.0
        %3804 = vmatpush1.msra.mxu0 0.0
        %3805 = vmatprep.subr.mxu0 0.0
        %3806 = vmatpush1.msra.mxu0 0.0
        %3807 = vmatprep.subr.mxu0 0.0
        %3808 = vmatpush1.msra.mxu0 0.0
        %3809 = vmatprep.subr.mxu0 0.0
        %3810 = vmatpush1.msra.mxu0 0.0
        %3811 = vmatprep.subr.mxu0 0.0
        %3812 = vmatpush1.msra.mxu0 0.0
        %3813 = vmatprep.subr.mxu0 0.0
        %3814 = vmatpush1.msra.mxu0 0.0
        %3815 = vmatprep.subr.mxu0 0.0
        %3816 = vmatpush1.msra.mxu0 0.0
        %3817 = vmatprep.subr.mxu0 0.0
        %3818 = vmatpush1.msra.mxu0 0.0
        %3819 = vmatprep.subr.mxu0 0.0
        %3820 = vmatpush1.msra.mxu0 0.0
        %3821 = vmatprep.subr.mxu0 0.0
        %3822 = vmatpush1.msra.mxu0 0.0
        %3823 = vmatprep.subr.mxu0 0.0
        %3824 = vmatpush1.msra.mxu0 0.0
        %3825 = vmatprep.subr.mxu0 0.0
        %3826 = vmatpush1.msra.mxu0 0.0
        %3827 = vmatprep.subr.mxu0 0.0
        %3828 = vmatpush1.msra.mxu0 0.0
        %3829 = vmatprep.subr.mxu0 0.0
        %3830 = vmatpush1.msra.mxu0 0.0
        %3831 = vmatprep.subr.mxu0 0.0
        %3832 = vmatpush1.msra.mxu0 0.0
        %3833 = vmatprep.subr.mxu0 0.0
        %3834 = vmatpush1.msra.mxu0 0.0
        %3835 = vmatprep.mubr.f32.mxu0 0.0
        %3836 = vmatmul.mubr.f32.gmra.mrb[0].mxu0 %v3766
        %v3837 = vpop.f32.mrb[0].mxu0
        %v3838 = vadd.f32 %v493, %v3837
        %v3839 = vpop.f32.mrb[0].mxu0
        %3840 = vdwg.mxu0
        %v3842 = vsel %vm495, %v288, 0
        %v3845 = vsel %vm499, %v472, 0
        %3847 = vmatprep.subr.mxu0 0.0
        %3848 = vmatpush1.msra.mxu0 %v469
        %3849 = vmatprep.subr.mxu0 0.0
        %3850 = vmatpush1.msra.mxu0 %v470
        %3851 = vmatprep.subr.mxu0 0.0
        %3852 = vmatpush1.msra.mxu0 %v471
        %3853 = vmatprep.subr.mxu0 0.0
        %3854 = vmatpush1.msra.mxu0 %v3845
        %3855 = vmatprep.subr.mxu0 0.0
        %3856 = vmatpush1.msra.mxu0 0.0
        %3857 = vmatprep.subr.mxu0 0.0
        %3858 = vmatpush1.msra.mxu0 0.0
        %3859 = vmatprep.subr.mxu0 0.0
        %3860 = vmatpush1.msra.mxu0 0.0
        %3861 = vmatprep.subr.mxu0 0.0
        %3862 = vmatpush1.msra.mxu0 0.0
        %3863 = vmatprep.subr.mxu0 0.0
        %3864 = vmatpush1.msra.mxu0 0.0
        %3865 = vmatprep.subr.mxu0 0.0
        %3866 = vmatpush1.msra.mxu0 0.0
        %3867 = vmatprep.subr.mxu0 0.0
        %3868 = vmatpush1.msra.mxu0 0.0
        %3869 = vmatprep.subr.mxu0 0.0
        %3870 = vmatpush1.msra.mxu0 0.0
        %3871 = vmatprep.subr.mxu0 0.0
        %3872 = vmatpush1.msra.mxu0 0.0
        %3873 = vmatprep.subr.mxu0 0.0
        %3874 = vmatpush1.msra.mxu0 0.0
        %3875 = vmatprep.subr.mxu0 0.0
        %3876 = vmatpush1.msra.mxu0 0.0
        %3877 = vmatprep.subr.mxu0 0.0
        %3878 = vmatpush1.msra.mxu0 0.0
        %3879 = vmatprep.subr.mxu0 0.0
        %3880 = vmatpush1.msra.mxu0 0.0
        %3881 = vmatprep.subr.mxu0 0.0
        %3882 = vmatpush1.msra.mxu0 0.0
        %3883 = vmatprep.subr.mxu0 0.0
        %3884 = vmatpush1.msra.mxu0 0.0
        %3885 = vmatprep.subr.mxu0 0.0
        %3886 = vmatpush1.msra.mxu0 0.0
        %3887 = vmatprep.subr.mxu0 0.0
        %3888 = vmatpush1.msra.mxu0 0.0
        %3889 = vmatprep.subr.mxu0 0.0
        %3890 = vmatpush1.msra.mxu0 0.0
        %3891 = vmatprep.subr.mxu0 0.0
        %3892 = vmatpush1.msra.mxu0 0.0
        %3893 = vmatprep.subr.mxu0 0.0
        %3894 = vmatpush1.msra.mxu0 0.0
        %3895 = vmatprep.subr.mxu0 0.0
        %3896 = vmatpush1.msra.mxu0 0.0
        %3897 = vmatprep.subr.mxu0 0.0
        %3898 = vmatpush1.msra.mxu0 0.0
        %3899 = vmatprep.subr.mxu0 0.0
        %3900 = vmatpush1.msra.mxu0 0.0
        %3901 = vmatprep.subr.mxu0 0.0
        %3902 = vmatpush1.msra.mxu0 0.0
        %3903 = vmatprep.subr.mxu0 0.0
        %3904 = vmatpush1.msra.mxu0 0.0
        %3905 = vmatprep.subr.mxu0 0.0
        %3906 = vmatpush1.msra.mxu0 0.0
        %3907 = vmatprep.subr.mxu0 0.0
        %3908 = vmatpush1.msra.mxu0 0.0
        %3909 = vmatprep.subr.mxu0 0.0
        %3910 = vmatpush1.msra.mxu0 0.0
        %3911 = vmatprep.mubr.f32.mxu0 0.0
        %3912 = vmatmul.mubr.f32.gmra.mrb[0].mxu0 %v3842
        %v3913 = vpop.f32.mrb[0].mxu0
        %v3914 = vadd.f32 %v493, %v3913
        %v3915 = vpop.f32.mrb[0].mxu0
        %3916 = vdwg.mxu0
        %v3918 = vsel %vm495, %v289, 0
        %v3921 = vsel %vm499, %v476, 0
        %3923 = vmatprep.subr.mxu0 0.0
        %3924 = vmatpush1.msra.mxu0 %v473
        %3925 = vmatprep.subr.mxu0 0.0
        %3926 = vmatpush1.msra.mxu0 %v474
        %3927 = vmatprep.subr.mxu0 0.0
        %3928 = vmatpush1.msra.mxu0 %v475
        %3929 = vmatprep.subr.mxu0 0.0
        %3930 = vmatpush1.msra.mxu0 %v3921
        %3931 = vmatprep.subr.mxu0 0.0
        %3932 = vmatpush1.msra.mxu0 0.0
        %3933 = vmatprep.subr.mxu0 0.0
        %3934 = vmatpush1.msra.mxu0 0.0
        %3935 = vmatprep.subr.mxu0 0.0
        %3936 = vmatpush1.msra.mxu0 0.0
        %3937 = vmatprep.subr.mxu0 0.0
        %3938 = vmatpush1.msra.mxu0 0.0
        %3939 = vmatprep.subr.mxu0 0.0
        %3940 = vmatpush1.msra.mxu0 0.0
        %3941 = vmatprep.subr.mxu0 0.0
        %3942 = vmatpush1.msra.mxu0 0.0
        %3943 = vmatprep.subr.mxu0 0.0
        %3944 = vmatpush1.msra.mxu0 0.0
        %3945 = vmatprep.subr.mxu0 0.0
        %3946 = vmatpush1.msra.mxu0 0.0
        %3947 = vmatprep.subr.mxu0 0.0
        %3948 = vmatpush1.msra.mxu0 0.0
        %3949 = vmatprep.subr.mxu0 0.0
        %3950 = vmatpush1.msra.mxu0 0.0
        %3951 = vmatprep.subr.mxu0 0.0
        %3952 = vmatpush1.msra.mxu0 0.0
        %3953 = vmatprep.subr.mxu0 0.0
        %3954 = vmatpush1.msra.mxu0 0.0
        %3955 = vmatprep.subr.mxu0 0.0
        %3956 = vmatpush1.msra.mxu0 0.0
        %3957 = vmatprep.subr.mxu0 0.0
        %3958 = vmatpush1.msra.mxu0 0.0
        %3959 = vmatprep.subr.mxu0 0.0
        %3960 = vmatpush1.msra.mxu0 0.0
        %3961 = vmatprep.subr.mxu0 0.0
        %3962 = vmatpush1.msra.mxu0 0.0
        %3963 = vmatprep.subr.mxu0 0.0
        %3964 = vmatpush1.msra.mxu0 0.0
        %3965 = vmatprep.subr.mxu0 0.0
        %3966 = vmatpush1.msra.mxu0 0.0
        %3967 = vmatprep.subr.mxu0 0.0
        %3968 = vmatpush1.msra.mxu0 0.0
        %3969 = vmatprep.subr.mxu0 0.0
        %3970 = vmatpush1.msra.mxu0 0.0
        %3971 = vmatprep.subr.mxu0 0.0
        %3972 = vmatpush1.msra.mxu0 0.0
        %3973 = vmatprep.subr.mxu0 0.0
        %3974 = vmatpush1.msra.mxu0 0.0
        %3975 = vmatprep.subr.mxu0 0.0
        %3976 = vmatpush1.msra.mxu0 0.0
        %3977 = vmatprep.subr.mxu0 0.0
        %3978 = vmatpush1.msra.mxu0 0.0
        %3979 = vmatprep.subr.mxu0 0.0
        %3980 = vmatpush1.msra.mxu0 0.0
        %3981 = vmatprep.subr.mxu0 0.0
        %3982 = vmatpush1.msra.mxu0 0.0
        %3983 = vmatprep.subr.mxu0 0.0
        %3984 = vmatpush1.msra.mxu0 0.0
        %3985 = vmatprep.subr.mxu0 0.0
        %3986 = vmatpush1.msra.mxu0 0.0
        %3987 = vmatprep.mubr.f32.mxu0 0.0
        %3988 = vmatmul.mubr.f32.gmra.mrb[0].mxu0 %v3918
        %v3989 = vpop.f32.mrb[0].mxu0
        %v3990 = vadd.f32 %v493, %v3989
        %v3991 = vpop.f32.mrb[0].mxu0
        %3992 = vdwg.mxu0
        %v3994 = vsel %vm495, %v290, 0
        %v3997 = vsel %vm499, %v480, 0
        %3999 = vmatprep.subr.mxu0 0.0
        %4000 = vmatpush1.msra.mxu0 %v477
        %4001 = vmatprep.subr.mxu0 0.0
        %4002 = vmatpush1.msra.mxu0 %v478
        %4003 = vmatprep.subr.mxu0 0.0
        %4004 = vmatpush1.msra.mxu0 %v479
        %4005 = vmatprep.subr.mxu0 0.0
        %4006 = vmatpush1.msra.mxu0 %v3997
        %4007 = vmatprep.subr.mxu0 0.0
        %4008 = vmatpush1.msra.mxu0 0.0
        %4009 = vmatprep.subr.mxu0 0.0
        %4010 = vmatpush1.msra.mxu0 0.0
        %4011 = vmatprep.subr.mxu0 0.0
        %4012 = vmatpush1.msra.mxu0 0.0
        %4013 = vmatprep.subr.mxu0 0.0
        %4014 = vmatpush1.msra.mxu0 0.0
        %4015 = vmatprep.subr.mxu0 0.0
        %4016 = vmatpush1.msra.mxu0 0.0
        %4017 = vmatprep.subr.mxu0 0.0
        %4018 = vmatpush1.msra.mxu0 0.0
        %4019 = vmatprep.subr.mxu0 0.0
        %4020 = vmatpush1.msra.mxu0 0.0
        %4021 = vmatprep.subr.mxu0 0.0
        %4022 = vmatpush1.msra.mxu0 0.0
        %4023 = vmatprep.subr.mxu0 0.0
        %4024 = vmatpush1.msra.mxu0 0.0
        %4025 = vmatprep.subr.mxu0 0.0
        %4026 = vmatpush1.msra.mxu0 0.0
        %4027 = vmatprep.subr.mxu0 0.0
        %4028 = vmatpush1.msra.mxu0 0.0
        %4029 = vmatprep.subr.mxu0 0.0
        %4030 = vmatpush1.msra.mxu0 0.0
        %4031 = vmatprep.subr.mxu0 0.0
        %4032 = vmatpush1.msra.mxu0 0.0
        %4033 = vmatprep.subr.mxu0 0.0
        %4034 = vmatpush1.msra.mxu0 0.0
        %4035 = vmatprep.subr.mxu0 0.0
        %4036 = vmatpush1.msra.mxu0 0.0
        %4037 = vmatprep.subr.mxu0 0.0
        %4038 = vmatpush1.msra.mxu0 0.0
        %4039 = vmatprep.subr.mxu0 0.0
        %4040 = vmatpush1.msra.mxu0 0.0
        %4041 = vmatprep.subr.mxu0 0.0
        %4042 = vmatpush1.msra.mxu0 0.0
        %4043 = vmatprep.subr.mxu0 0.0
        %4044 = vmatpush1.msra.mxu0 0.0
        %4045 = vmatprep.subr.mxu0 0.0
        %4046 = vmatpush1.msra.mxu0 0.0
        %4047 = vmatprep.subr.mxu0 0.0
        %4048 = vmatpush1.msra.mxu0 0.0
        %4049 = vmatprep.subr.mxu0 0.0
        %4050 = vmatpush1.msra.mxu0 0.0
        %4051 = vmatprep.subr.mxu0 0.0
        %4052 = vmatpush1.msra.mxu0 0.0
        %4053 = vmatprep.subr.mxu0 0.0
        %4054 = vmatpush1.msra.mxu0 0.0
        %4055 = vmatprep.subr.mxu0 0.0
        %4056 = vmatpush1.msra.mxu0 0.0
        %4057 = vmatprep.subr.mxu0 0.0
        %4058 = vmatpush1.msra.mxu0 0.0
        %4059 = vmatprep.subr.mxu0 0.0
        %4060 = vmatpush1.msra.mxu0 0.0
        %4061 = vmatprep.subr.mxu0 0.0
        %4062 = vmatpush1.msra.mxu0 0.0
        %4063 = vmatprep.mubr.f32.mxu0 0.0
        %4064 = vmatmul.mubr.f32.gmra.mrb[0].mxu0 %v3994
        %v4065 = vpop.f32.mrb[0].mxu0
        %v4066 = vadd.f32 %v493, %v4065
        %v4067 = vpop.f32.mrb[0].mxu0
        %4068 = vdwg.mxu0
        %v4070 = vsel %vm495, %v291, 0
        %v4073 = vsel %vm499, %v484, 0
        %4075 = vmatprep.subr.mxu0 0.0
        %4076 = vmatpush1.msra.mxu0 %v481
        %4077 = vmatprep.subr.mxu0 0.0
        %4078 = vmatpush1.msra.mxu0 %v482
        %4079 = vmatprep.subr.mxu0 0.0
        %4080 = vmatpush1.msra.mxu0 %v483
        %4081 = vmatprep.subr.mxu0 0.0
        %4082 = vmatpush1.msra.mxu0 %v4073
        %4083 = vmatprep.subr.mxu0 0.0
        %4084 = vmatpush1.msra.mxu0 0.0
        %4085 = vmatprep.subr.mxu0 0.0
        %4086 = vmatpush1.msra.mxu0 0.0
        %4087 = vmatprep.subr.mxu0 0.0
        %4088 = vmatpush1.msra.mxu0 0.0
        %4089 = vmatprep.subr.mxu0 0.0
        %4090 = vmatpush1.msra.mxu0 0.0
        %4091 = vmatprep.subr.mxu0 0.0
        %4092 = vmatpush1.msra.mxu0 0.0
        %4093 = vmatprep.subr.mxu0 0.0
        %4094 = vmatpush1.msra.mxu0 0.0
        %4095 = vmatprep.subr.mxu0 0.0
        %4096 = vmatpush1.msra.mxu0 0.0
        %4097 = vmatprep.subr.mxu0 0.0
        %4098 = vmatpush1.msra.mxu0 0.0
        %4099 = vmatprep.subr.mxu0 0.0
        %4100 = vmatpush1.msra.mxu0 0.0
        %4101 = vmatprep.subr.mxu0 0.0
        %4102 = vmatpush1.msra.mxu0 0.0
        %4103 = vmatprep.subr.mxu0 0.0
        %4104 = vmatpush1.msra.mxu0 0.0
        %4105 = vmatprep.subr.mxu0 0.0
        %4106 = vmatpush1.msra.mxu0 0.0
        %4107 = vmatprep.subr.mxu0 0.0
        %4108 = vmatpush1.msra.mxu0 0.0
        %4109 = vmatprep.subr.mxu0 0.0
        %4110 = vmatpush1.msra.mxu0 0.0
        %4111 = vmatprep.subr.mxu0 0.0
        %4112 = vmatpush1.msra.mxu0 0.0
        %4113 = vmatprep.subr.mxu0 0.0
        %4114 = vmatpush1.msra.mxu0 0.0
        %4115 = vmatprep.subr.mxu0 0.0
        %4116 = vmatpush1.msra.mxu0 0.0
        %4117 = vmatprep.subr.mxu0 0.0
        %4118 = vmatpush1.msra.mxu0 0.0
        %4119 = vmatprep.subr.mxu0 0.0
        %4120 = vmatpush1.msra.mxu0 0.0
        %4121 = vmatprep.subr.mxu0 0.0
        %4122 = vmatpush1.msra.mxu0 0.0
        %4123 = vmatprep.subr.mxu0 0.0
        %4124 = vmatpush1.msra.mxu0 0.0
        %4125 = vmatprep.subr.mxu0 0.0
        %4126 = vmatpush1.msra.mxu0 0.0
        %4127 = vmatprep.subr.mxu0 0.0
        %4128 = vmatpush1.msra.mxu0 0.0
        %4129 = vmatprep.subr.mxu0 0.0
        %4130 = vmatpush1.msra.mxu0 0.0
        %4131 = vmatprep.subr.mxu0 0.0
        %4132 = vmatpush1.msra.mxu0 0.0
        %4133 = vmatprep.subr.mxu0 0.0
        %4134 = vmatpush1.msra.mxu0 0.0
        %4135 = vmatprep.subr.mxu0 0.0
        %4136 = vmatpush1.msra.mxu0 0.0
        %4137 = vmatprep.subr.mxu0 0.0
        %4138 = vmatpush1.msra.mxu0 0.0
        %4139 = vmatprep.mubr.f32.mxu0 0.0
        %4140 = vmatmul.mubr.f32.gmra.mrb[0].mxu0 %v4070
        %v4141 = vpop.f32.mrb[0].mxu0
        %v4142 = vadd.f32 %v493, %v4141
        %v4143 = vpop.f32.mrb[0].mxu0
        %4144 = vdwg.mxu0
        %v4146 = vsel %vm495, %v292, 0
        %v4149 = vsel %vm499, %v488, 0
        %4151 = vmatprep.subr.mxu0 0.0
        %4152 = vmatpush1.msra.mxu0 %v485
        %4153 = vmatprep.subr.mxu0 0.0
        %4154 = vmatpush1.msra.mxu0 %v486
        %4155 = vmatprep.subr.mxu0 0.0
        %4156 = vmatpush1.msra.mxu0 %v487
        %4157 = vmatprep.subr.mxu0 0.0
        %4158 = vmatpush1.msra.mxu0 %v4149
        %4159 = vmatprep.subr.mxu0 0.0
        %4160 = vmatpush1.msra.mxu0 0.0
        %4161 = vmatprep.subr.mxu0 0.0
        %4162 = vmatpush1.msra.mxu0 0.0
        %4163 = vmatprep.subr.mxu0 0.0
        %4164 = vmatpush1.msra.mxu0 0.0
        %4165 = vmatprep.subr.mxu0 0.0
        %4166 = vmatpush1.msra.mxu0 0.0
        %4167 = vmatprep.subr.mxu0 0.0
        %4168 = vmatpush1.msra.mxu0 0.0
        %4169 = vmatprep.subr.mxu0 0.0
        %4170 = vmatpush1.msra.mxu0 0.0
        %4171 = vmatprep.subr.mxu0 0.0
        %4172 = vmatpush1.msra.mxu0 0.0
        %4173 = vmatprep.subr.mxu0 0.0
        %4174 = vmatpush1.msra.mxu0 0.0
        %4175 = vmatprep.subr.mxu0 0.0
        %4176 = vmatpush1.msra.mxu0 0.0
        %4177 = vmatprep.subr.mxu0 0.0
        %4178 = vmatpush1.msra.mxu0 0.0
        %4179 = vmatprep.subr.mxu0 0.0
        %4180 = vmatpush1.msra.mxu0 0.0
        %4181 = vmatprep.subr.mxu0 0.0
        %4182 = vmatpush1.msra.mxu0 0.0
        %4183 = vmatprep.subr.mxu0 0.0
        %4184 = vmatpush1.msra.mxu0 0.0
        %4185 = vmatprep.subr.mxu0 0.0
        %4186 = vmatpush1.msra.mxu0 0.0
        %4187 = vmatprep.subr.mxu0 0.0
        %4188 = vmatpush1.msra.mxu0 0.0
        %4189 = vmatprep.subr.mxu0 0.0
        %4190 = vmatpush1.msra.mxu0 0.0
        %4191 = vmatprep.subr.mxu0 0.0
        %4192 = vmatpush1.msra.mxu0 0.0
        %4193 = vmatprep.subr.mxu0 0.0
        %4194 = vmatpush1.msra.mxu0 0.0
        %4195 = vmatprep.subr.mxu0 0.0
        %4196 = vmatpush1.msra.mxu0 0.0
        %4197 = vmatprep.subr.mxu0 0.0
        %4198 = vmatpush1.msra.mxu0 0.0
        %4199 = vmatprep.subr.mxu0 0.0
        %4200 = vmatpush1.msra.mxu0 0.0
        %4201 = vmatprep.subr.mxu0 0.0
        %4202 = vmatpush1.msra.mxu0 0.0
        %4203 = vmatprep.subr.mxu0 0.0
        %4204 = vmatpush1.msra.mxu0 0.0
        %4205 = vmatprep.subr.mxu0 0.0
        %4206 = vmatpush1.msra.mxu0 0.0
        %4207 = vmatprep.subr.mxu0 0.0
        %4208 = vmatpush1.msra.mxu0 0.0
        %4209 = vmatprep.subr.mxu0 0.0
        %4210 = vmatpush1.msra.mxu0 0.0
        %4211 = vmatprep.subr.mxu0 0.0
        %4212 = vmatpush1.msra.mxu0 0.0
        %4213 = vmatprep.subr.mxu0 0.0
        %4214 = vmatpush1.msra.mxu0 0.0
        %4215 = vmatprep.mubr.f32.mxu0 0.0
        %4216 = vmatmul.mubr.f32.gmra.mrb[0].mxu0 %v4146
        %v4217 = vpop.f32.mrb[0].mxu0
        %v4218 = vadd.f32 %v493, %v4217
        %v4219 = vpop.f32.mrb[0].mxu0
        %4220 = vdwg.mxu0
        %v4221 = vmax.f32 %v570, 0.0
        %v4222 = vmax.f32 %v646, 0.0
        %v4223 = vmax.f32 %v722, 0.0
        %v4224 = vmax.f32 %v798, 0.0
        %v4225 = vmax.f32 %v874, 0.0
        %v4226 = vmax.f32 %v950, 0.0
        %v4227 = vmax.f32 %v1026, 0.0
        %v4228 = vmax.f32 %v1102, 0.0
        %v4229 = vmax.f32 %v1178, 0.0
        %v4230 = vmax.f32 %v1254, 0.0
        %v4231 = vmax.f32 %v1330, 0.0
        %v4232 = vmax.f32 %v1406, 0.0
        %v4233 = vmax.f32 %v1482, 0.0
        %v4234 = vmax.f32 %v1558, 0.0
        %v4235 = vmax.f32 %v1634, 0.0
        %v4236 = vmax.f32 %v1710, 0.0
        %v4237 = vmax.f32 %v1786, 0.0
        %v4238 = vmax.f32 %v1862, 0.0
        %v4239 = vmax.f32 %v1938, 0.0
        %v4240 = vmax.f32 %v2014, 0.0
        %v4241 = vmax.f32 %v2090, 0.0
        %v4242 = vmax.f32 %v2166, 0.0
        %v4243 = vmax.f32 %v2242, 0.0
        %v4244 = vmax.f32 %v2318, 0.0
        %v4245 = vmax.f32 %v2394, 0.0
        %v4246 = vmax.f32 %v2470, 0.0
        %v4247 = vmax.f32 %v2546, 0.0
        %v4248 = vmax.f32 %v2622, 0.0
        %v4249 = vmax.f32 %v2698, 0.0
        %v4250 = vmax.f32 %v2774, 0.0
        %v4251 = vmax.f32 %v2850, 0.0
        %v4252 = vmax.f32 %v2926, 0.0
        %v4253 = vmax.f32 %v3002, 0.0
        %v4254 = vmax.f32 %v3078, 0.0
        %v4255 = vmax.f32 %v3154, 0.0
        %v4256 = vmax.f32 %v3230, 0.0
        %v4257 = vmax.f32 %v3306, 0.0
        %v4258 = vmax.f32 %v3382, 0.0
        %v4259 = vmax.f32 %v3458, 0.0
        %v4260 = vmax.f32 %v3534, 0.0
        %v4261 = vmax.f32 %v3610, 0.0
        %v4262 = vmax.f32 %v3686, 0.0
        %v4263 = vmax.f32 %v3762, 0.0
        %v4264 = vmax.f32 %v3838, 0.0
        %v4265 = vmax.f32 %v3914, 0.0
        %v4266 = vmax.f32 %v3990, 0.0
        %v4267 = vmax.f32 %v4066, 0.0
        %v4268 = vmax.f32 %v4142, 0.0
        %v4269 = vmax.f32 %v4218, 0.0
        %p4270 = scmp.eq.s32.totalorder %s24, 0
        // Predicated region
        $region41: #{tpu_custom_call.1} parent=39 // pred_check
          %p4271 = pneg %p4270
        $region42: #{tpu_custom_call.1} parent=39 // pred_check_branch
          %4273 = sbr.rel (%p4271) target = $region44
        $region43: #{tpu_custom_call.1} parent=39 // pred_region
          %vm4274 = vcmask 61440
          %4275 = vst.msk [vmem:[#allocation2] sm:$0x1f] %vm4274, %v4221
          %4276 = vst.msk [vmem:[#allocation2 + $0x8] sm:$0x1f] %vm4274, %v4222
          %4277 = vst.msk [vmem:[#allocation2 + $0x10] sm:$0x1f] %vm4274, %v4223
          %4278 = vst.msk [vmem:[#allocation2 + $0x18] sm:$0x1f] %vm4274, %v4224
          %4279 = vst.msk [vmem:[#allocation2 + $0x20] sm:$0x1f] %vm4274, %v4225
          %4280 = vst.msk [vmem:[#allocation2 + $0x28] sm:$0x1f] %vm4274, %v4226
          %4281 = vst.msk [vmem:[#allocation2 + $0x30] sm:$0x1f] %vm4274, %v4227
          %4282 = vst.msk [vmem:[#allocation2 + $0x38] sm:$0x1f] %vm4274, %v4228
          %4283 = vst.msk [vmem:[#allocation2 + $0x40] sm:$0x1f] %vm4274, %v4229
          %4284 = vst.msk [vmem:[#allocation2 + $0x48] sm:$0x1f] %vm4274, %v4230
          %4285 = vst.msk [vmem:[#allocation2 + $0x50] sm:$0x1f] %vm4274, %v4231
          %4286 = vst.msk [vmem:[#allocation2 + $0x58] sm:$0x1f] %vm4274, %v4232
          %4287 = vst.msk [vmem:[#allocation2 + $0x60] sm:$0x1f] %vm4274, %v4233
          %4288 = vst.msk [vmem:[#allocation2 + $0x68] sm:$0x1f] %vm4274, %v4234
          %4289 = vst.msk [vmem:[#allocation2 + $0x70] sm:$0x1f] %vm4274, %v4235
          %4290 = vst.msk [vmem:[#allocation2 + $0x78] sm:$0x1f] %vm4274, %v4236
          %4291 = vst.msk [vmem:[#allocation2 + $0x80] sm:$0x1f] %vm4274, %v4237
          %4292 = vst.msk [vmem:[#allocation2 + $0x88] sm:$0x1f] %vm4274, %v4238
          %4293 = vst.msk [vmem:[#allocation2 + $0x90] sm:$0x1f] %vm4274, %v4239
          %4294 = vst.msk [vmem:[#allocation2 + $0x98] sm:$0x1f] %vm4274, %v4240
          %4295 = vst.msk [vmem:[#allocation2 + $0xa0] sm:$0x1f] %vm4274, %v4241
          %4296 = vst.msk [vmem:[#allocation2 + $0xa8] sm:$0x1f] %vm4274, %v4242
          %4297 = vst.msk [vmem:[#allocation2 + $0xb0] sm:$0x1f] %vm4274, %v4243
          %4298 = vst.msk [vmem:[#allocation2 + $0xb8] sm:$0x1f] %vm4274, %v4244
          %4299 = vst.msk [vmem:[#allocation2 + $0xc0] sm:$0x1f] %vm4274, %v4245
          %4300 = vst.msk [vmem:[#allocation2 + $0xc8] sm:$0x1f] %vm4274, %v4246
          %4301 = vst.msk [vmem:[#allocation2 + $0xd0] sm:$0x1f] %vm4274, %v4247
          %4302 = vst.msk [vmem:[#allocation2 + $0xd8] sm:$0x1f] %vm4274, %v4248
          %4303 = vst.msk [vmem:[#allocation2 + $0xe0] sm:$0x1f] %vm4274, %v4249
          %4304 = vst.msk [vmem:[#allocation2 + $0xe8] sm:$0x1f] %vm4274, %v4250
          %4305 = vst.msk [vmem:[#allocation2 + $0xf0] sm:$0x1f] %vm4274, %v4251
          %4306 = vst.msk [vmem:[#allocation2 + $0xf8] sm:$0x1f] %vm4274, %v4252
          %4307 = vst.msk [vmem:[#allocation2 + $0x100] sm:$0x1f] %vm4274, %v4253
          %4308 = vst.msk [vmem:[#allocation2 + $0x108] sm:$0x1f] %vm4274, %v4254
          %4309 = vst.msk [vmem:[#allocation2 + $0x110] sm:$0x1f] %vm4274, %v4255
          %4310 = vst.msk [vmem:[#allocation2 + $0x118] sm:$0x1f] %vm4274, %v4256
          %4311 = vst.msk [vmem:[#allocation2 + $0x120] sm:$0x1f] %vm4274, %v4257
          %4312 = vst.msk [vmem:[#allocation2 + $0x128] sm:$0x1f] %vm4274, %v4258
          %4313 = vst.msk [vmem:[#allocation2 + $0x130] sm:$0x1f] %vm4274, %v4259
          %4314 = vst.msk [vmem:[#allocation2 + $0x138] sm:$0x1f] %vm4274, %v4260
          %4315 = vst.msk [vmem:[#allocation2 + $0x140] sm:$0x1f] %vm4274, %v4261
          %4316 = vst.msk [vmem:[#allocation2 + $0x148] sm:$0x1f] %vm4274, %v4262
          %4317 = vst.msk [vmem:[#allocation2 + $0x150] sm:$0x1f] %vm4274, %v4263
          %4318 = vst.msk [vmem:[#allocation2 + $0x158] sm:$0x1f] %vm4274, %v4264
          %4319 = vst.msk [vmem:[#allocation2 + $0x160] sm:$0x1f] %vm4274, %v4265
          %4320 = vst.msk [vmem:[#allocation2 + $0x168] sm:$0x1f] %vm4274, %v4266
          %4321 = vst.msk [vmem:[#allocation2 + $0x170] sm:$0x1f] %vm4274, %v4267
          %4322 = vst.msk [vmem:[#allocation2 + $0x178] sm:$0x1f] %vm4274, %v4268
          %4323 = vst.msk [vmem:[#allocation2 + $0x180] sm:$0x1f] %vm4274, %v4269
        $region44: #{tpu_custom_call.1} parent=39 // pred_fallthru
          _
        %p4324 = scmp.ne.s32.totalorder %s24, 0
        // Predicated region
        $region45: #{tpu_custom_call.1} parent=39 // pred_check
          %p4325 = pneg %p4324
        $region46: #{tpu_custom_call.1} parent=39 // pred_check_branch
          %4327 = sbr.rel (%p4325) target = $region48
        $region47: #{tpu_custom_call.1} parent=39 // pred_region
          %v4328 = vld [vmem:[#allocation2] sm:$0x1f]
          %v4329 = vld [vmem:[#allocation2 + $0x8] sm:$0x1f]
          %v4330 = vld [vmem:[#allocation2 + $0x10] sm:$0x1f]
          %v4331 = vld [vmem:[#allocation2 + $0x18] sm:$0x1f]
          %v4332 = vld [vmem:[#allocation2 + $0x20] sm:$0x1f]
          %v4333 = vld [vmem:[#allocation2 + $0x28] sm:$0x1f]
          %v4334 = vld [vmem:[#allocation2 + $0x30] sm:$0x1f]
          %v4335 = vld [vmem:[#allocation2 + $0x38] sm:$0x1f]
          %v4336 = vld [vmem:[#allocation2 + $0x40] sm:$0x1f]
          %v4337 = vld [vmem:[#allocation2 + $0x48] sm:$0x1f]
          %v4338 = vld [vmem:[#allocation2 + $0x50] sm:$0x1f]
          %v4339 = vld [vmem:[#allocation2 + $0x58] sm:$0x1f]
          %v4340 = vld [vmem:[#allocation2 + $0x60] sm:$0x1f]
          %v4341 = vld [vmem:[#allocation2 + $0x68] sm:$0x1f]
          %v4342 = vld [vmem:[#allocation2 + $0x70] sm:$0x1f]
          %v4343 = vld [vmem:[#allocation2 + $0x78] sm:$0x1f]
          %v4344 = vld [vmem:[#allocation2 + $0x80] sm:$0x1f]
          %v4345 = vld [vmem:[#allocation2 + $0x88] sm:$0x1f]
          %v4346 = vld [vmem:[#allocation2 + $0x90] sm:$0x1f]
          %v4347 = vld [vmem:[#allocation2 + $0x98] sm:$0x1f]
          %v4348 = vld [vmem:[#allocation2 + $0xa0] sm:$0x1f]
          %v4349 = vld [vmem:[#allocation2 + $0xa8] sm:$0x1f]
          %v4350 = vld [vmem:[#allocation2 + $0xb0] sm:$0x1f]
          %v4351 = vld [vmem:[#allocation2 + $0xb8] sm:$0x1f]
          %v4352 = vld [vmem:[#allocation2 + $0xc0] sm:$0x1f]
          %v4353 = vld [vmem:[#allocation2 + $0xc8] sm:$0x1f]
          %v4354 = vld [vmem:[#allocation2 + $0xd0] sm:$0x1f]
          %v4355 = vld [vmem:[#allocation2 + $0xd8] sm:$0x1f]
          %v4356 = vld [vmem:[#allocation2 + $0xe0] sm:$0x1f]
          %v4357 = vld [vmem:[#allocation2 + $0xe8] sm:$0x1f]
          %v4358 = vld [vmem:[#allocation2 + $0xf0] sm:$0x1f]
          %v4359 = vld [vmem:[#allocation2 + $0xf8] sm:$0x1f]
          %v4360 = vld [vmem:[#allocation2 + $0x100] sm:$0x1f]
          %v4361 = vld [vmem:[#allocation2 + $0x108] sm:$0x1f]
          %v4362 = vld [vmem:[#allocation2 + $0x110] sm:$0x1f]
          %v4363 = vld [vmem:[#allocation2 + $0x118] sm:$0x1f]
          %v4364 = vld [vmem:[#allocation2 + $0x120] sm:$0x1f]
          %v4365 = vld [vmem:[#allocation2 + $0x128] sm:$0x1f]
          %v4366 = vld [vmem:[#allocation2 + $0x130] sm:$0x1f]
          %v4367 = vld [vmem:[#allocation2 + $0x138] sm:$0x1f]
          %v4368 = vld [vmem:[#allocation2 + $0x140] sm:$0x1f]
          %v4369 = vld [vmem:[#allocation2 + $0x148] sm:$0x1f]
          %v4370 = vld [vmem:[#allocation2 + $0x150] sm:$0x1f]
          %v4371 = vld [vmem:[#allocation2 + $0x158] sm:$0x1f]
          %v4372 = vld [vmem:[#allocation2 + $0x160] sm:$0x1f]
          %v4373 = vld [vmem:[#allocation2 + $0x168] sm:$0x1f]
          %v4374 = vld [vmem:[#allocation2 + $0x170] sm:$0x1f]
          %v4375 = vld [vmem:[#allocation2 + $0x178] sm:$0x1f]
          %v4376 = vld [vmem:[#allocation2 + $0x180] sm:$0x1f]
          %v4377 = vmax.f32 %v4328, %v4221
          %v4378 = vmax.f32 %v4329, %v4222
          %v4379 = vmax.f32 %v4330, %v4223
          %v4380 = vmax.f32 %v4331, %v4224
          %v4381 = vmax.f32 %v4332, %v4225
          %v4382 = vmax.f32 %v4333, %v4226
          %v4383 = vmax.f32 %v4334, %v4227
          %v4384 = vmax.f32 %v4335, %v4228
          %v4385 = vmax.f32 %v4336, %v4229
          %v4386 = vmax.f32 %v4337, %v4230
          %v4387 = vmax.f32 %v4338, %v4231
          %v4388 = vmax.f32 %v4339, %v4232
          %v4389 = vmax.f32 %v4340, %v4233
          %v4390 = vmax.f32 %v4341, %v4234
          %v4391 = vmax.f32 %v4342, %v4235
          %v4392 = vmax.f32 %v4343, %v4236
          %v4393 = vmax.f32 %v4344, %v4237
          %v4394 = vmax.f32 %v4345, %v4238
          %v4395 = vmax.f32 %v4346, %v4239
          %v4396 = vmax.f32 %v4347, %v4240
          %v4397 = vmax.f32 %v4348, %v4241
          %v4398 = vmax.f32 %v4349, %v4242
          %v4399 = vmax.f32 %v4350, %v4243
          %v4400 = vmax.f32 %v4351, %v4244
          %v4401 = vmax.f32 %v4352, %v4245
          %v4402 = vmax.f32 %v4353, %v4246
          %v4403 = vmax.f32 %v4354, %v4247
          %v4404 = vmax.f32 %v4355, %v4248
          %v4405 = vmax.f32 %v4356, %v4249
          %v4406 = vmax.f32 %v4357, %v4250
          %v4407 = vmax.f32 %v4358, %v4251
          %v4408 = vmax.f32 %v4359, %v4252
          %v4409 = vmax.f32 %v4360, %v4253
          %v4410 = vmax.f32 %v4361, %v4254
          %v4411 = vmax.f32 %v4362, %v4255
          %v4412 = vmax.f32 %v4363, %v4256
          %v4413 = vmax.f32 %v4364, %v4257
          %v4414 = vmax.f32 %v4365, %v4258
          %v4415 = vmax.f32 %v4366, %v4259
          %v4416 = vmax.f32 %v4367, %v4260
          %v4417 = vmax.f32 %v4368, %v4261
          %v4418 = vmax.f32 %v4369, %v4262
          %v4419 = vmax.f32 %v4370, %v4263
          %v4420 = vmax.f32 %v4371, %v4264
          %v4421 = vmax.f32 %v4372, %v4265
          %v4422 = vmax.f32 %v4373, %v4266
          %v4423 = vmax.f32 %v4374, %v4267
          %v4424 = vmax.f32 %v4375, %v4268
          %v4425 = vmax.f32 %v4376, %v4269
          %vm4426 = vcmask 61440
          %4427 = vst.msk [vmem:[#allocation2] sm:$0x1f] %vm4426, %v4377
          %4428 = vst.msk [vmem:[#allocation2 + $0x8] sm:$0x1f] %vm4426, %v4378
          %4429 = vst.msk [vmem:[#allocation2 + $0x10] sm:$0x1f] %vm4426, %v4379
          %4430 = vst.msk [vmem:[#allocation2 + $0x18] sm:$0x1f] %vm4426, %v4380
          %4431 = vst.msk [vmem:[#allocation2 + $0x20] sm:$0x1f] %vm4426, %v4381
          %4432 = vst.msk [vmem:[#allocation2 + $0x28] sm:$0x1f] %vm4426, %v4382
          %4433 = vst.msk [vmem:[#allocation2 + $0x30] sm:$0x1f] %vm4426, %v4383
          %4434 = vst.msk [vmem:[#allocation2 + $0x38] sm:$0x1f] %vm4426, %v4384
          %4435 = vst.msk [vmem:[#allocation2 + $0x40] sm:$0x1f] %vm4426, %v4385
          %4436 = vst.msk [vmem:[#allocation2 + $0x48] sm:$0x1f] %vm4426, %v4386
          %4437 = vst.msk [vmem:[#allocation2 + $0x50] sm:$0x1f] %vm4426, %v4387
          %4438 = vst.msk [vmem:[#allocation2 + $0x58] sm:$0x1f] %vm4426, %v4388
          %4439 = vst.msk [vmem:[#allocation2 + $0x60] sm:$0x1f] %vm4426, %v4389
          %4440 = vst.msk [vmem:[#allocation2 + $0x68] sm:$0x1f] %vm4426, %v4390
          %4441 = vst.msk [vmem:[#allocation2 + $0x70] sm:$0x1f] %vm4426, %v4391
          %4442 = vst.msk [vmem:[#allocation2 + $0x78] sm:$0x1f] %vm4426, %v4392
          %4443 = vst.msk [vmem:[#allocation2 + $0x80] sm:$0x1f] %vm4426, %v4393
          %4444 = vst.msk [vmem:[#allocation2 + $0x88] sm:$0x1f] %vm4426, %v4394
          %4445 = vst.msk [vmem:[#allocation2 + $0x90] sm:$0x1f] %vm4426, %v4395
          %4446 = vst.msk [vmem:[#allocation2 + $0x98] sm:$0x1f] %vm4426, %v4396
          %4447 = vst.msk [vmem:[#allocation2 + $0xa0] sm:$0x1f] %vm4426, %v4397
          %4448 = vst.msk [vmem:[#allocation2 + $0xa8] sm:$0x1f] %vm4426, %v4398
          %4449 = vst.msk [vmem:[#allocation2 + $0xb0] sm:$0x1f] %vm4426, %v4399
          %4450 = vst.msk [vmem:[#allocation2 + $0xb8] sm:$0x1f] %vm4426, %v4400
          %4451 = vst.msk [vmem:[#allocation2 + $0xc0] sm:$0x1f] %vm4426, %v4401
          %4452 = vst.msk [vmem:[#allocation2 + $0xc8] sm:$0x1f] %vm4426, %v4402
          %4453 = vst.msk [vmem:[#allocation2 + $0xd0] sm:$0x1f] %vm4426, %v4403
          %4454 = vst.msk [vmem:[#allocation2 + $0xd8] sm:$0x1f] %vm4426, %v4404
          %4455 = vst.msk [vmem:[#allocation2 + $0xe0] sm:$0x1f] %vm4426, %v4405
          %4456 = vst.msk [vmem:[#allocation2 + $0xe8] sm:$0x1f] %vm4426, %v4406
          %4457 = vst.msk [vmem:[#allocation2 + $0xf0] sm:$0x1f] %vm4426, %v4407
          %4458 = vst.msk [vmem:[#allocation2 + $0xf8] sm:$0x1f] %vm4426, %v4408
          %4459 = vst.msk [vmem:[#allocation2 + $0x100] sm:$0x1f] %vm4426, %v4409
          %4460 = vst.msk [vmem:[#allocation2 + $0x108] sm:$0x1f] %vm4426, %v4410
          %4461 = vst.msk [vmem:[#allocation2 + $0x110] sm:$0x1f] %vm4426, %v4411
          %4462 = vst.msk [vmem:[#allocation2 + $0x118] sm:$0x1f] %vm4426, %v4412
          %4463 = vst.msk [vmem:[#allocation2 + $0x120] sm:$0x1f] %vm4426, %v4413
          %4464 = vst.msk [vmem:[#allocation2 + $0x128] sm:$0x1f] %vm4426, %v4414
          %4465 = vst.msk [vmem:[#allocation2 + $0x130] sm:$0x1f] %vm4426, %v4415
          %4466 = vst.msk [vmem:[#allocation2 + $0x138] sm:$0x1f] %vm4426, %v4416
          %4467 = vst.msk [vmem:[#allocation2 + $0x140] sm:$0x1f] %vm4426, %v4417
          %4468 = vst.msk [vmem:[#allocation2 + $0x148] sm:$0x1f] %vm4426, %v4418
          %4469 = vst.msk [vmem:[#allocation2 + $0x150] sm:$0x1f] %vm4426, %v4419
          %4470 = vst.msk [vmem:[#allocation2 + $0x158] sm:$0x1f] %vm4426, %v4420
          %4471 = vst.msk [vmem:[#allocation2 + $0x160] sm:$0x1f] %vm4426, %v4421
          %4472 = vst.msk [vmem:[#allocation2 + $0x168] sm:$0x1f] %vm4426, %v4422
          %4473 = vst.msk [vmem:[#allocation2 + $0x170] sm:$0x1f] %vm4426, %v4423
          %4474 = vst.msk [vmem:[#allocation2 + $0x178] sm:$0x1f] %vm4426, %v4424
          %4475 = vst.msk [vmem:[#allocation2 + $0x180] sm:$0x1f] %vm4426, %v4425
        $region48: #{tpu_custom_call.1} parent=39 // pred_fallthru
          _
        %p4476 = scmp.eq.s32.totalorder %s24, 15
        // Predicated region
        $region49: #{tpu_custom_call.1} parent=39 // pred_check
          %p4477 = pneg %p4476
        $region50: #{tpu_custom_call.1} parent=39 // pred_check_branch
          %4479 = sbr.rel (%p4477) target = $region52
        $region51: #{tpu_custom_call.1} parent=39 // pred_region
          %v4480 = vld [vmem:[#allocation2] sm:$0x1f]
          %v4481 = vld [vmem:[#allocation2 + $0x8] sm:$0x1f]
          %v4482 = vld [vmem:[#allocation2 + $0x10] sm:$0x1f]
          %v4483 = vld [vmem:[#allocation2 + $0x18] sm:$0x1f]
          %v4484 = vld [vmem:[#allocation2 + $0x20] sm:$0x1f]
          %v4485 = vld [vmem:[#allocation2 + $0x28] sm:$0x1f]
          %v4486 = vld [vmem:[#allocation2 + $0x30] sm:$0x1f]
          %v4487 = vld [vmem:[#allocation2 + $0x38] sm:$0x1f]
          %v4488 = vld [vmem:[#allocation2 + $0x40] sm:$0x1f]
          %v4489 = vld [vmem:[#allocation2 + $0x48] sm:$0x1f]
          %v4490 = vld [vmem:[#allocation2 + $0x50] sm:$0x1f]
          %v4491 = vld [vmem:[#allocation2 + $0x58] sm:$0x1f]
          %v4492 = vld [vmem:[#allocation2 + $0x60] sm:$0x1f]
          %v4493 = vld [vmem:[#allocation2 + $0x68] sm:$0x1f]
          %v4494 = vld [vmem:[#allocation2 + $0x70] sm:$0x1f]
          %v4495 = vld [vmem:[#allocation2 + $0x78] sm:$0x1f]
          %v4496 = vld [vmem:[#allocation2 + $0x80] sm:$0x1f]
          %v4497 = vld [vmem:[#allocation2 + $0x88] sm:$0x1f]
          %v4498 = vld [vmem:[#allocation2 + $0x90] sm:$0x1f]
          %v4499 = vld [vmem:[#allocation2 + $0x98] sm:$0x1f]
          %v4500 = vld [vmem:[#allocation2 + $0xa0] sm:$0x1f]
          %v4501 = vld [vmem:[#allocation2 + $0xa8] sm:$0x1f]
          %v4502 = vld [vmem:[#allocation2 + $0xb0] sm:$0x1f]
          %v4503 = vld [vmem:[#allocation2 + $0xb8] sm:$0x1f]
          %v4504 = vld [vmem:[#allocation2 + $0xc0] sm:$0x1f]
          %v4505 = vld [vmem:[#allocation2 + $0xc8] sm:$0x1f]
          %v4506 = vld [vmem:[#allocation2 + $0xd0] sm:$0x1f]
          %v4507 = vld [vmem:[#allocation2 + $0xd8] sm:$0x1f]
          %v4508 = vld [vmem:[#allocation2 + $0xe0] sm:$0x1f]
          %v4509 = vld [vmem:[#allocation2 + $0xe8] sm:$0x1f]
          %v4510 = vld [vmem:[#allocation2 + $0xf0] sm:$0x1f]
          %v4511 = vld [vmem:[#allocation2 + $0xf8] sm:$0x1f]
          %v4512 = vld [vmem:[#allocation2 + $0x100] sm:$0x1f]
          %v4513 = vld [vmem:[#allocation2 + $0x108] sm:$0x1f]
          %v4514 = vld [vmem:[#allocation2 + $0x110] sm:$0x1f]
          %v4515 = vld [vmem:[#allocation2 + $0x118] sm:$0x1f]
          %v4516 = vld [vmem:[#allocation2 + $0x120] sm:$0x1f]
          %v4517 = vld [vmem:[#allocation2 + $0x128] sm:$0x1f]
          %v4518 = vld [vmem:[#allocation2 + $0x130] sm:$0x1f]
          %v4519 = vld [vmem:[#allocation2 + $0x138] sm:$0x1f]
          %v4520 = vld [vmem:[#allocation2 + $0x140] sm:$0x1f]
          %v4521 = vld [vmem:[#allocation2 + $0x148] sm:$0x1f]
          %v4522 = vld [vmem:[#allocation2 + $0x150] sm:$0x1f]
          %v4523 = vld [vmem:[#allocation2 + $0x158] sm:$0x1f]
          %v4524 = vld [vmem:[#allocation2 + $0x160] sm:$0x1f]
          %v4525 = vld [vmem:[#allocation2 + $0x168] sm:$0x1f]
          %v4526 = vld [vmem:[#allocation2 + $0x170] sm:$0x1f]
          %v4527 = vld [vmem:[#allocation2 + $0x178] sm:$0x1f]
          %v4528 = vld [vmem:[#allocation2 + $0x180] sm:$0x1f]
          %v4529 = vld [vmem:[%s3] sm:$0x1f]
          %v4530 = vld [vmem:[%s3 + $0x8] sm:$0x1f]
          %v4531 = vld [vmem:[%s3 + $0x10] sm:$0x1f]
          %v4532 = vld [vmem:[%s3 + $0x18] sm:$0x1f]
          %v4533 = vld [vmem:[%s3 + $0x20] sm:$0x1f]
          %v4534 = vld [vmem:[%s3 + $0x28] sm:$0x1f]
          %v4535 = vld [vmem:[%s3 + $0x30] sm:$0x1f]
          %v4536 = vld [vmem:[%s3 + $0x38] sm:$0x1f]
          %v4537 = vld [vmem:[%s3 + $0x40] sm:$0x1f]
          %v4538 = vld [vmem:[%s3 + $0x48] sm:$0x1f]
          %v4539 = vld [vmem:[%s3 + $0x50] sm:$0x1f]
          %v4540 = vld [vmem:[%s3 + $0x58] sm:$0x1f]
          %v4541 = vld [vmem:[%s3 + $0x60] sm:$0x1f]
          %v4542 = vld [vmem:[%s3 + $0x68] sm:$0x1f]
          %v4543 = vld [vmem:[%s3 + $0x70] sm:$0x1f]
          %v4544 = vld [vmem:[%s3 + $0x78] sm:$0x1f]
          %v4545 = vld [vmem:[%s3 + $0x80] sm:$0x1f]
          %v4546 = vld [vmem:[%s3 + $0x88] sm:$0x1f]
          %v4547 = vld [vmem:[%s3 + $0x90] sm:$0x1f]
          %v4548 = vld [vmem:[%s3 + $0x98] sm:$0x1f]
          %v4549 = vld [vmem:[%s3 + $0xa0] sm:$0x1f]
          %v4550 = vld [vmem:[%s3 + $0xa8] sm:$0x1f]
          %v4551 = vld [vmem:[%s3 + $0xb0] sm:$0x1f]
          %v4552 = vld [vmem:[%s3 + $0xb8] sm:$0x1f]
          %v4553 = vld [vmem:[%s3 + $0xc0] sm:$0x1f]
          %v4554 = vld [vmem:[%s3 + $0xc8] sm:$0x1f]
          %v4555 = vld [vmem:[%s3 + $0xd0] sm:$0x1f]
          %v4556 = vld [vmem:[%s3 + $0xd8] sm:$0x1f]
          %v4557 = vld [vmem:[%s3 + $0xe0] sm:$0x1f]
          %v4558 = vld [vmem:[%s3 + $0xe8] sm:$0x1f]
          %v4559 = vld [vmem:[%s3 + $0xf0] sm:$0x1f]
          %v4560 = vld [vmem:[%s3 + $0xf8] sm:$0x1f]
          %v4561 = vld [vmem:[%s3 + $0x100] sm:$0x1f]
          %v4562 = vld [vmem:[%s3 + $0x108] sm:$0x1f]
          %v4563 = vld [vmem:[%s3 + $0x110] sm:$0x1f]
          %v4564 = vld [vmem:[%s3 + $0x118] sm:$0x1f]
          %v4565 = vld [vmem:[%s3 + $0x120] sm:$0x1f]
          %v4566 = vld [vmem:[%s3 + $0x128] sm:$0x1f]
          %v4567 = vld [vmem:[%s3 + $0x130] sm:$0x1f]
          %v4568 = vld [vmem:[%s3 + $0x138] sm:$0x1f]
          %v4569 = vld [vmem:[%s3 + $0x140] sm:$0x1f]
          %v4570 = vld [vmem:[%s3 + $0x148] sm:$0x1f]
          %v4571 = vld [vmem:[%s3 + $0x150] sm:$0x1f]
          %v4572 = vld [vmem:[%s3 + $0x158] sm:$0x1f]
          %v4573 = vld [vmem:[%s3 + $0x160] sm:$0x1f]
          %v4574 = vld [vmem:[%s3 + $0x168] sm:$0x1f]
          %v4575 = vld [vmem:[%s3 + $0x170] sm:$0x1f]
          %v4576 = vld [vmem:[%s3 + $0x178] sm:$0x1f]
          %v4577 = vld [vmem:[%s3 + $0x180] sm:$0x1f]
          %4579 = vset.pattern.permute.xlu0 0
          %4580 = vperm.xlu0 %4579, %v4529
          %v4581 = vpop.permute.xlu0 %4580
          %4584 = vset.pattern.permute.xlu0 0
          %4585 = vperm.xlu0 %4584, %v4530
          %v4586 = vpop.permute.xlu0 %4585
          %4589 = vset.pattern.permute.xlu0 0
          %4590 = vperm.xlu0 %4589, %v4531
          %v4591 = vpop.permute.xlu0 %4590
          %4594 = vset.pattern.permute.xlu0 0
          %4595 = vperm.xlu0 %4594, %v4532
          %v4596 = vpop.permute.xlu0 %4595
          %4599 = vset.pattern.permute.xlu0 0
          %4600 = vperm.xlu0 %4599, %v4533
          %v4601 = vpop.permute.xlu0 %4600
          %4604 = vset.pattern.permute.xlu0 0
          %4605 = vperm.xlu0 %4604, %v4534
          %v4606 = vpop.permute.xlu0 %4605
          %4609 = vset.pattern.permute.xlu0 0
          %4610 = vperm.xlu0 %4609, %v4535
          %v4611 = vpop.permute.xlu0 %4610
          %4614 = vset.pattern.permute.xlu0 0
          %4615 = vperm.xlu0 %4614, %v4536
          %v4616 = vpop.permute.xlu0 %4615
          %4619 = vset.pattern.permute.xlu0 0
          %4620 = vperm.xlu0 %4619, %v4537
          %v4621 = vpop.permute.xlu0 %4620
          %4624 = vset.pattern.permute.xlu0 0
          %4625 = vperm.xlu0 %4624, %v4538
          %v4626 = vpop.permute.xlu0 %4625
          %4629 = vset.pattern.permute.xlu0 0
          %4630 = vperm.xlu0 %4629, %v4539
          %v4631 = vpop.permute.xlu0 %4630
          %4634 = vset.pattern.permute.xlu0 0
          %4635 = vperm.xlu0 %4634, %v4540
          %v4636 = vpop.permute.xlu0 %4635
          %4639 = vset.pattern.permute.xlu0 0
          %4640 = vperm.xlu0 %4639, %v4541
          %v4641 = vpop.permute.xlu0 %4640
          %4644 = vset.pattern.permute.xlu0 0
          %4645 = vperm.xlu0 %4644, %v4542
          %v4646 = vpop.permute.xlu0 %4645
          %4649 = vset.pattern.permute.xlu0 0
          %4650 = vperm.xlu0 %4649, %v4543
          %v4651 = vpop.permute.xlu0 %4650
          %4654 = vset.pattern.permute.xlu0 0
          %4655 = vperm.xlu0 %4654, %v4544
          %v4656 = vpop.permute.xlu0 %4655
          %4659 = vset.pattern.permute.xlu0 0
          %4660 = vperm.xlu0 %4659, %v4545
          %v4661 = vpop.permute.xlu0 %4660
          %4664 = vset.pattern.permute.xlu0 0
          %4665 = vperm.xlu0 %4664, %v4546
          %v4666 = vpop.permute.xlu0 %4665
          %4669 = vset.pattern.permute.xlu0 0
          %4670 = vperm.xlu0 %4669, %v4547
          %v4671 = vpop.permute.xlu0 %4670
          %4674 = vset.pattern.permute.xlu0 0
          %4675 = vperm.xlu0 %4674, %v4548
          %v4676 = vpop.permute.xlu0 %4675
          %4679 = vset.pattern.permute.xlu0 0
          %4680 = vperm.xlu0 %4679, %v4549
          %v4681 = vpop.permute.xlu0 %4680
          %4684 = vset.pattern.permute.xlu0 0
          %4685 = vperm.xlu0 %4684, %v4550
          %v4686 = vpop.permute.xlu0 %4685
          %4689 = vset.pattern.permute.xlu0 0
          %4690 = vperm.xlu0 %4689, %v4551
          %v4691 = vpop.permute.xlu0 %4690
          %4694 = vset.pattern.permute.xlu0 0
          %4695 = vperm.xlu0 %4694, %v4552
          %v4696 = vpop.permute.xlu0 %4695
          %4699 = vset.pattern.permute.xlu0 0
          %4700 = vperm.xlu0 %4699, %v4553
          %v4701 = vpop.permute.xlu0 %4700
          %4704 = vset.pattern.permute.xlu0 0
          %4705 = vperm.xlu0 %4704, %v4554
          %v4706 = vpop.permute.xlu0 %4705
          %4709 = vset.pattern.permute.xlu0 0
          %4710 = vperm.xlu0 %4709, %v4555
          %v4711 = vpop.permute.xlu0 %4710
          %4714 = vset.pattern.permute.xlu0 0
          %4715 = vperm.xlu0 %4714, %v4556
          %v4716 = vpop.permute.xlu0 %4715
          %4719 = vset.pattern.permute.xlu0 0
          %4720 = vperm.xlu0 %4719, %v4557
          %v4721 = vpop.permute.xlu0 %4720
          %4724 = vset.pattern.permute.xlu0 0
          %4725 = vperm.xlu0 %4724, %v4558
          %v4726 = vpop.permute.xlu0 %4725
          %4729 = vset.pattern.permute.xlu0 0
          %4730 = vperm.xlu0 %4729, %v4559
          %v4731 = vpop.permute.xlu0 %4730
          %4734 = vset.pattern.permute.xlu0 0
          %4735 = vperm.xlu0 %4734, %v4560
          %v4736 = vpop.permute.xlu0 %4735
          %4739 = vset.pattern.permute.xlu0 0
          %4740 = vperm.xlu0 %4739, %v4561
          %v4741 = vpop.permute.xlu0 %4740
          %4744 = vset.pattern.permute.xlu0 0
          %4745 = vperm.xlu0 %4744, %v4562
          %v4746 = vpop.permute.xlu0 %4745
          %4749 = vset.pattern.permute.xlu0 0
          %4750 = vperm.xlu0 %4749, %v4563
          %v4751 = vpop.permute.xlu0 %4750
          %4754 = vset.pattern.permute.xlu0 0
          %4755 = vperm.xlu0 %4754, %v4564
          %v4756 = vpop.permute.xlu0 %4755
          %4759 = vset.pattern.permute.xlu0 0
          %4760 = vperm.xlu0 %4759, %v4565
          %v4761 = vpop.permute.xlu0 %4760
          %4764 = vset.pattern.permute.xlu0 0
          %4765 = vperm.xlu0 %4764, %v4566
          %v4766 = vpop.permute.xlu0 %4765
          %4769 = vset.pattern.permute.xlu0 0
          %4770 = vperm.xlu0 %4769, %v4567
          %v4771 = vpop.permute.xlu0 %4770
          %4774 = vset.pattern.permute.xlu0 0
          %4775 = vperm.xlu0 %4774, %v4568
          %v4776 = vpop.permute.xlu0 %4775
          %4779 = vset.pattern.permute.xlu0 0
          %4780 = vperm.xlu0 %4779, %v4569
          %v4781 = vpop.permute.xlu0 %4780
          %4784 = vset.pattern.permute.xlu0 0
          %4785 = vperm.xlu0 %4784, %v4570
          %v4786 = vpop.permute.xlu0 %4785
          %4789 = vset.pattern.permute.xlu0 0
          %4790 = vperm.xlu0 %4789, %v4571
          %v4791 = vpop.permute.xlu0 %4790
          %4794 = vset.pattern.permute.xlu0 0
          %4795 = vperm.xlu0 %4794, %v4572
          %v4796 = vpop.permute.xlu0 %4795
          %4799 = vset.pattern.permute.xlu0 0
          %4800 = vperm.xlu0 %4799, %v4573
          %v4801 = vpop.permute.xlu0 %4800
          %4804 = vset.pattern.permute.xlu0 0
          %4805 = vperm.xlu0 %4804, %v4574
          %v4806 = vpop.permute.xlu0 %4805
          %4809 = vset.pattern.permute.xlu0 0
          %4810 = vperm.xlu0 %4809, %v4575
          %v4811 = vpop.permute.xlu0 %4810
          %4814 = vset.pattern.permute.xlu0 0
          %4815 = vperm.xlu0 %4814, %v4576
          %v4816 = vpop.permute.xlu0 %4815
          %4819 = vset.pattern.permute.xlu0 0
          %4820 = vperm.xlu0 %4819, %v4577
          %v4821 = vpop.permute.xlu0 %4820
          %v4823 = vmul.f32 %v4480, %v4581
          %v4824 = vmul.f32 %v4481, %v4586
          %v4825 = vmul.f32 %v4482, %v4591
          %v4826 = vmul.f32 %v4483, %v4596
          %v4827 = vmul.f32 %v4484, %v4601
          %v4828 = vmul.f32 %v4485, %v4606
          %v4829 = vmul.f32 %v4486, %v4611
          %v4830 = vmul.f32 %v4487, %v4616
          %v4831 = vmul.f32 %v4488, %v4621
          %v4832 = vmul.f32 %v4489, %v4626
          %v4833 = vmul.f32 %v4490, %v4631
          %v4834 = vmul.f32 %v4491, %v4636
          %v4835 = vmul.f32 %v4492, %v4641
          %v4836 = vmul.f32 %v4493, %v4646
          %v4837 = vmul.f32 %v4494, %v4651
          %v4838 = vmul.f32 %v4495, %v4656
          %v4839 = vmul.f32 %v4496, %v4661
          %v4840 = vmul.f32 %v4497, %v4666
          %v4841 = vmul.f32 %v4498, %v4671
          %v4842 = vmul.f32 %v4499, %v4676
          %v4843 = vmul.f32 %v4500, %v4681
          %v4844 = vmul.f32 %v4501, %v4686
          %v4845 = vmul.f32 %v4502, %v4691
          %v4846 = vmul.f32 %v4503, %v4696
          %v4847 = vmul.f32 %v4504, %v4701
          %v4848 = vmul.f32 %v4505, %v4706
          %v4849 = vmul.f32 %v4506, %v4711
          %v4850 = vmul.f32 %v4507, %v4716
          %v4851 = vmul.f32 %v4508, %v4721
          %v4852 = vmul.f32 %v4509, %v4726
          %v4853 = vmul.f32 %v4510, %v4731
          %v4854 = vmul.f32 %v4511, %v4736
          %v4855 = vmul.f32 %v4512, %v4741
          %v4856 = vmul.f32 %v4513, %v4746
          %v4857 = vmul.f32 %v4514, %v4751
          %v4858 = vmul.f32 %v4515, %v4756
          %v4859 = vmul.f32 %v4516, %v4761
          %v4860 = vmul.f32 %v4517, %v4766
          %v4861 = vmul.f32 %v4518, %v4771
          %v4862 = vmul.f32 %v4519, %v4776
          %v4863 = vmul.f32 %v4520, %v4781
          %v4864 = vmul.f32 %v4521, %v4786
          %v4865 = vmul.f32 %v4522, %v4791
          %v4866 = vmul.f32 %v4523, %v4796
          %v4867 = vmul.f32 %v4524, %v4801
          %v4868 = vmul.f32 %v4525, %v4806
          %v4869 = vmul.f32 %v4526, %v4811
          %v4870 = vmul.f32 %v4527, %v4816
          %v4871 = vmul.f32 %v4528, %v4821
          %vm4872 = vcmask 61440
          %v4873 = vsel %vm4872, %v4823, 0.0
          %v4874 = vsel %vm4872, %v4824, 0.0
          %v4875 = vadd.f32 %v4873, %v4874
          %v4876 = vsel %vm4872, %v4825, 0.0
          %v4877 = vadd.f32 %v4875, %v4876
          %v4878 = vsel %vm4872, %v4826, 0.0
          %v4879 = vadd.f32 %v4877, %v4878
          %v4880 = vsel %vm4872, %v4827, 0.0
          %v4881 = vadd.f32 %v4879, %v4880
          %v4882 = vsel %vm4872, %v4828, 0.0
          %v4883 = vadd.f32 %v4881, %v4882
          %v4884 = vsel %vm4872, %v4829, 0.0
          %v4885 = vadd.f32 %v4883, %v4884
          %v4886 = vsel %vm4872, %v4830, 0.0
          %v4887 = vadd.f32 %v4885, %v4886
          %v4888 = vsel %vm4872, %v4831, 0.0
          %v4889 = vadd.f32 %v4887, %v4888
          %v4890 = vsel %vm4872, %v4832, 0.0
          %v4891 = vadd.f32 %v4889, %v4890
          %v4892 = vsel %vm4872, %v4833, 0.0
          %v4893 = vadd.f32 %v4891, %v4892
          %v4894 = vsel %vm4872, %v4834, 0.0
          %v4895 = vadd.f32 %v4893, %v4894
          %v4896 = vsel %vm4872, %v4835, 0.0
          %v4897 = vadd.f32 %v4895, %v4896
          %v4898 = vsel %vm4872, %v4836, 0.0
          %v4899 = vadd.f32 %v4897, %v4898
          %v4900 = vsel %vm4872, %v4837, 0.0
          %v4901 = vadd.f32 %v4899, %v4900
          %v4902 = vsel %vm4872, %v4838, 0.0
          %v4903 = vadd.f32 %v4901, %v4902
          %v4904 = vsel %vm4872, %v4839, 0.0
          %v4905 = vadd.f32 %v4903, %v4904
          %v4906 = vsel %vm4872, %v4840, 0.0
          %v4907 = vadd.f32 %v4905, %v4906
          %v4908 = vsel %vm4872, %v4841, 0.0
          %v4909 = vadd.f32 %v4907, %v4908
          %v4910 = vsel %vm4872, %v4842, 0.0
          %v4911 = vadd.f32 %v4909, %v4910
          %v4912 = vsel %vm4872, %v4843, 0.0
          %v4913 = vadd.f32 %v4911, %v4912
          %v4914 = vsel %vm4872, %v4844, 0.0
          %v4915 = vadd.f32 %v4913, %v4914
          %v4916 = vsel %vm4872, %v4845, 0.0
          %v4917 = vadd.f32 %v4915, %v4916
          %v4918 = vsel %vm4872, %v4846, 0.0
          %v4919 = vadd.f32 %v4917, %v4918
          %v4920 = vsel %vm4872, %v4847, 0.0
          %v4921 = vadd.f32 %v4919, %v4920
          %v4922 = vsel %vm4872, %v4848, 0.0
          %v4923 = vadd.f32 %v4921, %v4922
          %v4924 = vsel %vm4872, %v4849, 0.0
          %v4925 = vadd.f32 %v4923, %v4924
          %v4926 = vsel %vm4872, %v4850, 0.0
          %v4927 = vadd.f32 %v4925, %v4926
          %v4928 = vsel %vm4872, %v4851, 0.0
          %v4929 = vadd.f32 %v4927, %v4928
          %v4930 = vsel %vm4872, %v4852, 0.0
          %v4931 = vadd.f32 %v4929, %v4930
          %v4932 = vsel %vm4872, %v4853, 0.0
          %v4933 = vadd.f32 %v4931, %v4932
          %v4934 = vsel %vm4872, %v4854, 0.0
          %v4935 = vadd.f32 %v4933, %v4934
          %v4936 = vsel %vm4872, %v4855, 0.0
          %v4937 = vadd.f32 %v4935, %v4936
          %v4938 = vsel %vm4872, %v4856, 0.0
          %v4939 = vadd.f32 %v4937, %v4938
          %v4940 = vsel %vm4872, %v4857, 0.0
          %v4941 = vadd.f32 %v4939, %v4940
          %v4942 = vsel %vm4872, %v4858, 0.0
          %v4943 = vadd.f32 %v4941, %v4942
          %v4944 = vsel %vm4872, %v4859, 0.0
          %v4945 = vadd.f32 %v4943, %v4944
          %v4946 = vsel %vm4872, %v4860, 0.0
          %v4947 = vadd.f32 %v4945, %v4946
          %v4948 = vsel %vm4872, %v4861, 0.0
          %v4949 = vadd.f32 %v4947, %v4948
          %v4950 = vsel %vm4872, %v4862, 0.0
          %v4951 = vadd.f32 %v4949, %v4950
          %v4952 = vsel %vm4872, %v4863, 0.0
          %v4953 = vadd.f32 %v4951, %v4952
          %v4954 = vsel %vm4872, %v4864, 0.0
          %v4955 = vadd.f32 %v4953, %v4954
          %v4956 = vsel %vm4872, %v4865, 0.0
          %v4957 = vadd.f32 %v4955, %v4956
          %v4958 = vsel %vm4872, %v4866, 0.0
          %v4959 = vadd.f32 %v4957, %v4958
          %v4960 = vsel %vm4872, %v4867, 0.0
          %v4961 = vadd.f32 %v4959, %v4960
          %v4962 = vsel %vm4872, %v4868, 0.0
          %v4963 = vadd.f32 %v4961, %v4962
          %v4964 = vsel %vm4872, %v4869, 0.0
          %v4965 = vadd.f32 %v4963, %v4964
          %v4966 = vsel %vm4872, %v4870, 0.0
          %v4967 = vadd.f32 %v4965, %v4966
          %v4968 = vsel %vm4872, %v4871, 0.0
          %v4969 = vadd.f32 %v4967, %v4968
          %v4970 = vsel %vm4872, %v4969, 0.0
          %v4971 = vrot.slane %v4970, 4
          %v4972 = vadd.f32 %v4970, %v4971
          %v4973 = vrot.slane %v4972, 2
          %v4974 = vadd.f32 %v4972, %v4973
          %v4975 = vrot.slane %v4974, 1
          %v4976 = vadd.f32 %v4974, %v4975
          %v4977 = vld [vmem:[#allocation3] sm:$0x1]
          %4979 = vset.pattern.permute.xlu0 0
          %4980 = vperm.xlu0 %4979, %v4977
          %v4981 = vpop.permute.xlu0 %4980
          %v4983 = vlaneseq
          %v4984 = vshrl.u32 %v4983, 7
          %v4985 = vsub.s32 0, %v4984
          %v4986 = vrot.slane %v4981, %v4985
          %v4987 = vadd.f32 %v4976, %v4986
          %vm4988 = vcmask 57344
          %4989 = vst.msk [vmem:[#allocation4] sm:$0x1] %vm4988, %v4987
        $region52: #{tpu_custom_call.1} parent=39 // pred_fallthru
          _
        // Predicated region
        $region53: #{tpu_custom_call.1} parent=39 // pred_check
          %p4990 = pneg %p161
        $region54: #{tpu_custom_call.1} parent=39 // pred_check_branch
          %4992 = sbr.rel (%p4990) target = $region56
        $region55: #{tpu_custom_call.1} parent=39 // pred_region
          %s4994 = ssub.s32 16, 16
          %4995 = vsyncadd [#allocation5], %s4994
          %s4996 = smul.addr %s23, 16
          %s4997 = scalar_lea.hbm %s5, %s4996
          %s4999 = sshll.u32 [#allocation4], 4
          %s5000 = int_to_ptr.vmem [resolvable:$true] %s4999
          %5002 = dma.vmem_to_hbm [thread:$0]  %s5000, 16, %s4997, [#allocation5]
        $region56: #{tpu_custom_call.1} parent=39 // pred_fallthru
          _
        // Predicated region
        $region57: #{tpu_custom_call.1} parent=39 // pred_check
          %p5003 = pneg %p161
        $region58: #{tpu_custom_call.1} parent=39 // pred_check_branch
          %5005 = sbr.rel (%p5003) target = $region60
        $region59: #{tpu_custom_call.1} parent=39 // pred_region
          %5006 = dma.done [#allocation5], 16
        $region60: #{tpu_custom_call.1} parent=39 // pred_fallthru
          _
      $region40: #{tpu_custom_call.1} parent=5 // pred_fallthru
        _
      %p5007 = scmp.le.s32.totalorder 2, %s14
      // Predicated region
      $region61: #{tpu_custom_call.1} parent=5 // pred_check
        %p5008 = pneg %p5007
      $region62: #{tpu_custom_call.1} parent=5 // pred_check_branch
        %5010 = sbr.rel (%p5008) target = $region64
      $region63: #{tpu_custom_call.1} parent=5 // pred_region
        %s5011 = ssub.s32 %s14, 2
      $region64: #{tpu_custom_call.1} parent=5 // pred_fallthru
        _
    $region6: #{tpu_custom_call.1} parent=1 // loop_footer
      %s18 = sadd.s32 1, %s14
    $region7: #{tpu_custom_call.1} parent=1 // loop_footer_branch
      %13 = sbr.rel target = $region3
    $region8: #{tpu_custom_call.1} parent=1 // loop_exit
      _
    %5012 = vsyncpa [#allocation5], 1
    %s5013 = scalar_lea.sflag [#allocation5], 1
    %5014 = vsyncpa %s5013, 1

</llo_original>
